<compile_context>
chip_gen: v5e
topology: v5e:2x2
jax: 0.10.0
libtpu: 0.0.40
codegen_flags: <defaults>
</compile_context>

<pallas_src>
import numpy as np
import jax
import jax.numpy as jnp
from jax.experimental import pallas as pl
from jax.experimental.pallas import tpu as pltpu


def _bilinear_matrix(n_in, n_out):
    """align_corners=True bilinear interpolation matrix (n_out, n_in)."""
    A = np.zeros((n_out, n_in), dtype=np.float32)
    if n_out == 1:
        A[0, 0] = 1.0
        return A
    scale = (n_in - 1) / (n_out - 1)
    for o in range(n_out):
        src = o * scale
        i0 = min(int(np.floor(src)), n_in - 1)
        i1 = min(i0 + 1, n_in - 1)
        f = src - i0
        A[o, i0] += 1.0 - f
        A[o, i1] += f
    return A


def up_kernel(x1s_ref, x2s_ref, ah_ref, mw1_ref, g1_ref, g2_ref,
              cs_ref, cexp_ref, mask_ref,
              gamma1_ref, beta1_ref, gamma2_ref, beta2_ref,
              out_ref, ypad_ref):
    f32 = jnp.float32
    bf16 = jnp.bfloat16

    NHp = x2s_ref.shape[0]          # N * (H2 + 2)  (row-padded, batch-stacked)
    NH2 = out_ref.shape[0]          # N * H2
    N = (NHp - NH2) // 2
    H2 = NH2 // N
    Hp = H2 + 2
    R = NHp - 2                     # rows of conv output (incl. seam garbage rows)
    LC = out_ref.shape[1]           # W2 * Cout
    Cout = cs_ref.shape[1]
    W2 = LC // Cout
    M = float(N * H2 * W2)          # elements per channel for BN statistics
    eps = 1e-5

    def mm(a, b):                   # bf16 MXU matmul, f32 accumulation
        return jnp.dot(a.astype(bf16), b.astype(bf16),
                       preferred_element_type=f32)

    def bcast(v):                   # exact per-channel broadcast to W*C lanes
        return jnp.dot(v, cexp_ref[...],
                       precision=jax.lax.Precision.HIGHEST,
                       preferred_element_type=f32)

    mask = mask_ref[...]            # (R, 1): 0 at image-seam rows, 1 at data rows
                                    # (lane-broadcast against the full slab)

    # ---- bilinear upsample of x1, landing directly in the padded concat layout ----
    up = mm(mm(ah_ref[...], x1s_ref[...]), mw1_ref[...])       # (NHp, W2*Cin)
    xc = x2s_ref[...] + up                                     # concat([x2, up], C)

    # ---- conv1: 3 vertical taps = 3 row-sliced, batch-stacked matmuls ----
    y1 = mm(xc[0:R, :], g1_ref[0])
    y1 = y1 + mm(xc[1:R + 1, :], g1_ref[1])
    y1 = y1 + mm(xc[2:R + 2, :], g1_ref[2])                    # (R, W2*Cout)
    y1 = y1 * mask                                             # zero the seam rows

    # ---- BatchNorm1 (single-pass batch stats) + ReLU ----
    s1 = jnp.sum(mm(y1, cs_ref[...]), axis=0, keepdims=True)        # (1, Cout)
    ss1 = jnp.sum(mm(y1 * y1, cs_ref[...]), axis=0, keepdims=True)  # (1, Cout)
    mean1 = s1 / M
    var1 = ss1 / M - mean1 * mean1
    scale1 = gamma1_ref[...] * jax.lax.rsqrt(var1 + eps)
    shift1 = beta1_ref[...] - mean1 * scale1
    scale1b = bcast(scale1)
    shift1b = bcast(shift1)
    h1 = jnp.maximum(y1 * scale1b + shift1b, 0.0) * mask       # (R, W2*Cout)

    # ---- conv2 input: re-insert the per-image zero padding rows via scratch ----
    # (only the two slab-boundary rows need explicit zeros; seam rows inside h1
    #  are already zero thanks to the mask)
    ypad_ref[0:1, :] = jnp.zeros((1, LC), f32)
    ypad_ref[NHp - 1:NHp, :] = jnp.zeros((1, LC), f32)
    ypad_ref[1:NHp - 1, :] = h1

    y2 = mm(ypad_ref[0:R, :], g2_ref[0])
    y2 = y2 + mm(ypad_ref[1:R + 1, :], g2_ref[1])
    y2 = y2 + mm(ypad_ref[2:R + 2, :], g2_ref[2])
    y2 = y2 * mask

    # ---- BatchNorm2 + ReLU ----
    s2 = jnp.sum(mm(y2, cs_ref[...]), axis=0, keepdims=True)
    ss2 = jnp.sum(mm(y2 * y2, cs_ref[...]), axis=0, keepdims=True)
    mean2 = s2 / M
    var2 = ss2 / M - mean2 * mean2
    scale2 = gamma2_ref[...] * jax.lax.rsqrt(var2 + eps)
    shift2 = beta2_ref[...] - mean2 * scale2
    scale2b = bcast(scale2)
    shift2b = bcast(shift2)
    o = jnp.maximum(y2 * scale2b + shift2b, 0.0)               # (R, W2*Cout)

    # ---- drop padding/seam rows: write only the real data rows ----
    for n in range(N):
        out_ref[n * H2:(n + 1) * H2, :] = o[n * Hp:n * Hp + H2, :]


def up_forward(x1, x2, w1, w2, gamma1, beta1, gamma2, beta2):
    """x1: (N,C1,H1,W1), x2: (N,C2,2*H1,2*W1) NCHW.  w1/w2 are HWIO conv weights."""
    N, C1, H1, W1 = x1.shape
    _, C2, H2, W2 = x2.shape
    Cin = C1 + C2
    Cout = w1.shape[-1]
    Hp = H2 + 2
    NHp = N * Hp
    R = NHp - 2
    f32 = np.float32
    bf16 = jnp.bfloat16

    # bilinear (align_corners=True) interpolation matrices
    A_h = _bilinear_matrix(H1, H2)                      # (H2, H1)
    A_w = _bilinear_matrix(W1, W2)                      # (W2, W1)

    # block-diagonal, row-padded vertical upsample matrix (stacks the batch)
    AHs = np.zeros((NHp, N * H1), f32)
    for n in range(N):
        AHs[n * Hp + 1:n * Hp + 1 + H2, n * H1:(n + 1) * H1] = A_h

    # horizontal upsample folded with the channel-concat placement:
    # up(x1) lands directly in lanes w*Cin + C2 + c  (x2 occupies lanes 0..C2-1)
    MW1 = np.zeros((W1 * C1, W2 * Cin), f32)
    for c in range(C1):
        MW1[c::C1, C2 + c::Cin] = A_w.T

    # conv taps with the horizontal SAME (zero) padding folded in
    w1_np = np.asarray(w1, f32)                         # (3,3,Cin,Cout)  HWIO
    w2_np = np.asarray(w2, f32)                         # (3,3,Cout,Cout)
    G1 = np.zeros((3, W2 * Cin, W2 * Cout), f32)
    G2 = np.zeros((3, W2 * Cout, W2 * Cout), f32)
    for dy in range(3):
        for wo in range(W2):
            for dx in range(3):
                wi = wo + dx - 1
                if 0 <= wi < W2:
                    G1[dy, wi * Cin:(wi + 1) * Cin, wo * Cout:(wo + 1) * Cout] += w1_np[dy, dx]
                    G2[dy, wi * Cout:(wi + 1) * Cout, wo * Cout:(wo + 1) * Cout] += w2_np[dy, dx]

    # per-channel reduce / broadcast matrices (channels fastest along lanes)
    CS = np.tile(np.eye(Cout, dtype=f32), (W2, 1))      # (W2*Cout, Cout)
    Cexp = np.ascontiguousarray(CS.T)                   # (Cout, W2*Cout)

    # (R, 1) column mask of real data rows among the R conv-output rows
    # (zeros at image seams); broadcast along lanes inside the kernel.
    mask = np.ones((R, 1), f32)
    for j in range(R):
        pr = (j + 1) % Hp
        if pr == 0 or pr == Hp - 1:
            mask[j, 0] = 0.0

    # activations in the stacked slab layout
    # x1 only ever feeds bf16 MXU matmuls -> ship it as bf16 (halves its DMA).
    x1s = jnp.transpose(x1, (0, 2, 3, 1)).reshape(N * H1, W1 * C1).astype(bf16)
    x2_nhwc = jnp.transpose(x2, (0, 2, 3, 1))           # (N, H2, W2, C2)
    x2s = jnp.pad(x2_nhwc, ((0, 0), (1, 1), (0, 0), (0, Cin - C2))
                  ).reshape(NHp, W2 * Cin)              # zero rows + zero hi-channels

    args = (x1s, x2s,
            jnp.asarray(AHs, bf16), jnp.asarray(MW1, bf16),
            jnp.asarray(G1, bf16), jnp.asarray(G2, bf16),
            jnp.asarray(CS, bf16), jnp.asarray(Cexp),
            jnp.asarray(mask),
            gamma1, beta1, gamma2, beta2)

    out2d = pl.pallas_call(
        up_kernel,
        out_shape=jax.ShapeDtypeStruct((N * H2, W2 * Cout), jnp.float32),
        in_specs=[pl.BlockSpec(memory_space=pltpu.MemorySpace.VMEM)] * len(args),
        out_specs=pl.BlockSpec(memory_space=pltpu.MemorySpace.VMEM),
        scratch_shapes=[pltpu.VMEM((NHp, W2 * Cout), jnp.float32)],
        compiler_params=pltpu.CompilerParams(vmem_limit_bytes=32 * 1024 * 1024),
    )(*args)

    out = out2d.reshape(N, H2, W2, Cout)
    return jnp.transpose(out, (0, 3, 1, 2))             # back to NCHW


def up_reference(x1, x2, w1, w2, gamma1, beta1, gamma2, beta2):
    """Pure-JAX reference mirroring the PyTorch forward (train-mode BN)."""
    N, C1, H1, W1 = x1.shape
    H2, W2 = 2 * H1, 2 * W1
    A_h = jnp.asarray(_bilinear_matrix(H1, H2))
    A_w = jnp.asarray(_bilinear_matrix(W1, W2))
    up = jnp.einsum('Oh,Pw,nchw->ncOP', A_h, A_w, x1,
                    precision=jax.lax.Precision.HIGHEST)
    x = jnp.concatenate([x2, up], axis=1)
    dn = ('NCHW', 'HWIO', 'NCHW')

    def block(x, w, gamma, beta):
        y = jax.lax.conv_general_dilated(x, w, (1, 1), 'SAME', dimension_numbers=dn,
                                         precision=jax.lax.Precision.HIGHEST)
        mean = jnp.mean(y, axis=(0, 2, 3), keepdims=True)
        var = jnp.mean((y - mean) ** 2, axis=(0, 2, 3), keepdims=True)
        y = (y - mean) * jax.lax.rsqrt(var + 1e-5)
        y = y * gamma.reshape(1, -1, 1, 1) + beta.reshape(1, -1, 1, 1)
        return jnp.maximum(y, 0.0)

    return block(block(x, w1, gamma1, beta1), w2, gamma2, beta2)


if __name__ == "__main__":
    N, C1, H1, W1 = 2, 4, 16, 16
    C2 = 4
    H2, W2 = 2 * H1, 2 * W1
    Cin, Cout = C1 + C2, 8

    key = jax.random.PRNGKey(0)
    ks = jax.random.split(key, 8)
    x1 = jax.random.normal(ks[0], (N, C1, H1, W1), jnp.float32)
    x2 = jax.random.normal(ks[1], (N, C2, H2, W2), jnp.float32)
    # deterministic synthetic parameters (Conv2d weights stored HWIO, no bias)
    w1 = jax.random.normal(ks[2], (3, 3, Cin, Cout), jnp.float32) / np.sqrt(9 * Cin)
    w2 = jax.random.normal(ks[3], (3, 3, Cout, Cout), jnp.float32) / np.sqrt(9 * Cout)
    gamma1 = 1.0 + 0.1 * jax.random.normal(ks[4], (1, Cout), jnp.float32)
    beta1 = 0.1 * jax.random.normal(ks[5], (1, Cout), jnp.float32)
    gamma2 = 1.0 + 0.1 * jax.random.normal(ks[6], (1, Cout), jnp.float32)
    beta2 = 0.1 * jax.random.normal(ks[7], (1, Cout), jnp.float32)

    out = up_forward(x1, x2, w1, w2, gamma1, beta1, gamma2, beta2)
    out = jax.block_until_ready(out)

    ref = up_reference(x1, x2, w1, w2, gamma1, beta1, gamma2, beta2)
    assert out.shape == (N, Cout, H2, W2), out.shape
    err = float(jnp.max(jnp.abs(out - ref)))
    # bf16 MXU inputs with f32 accumulation vs. an all-f32 HIGHEST reference
    assert err < 5e-2, f"max abs error {err}"
    print("KERNEL_OK")
</pallas_src>

<mosaic_0001>
module attributes {stable_mosaic.version = 11 : i64} {
  func.func @up_kernel(%arg0: memref<32x64xbf16, #tpu.memory_space<vmem>>, %arg1: memref<68x256xf32, #tpu.memory_space<vmem>>, %arg2: memref<68x32xbf16, #tpu.memory_space<vmem>>, %arg3: memref<64x256xbf16, #tpu.memory_space<vmem>>, %arg4: memref<3x256x256xbf16, #tpu.memory_space<vmem>>, %arg5: memref<3x256x256xbf16, #tpu.memory_space<vmem>>, %arg6: memref<256x8xbf16, #tpu.memory_space<vmem>>, %arg7: memref<8x256xf32, #tpu.memory_space<vmem>>, %arg8: memref<66x1xf32, #tpu.memory_space<vmem>>, %arg9: memref<1x8xf32, #tpu.memory_space<vmem>>, %arg10: memref<1x8xf32, #tpu.memory_space<vmem>>, %arg11: memref<1x8xf32, #tpu.memory_space<vmem>>, %arg12: memref<1x8xf32, #tpu.memory_space<vmem>>, %arg13: memref<64x256xf32, #tpu.memory_space<vmem>>, %arg14: memref<68x256xf32, #tpu.memory_space<vmem>>) attributes {dimension_semantics = [], scalar_prefetch = 0 : i64, scratch_operands = 1 : i64, tpu.core_type = #tpu.core_type<tc>} {
    %c0 = arith.constant 0 : index
    %c0_0 = arith.constant 0 : index
    %0 = vector.load %arg8[%c0, %c0_0] : memref<66x1xf32, #tpu.memory_space<vmem>>, vector<66x1xf32>
    %c0_1 = arith.constant 0 : index
    %c0_2 = arith.constant 0 : index
    %1 = vector.load %arg2[%c0_1, %c0_2] : memref<68x32xbf16, #tpu.memory_space<vmem>>, vector<68x32xbf16>
    %c0_3 = arith.constant 0 : index
    %c0_4 = arith.constant 0 : index
    %2 = vector.load %arg0[%c0_3, %c0_4] : memref<32x64xbf16, #tpu.memory_space<vmem>>, vector<32x64xbf16>
    %cst = arith.constant dense<0.000000e+00> : vector<68x64xf32>
    %3 = tpu.matmul %1, %2, %cst {dimension_numbers = #tpu.dot_dimension_numbers<[1], [0], [0], [1], [0, 0, 1, 1], [], []>} : vector<68x32xbf16>, vector<32x64xbf16>, vector<68x64xf32> -> vector<68x64xf32>
    %c0_5 = arith.constant 0 : index
    %c0_6 = arith.constant 0 : index
    %4 = vector.load %arg3[%c0_5, %c0_6] : memref<64x256xbf16, #tpu.memory_space<vmem>>, vector<64x256xbf16>
    %5 = arith.truncf %3 : vector<68x64xf32> to vector<68x64xbf16>
    %cst_7 = arith.constant dense<0.000000e+00> : vector<68x256xf32>
    %6 = tpu.matmul %5, %4, %cst_7 {dimension_numbers = #tpu.dot_dimension_numbers<[1], [0], [0], [1], [0, 0, 1, 1], [], []>} : vector<68x64xbf16>, vector<64x256xbf16>, vector<68x256xf32> -> vector<68x256xf32>
    %c0_8 = arith.constant 0 : index
    %c0_9 = arith.constant 0 : index
    %7 = vector.load %arg1[%c0_8, %c0_9] : memref<68x256xf32, #tpu.memory_space<vmem>>, vector<68x256xf32>
    %8 = arith.addf %7, %6 : vector<68x256xf32>
    %9 = vector.extract_strided_slice %8 {offsets = [0, 0], sizes = [66, 256], strides = [1, 1]} : vector<68x256xf32> to vector<66x256xf32>
    %c0_10 = arith.constant 0 : index
    %c0_11 = arith.constant 0 : index
    %c0_12 = arith.constant 0 : index
    %10 = vector.load %arg4[%c0_10, %c0_11, %c0_12] : memref<3x256x256xbf16, #tpu.memory_space<vmem>>, vector<1x256x256xbf16>
    %11 = vector.shape_cast %10 : vector<1x256x256xbf16> to vector<256x256xbf16>
    %12 = arith.truncf %9 : vector<66x256xf32> to vector<66x256xbf16>
    %cst_13 = arith.constant dense<0.000000e+00> : vector<66x256xf32>
    %13 = tpu.matmul %12, %11, %cst_13 {dimension_numbers = #tpu.dot_dimension_numbers<[1], [0], [0], [1], [0, 0, 1, 1], [], []>} : vector<66x256xbf16>, vector<256x256xbf16>, vector<66x256xf32> -> vector<66x256xf32>
    %14 = vector.extract_strided_slice %8 {offsets = [1, 0], sizes = [66, 256], strides = [1, 1]} : vector<68x256xf32> to vector<66x256xf32>
    %c1 = arith.constant 1 : index
    %c0_14 = arith.constant 0 : index
    %c0_15 = arith.constant 0 : index
    %15 = vector.load %arg4[%c1, %c0_14, %c0_15] : memref<3x256x256xbf16, #tpu.memory_space<vmem>>, vector<1x256x256xbf16>
    %16 = vector.shape_cast %15 : vector<1x256x256xbf16> to vector<256x256xbf16>
    %17 = arith.truncf %14 : vector<66x256xf32> to vector<66x256xbf16>
    %cst_16 = arith.constant dense<0.000000e+00> : vector<66x256xf32>
    %18 = tpu.matmul %17, %16, %cst_16 {dimension_numbers = #tpu.dot_dimension_numbers<[1], [0], [0], [1], [0, 0, 1, 1], [], []>} : vector<66x256xbf16>, vector<256x256xbf16>, vector<66x256xf32> -> vector<66x256xf32>
    %19 = arith.addf %13, %18 : vector<66x256xf32>
    %20 = vector.extract_strided_slice %8 {offsets = [2, 0], sizes = [66, 256], strides = [1, 1]} : vector<68x256xf32> to vector<66x256xf32>
    %c2 = arith.constant 2 : index
    %c0_17 = arith.constant 0 : index
    %c0_18 = arith.constant 0 : index
    %21 = vector.load %arg4[%c2, %c0_17, %c0_18] : memref<3x256x256xbf16, #tpu.memory_space<vmem>>, vector<1x256x256xbf16>
    %22 = vector.shape_cast %21 : vector<1x256x256xbf16> to vector<256x256xbf16>
    %23 = arith.truncf %20 : vector<66x256xf32> to vector<66x256xbf16>
    %cst_19 = arith.constant dense<0.000000e+00> : vector<66x256xf32>
    %24 = tpu.matmul %23, %22, %cst_19 {dimension_numbers = #tpu.dot_dimension_numbers<[1], [0], [0], [1], [0, 0, 1, 1], [], []>} : vector<66x256xbf16>, vector<256x256xbf16>, vector<66x256xf32> -> vector<66x256xf32>
    %25 = arith.addf %19, %24 : vector<66x256xf32>
    %26 = vector.broadcast %0 : vector<66x1xf32> to vector<66x256xf32>
    %27 = arith.mulf %25, %26 : vector<66x256xf32>
    %c0_20 = arith.constant 0 : index
    %c0_21 = arith.constant 0 : index
    %28 = vector.load %arg6[%c0_20, %c0_21] : memref<256x8xbf16, #tpu.memory_space<vmem>>, vector<256x8xbf16>
    %29 = arith.truncf %27 : vector<66x256xf32> to vector<66x256xbf16>
    %cst_22 = arith.constant dense<0.000000e+00> : vector<66x8xf32>
    %30 = tpu.matmul %29, %28, %cst_22 {dimension_numbers = #tpu.dot_dimension_numbers<[1], [0], [0], [1], [0, 0, 1, 1], [], []>} : vector<66x256xbf16>, vector<256x8xbf16>, vector<66x8xf32> -> vector<66x8xf32>
    %cst_23 = arith.constant dense<0.000000e+00> : vector<8xf32>
    %31 = vector.multi_reduction <add>, %30, %cst_23 [0] : vector<66x8xf32> to vector<8xf32>
    %32 = vector.shape_cast %31 : vector<8xf32> to vector<1x8xf32>
    %33 = arith.mulf %27, %27 : vector<66x256xf32>
    %c0_24 = arith.constant 0 : index
    %c0_25 = arith.constant 0 : index
    %34 = vector.load %arg6[%c0_24, %c0_25] : memref<256x8xbf16, #tpu.memory_space<vmem>>, vector<256x8xbf16>
    %35 = arith.truncf %33 : vector<66x256xf32> to vector<66x256xbf16>
    %cst_26 = arith.constant dense<0.000000e+00> : vector<66x8xf32>
    %36 = tpu.matmul %35, %34, %cst_26 {dimension_numbers = #tpu.dot_dimension_numbers<[1], [0], [0], [1], [0, 0, 1, 1], [], []>} : vector<66x256xbf16>, vector<256x8xbf16>, vector<66x8xf32> -> vector<66x8xf32>
    %cst_27 = arith.constant dense<0.000000e+00> : vector<8xf32>
    %37 = vector.multi_reduction <add>, %36, %cst_27 [0] : vector<66x8xf32> to vector<8xf32>
    %38 = vector.shape_cast %37 : vector<8xf32> to vector<1x8xf32>
    %cst_28 = arith.constant 2.048000e+03 : f32
    %39 = vector.broadcast %cst_28 : f32 to vector<1x8xf32>
    %40 = arith.divf %32, %39 : vector<1x8xf32>
    %cst_29 = arith.constant 2.048000e+03 : f32
    %41 = vector.broadcast %cst_29 : f32 to vector<1x8xf32>
    %42 = arith.divf %38, %41 : vector<1x8xf32>
    %43 = arith.mulf %40, %40 : vector<1x8xf32>
    %44 = arith.subf %42, %43 : vector<1x8xf32>
    %c0_30 = arith.constant 0 : index
    %c0_31 = arith.constant 0 : index
    %45 = vector.load %arg9[%c0_30, %c0_31] : memref<1x8xf32, #tpu.memory_space<vmem>>, vector<1x8xf32>
    %cst_32 = arith.constant 9.99999974E-6 : f32
    %46 = vector.broadcast %cst_32 : f32 to vector<1x8xf32>
    %47 = arith.addf %44, %46 : vector<1x8xf32>
    %48 = math.rsqrt %47 : vector<1x8xf32>
    %49 = arith.mulf %45, %48 : vector<1x8xf32>
    %c0_33 = arith.constant 0 : index
    %c0_34 = arith.constant 0 : index
    %50 = vector.load %arg10[%c0_33, %c0_34] : memref<1x8xf32, #tpu.memory_space<vmem>>, vector<1x8xf32>
    %51 = arith.mulf %40, %49 : vector<1x8xf32>
    %52 = arith.subf %50, %51 : vector<1x8xf32>
    %c0_35 = arith.constant 0 : index
    %c0_36 = arith.constant 0 : index
    %53 = vector.load %arg7[%c0_35, %c0_36] : memref<8x256xf32, #tpu.memory_space<vmem>>, vector<8x256xf32>
    %cst_37 = arith.constant dense<0.000000e+00> : vector<1x256xf32>
    %54 = tpu.matmul %49, %53, %cst_37 {dimension_numbers = #tpu.dot_dimension_numbers<[1], [0], [0], [1], [0, 0, 1, 1], [], []>, precision = #tpu.contract_precision<fp32>} : vector<1x8xf32>, vector<8x256xf32>, vector<1x256xf32> -> vector<1x256xf32>
    %c0_38 = arith.constant 0 : index
    %c0_39 = arith.constant 0 : index
    %55 = vector.load %arg7[%c0_38, %c0_39] : memref<8x256xf32, #tpu.memory_space<vmem>>, vector<8x256xf32>
    %cst_40 = arith.constant dense<0.000000e+00> : vector<1x256xf32>
    %56 = tpu.matmul %52, %55, %cst_40 {dimension_numbers = #tpu.dot_dimension_numbers<[1], [0], [0], [1], [0, 0, 1, 1], [], []>, precision = #tpu.contract_precision<fp32>} : vector<1x8xf32>, vector<8x256xf32>, vector<1x256xf32> -> vector<1x256xf32>
    %57 = vector.broadcast %54 : vector<1x256xf32> to vector<66x256xf32>
    %58 = arith.mulf %27, %57 : vector<66x256xf32>
    %59 = vector.broadcast %56 : vector<1x256xf32> to vector<66x256xf32>
    %60 = arith.addf %58, %59 : vector<66x256xf32>
    %cst_41 = arith.constant 0.000000e+00 : f32
    %61 = vector.broadcast %cst_41 : f32 to vector<66x256xf32>
    %62 = arith.maximumf %60, %61 : vector<66x256xf32>
    %63 = vector.broadcast %0 : vector<66x1xf32> to vector<66x256xf32>
    %64 = arith.mulf %62, %63 : vector<66x256xf32>
    %cst_42 = arith.constant 0.000000e+00 : f32
    %65 = vector.broadcast %cst_42 : f32 to vector<1x256xf32>
    %c0_43 = arith.constant 0 : index
    %c0_44 = arith.constant 0 : index
    %66 = vector.load %arg14[%c0_43, %c0_44] : memref<68x256xf32, #tpu.memory_space<vmem>>, vector<1x256xf32>
    tpu.vector_store %arg14[%c0_43, %c0_44], %65 {strides = array<i32>} : memref<68x256xf32, #tpu.memory_space<vmem>>, vector<1x256xf32>,
    %cst_45 = arith.constant 0.000000e+00 : f32
    %67 = vector.broadcast %cst_45 : f32 to vector<1x256xf32>
    %c67 = arith.constant 67 : index
    %c0_46 = arith.constant 0 : index
    %68 = vector.load %arg14[%c67, %c0_46] : memref<68x256xf32, #tpu.memory_space<vmem>>, vector<1x256xf32>
    tpu.vector_store %arg14[%c67, %c0_46], %67 {strides = array<i32>} : memref<68x256xf32, #tpu.memory_space<vmem>>, vector<1x256xf32>,
    %c1_47 = arith.constant 1 : index
    %c0_48 = arith.constant 0 : index
    %69 = vector.load %arg14[%c1_47, %c0_48] : memref<68x256xf32, #tpu.memory_space<vmem>>, vector<66x256xf32>
    tpu.vector_store %arg14[%c1_47, %c0_48], %64 {strides = array<i32>} : memref<68x256xf32, #tpu.memory_space<vmem>>, vector<66x256xf32>,
    %c0_49 = arith.constant 0 : index
    %c0_50 = arith.constant 0 : index
    %70 = vector.load %arg14[%c0_49, %c0_50] : memref<68x256xf32, #tpu.memory_space<vmem>>, vector<66x256xf32>
    %c0_51 = arith.constant 0 : index
    %c0_52 = arith.constant 0 : index
    %c0_53 = arith.constant 0 : index
    %71 = vector.load %arg5[%c0_51, %c0_52, %c0_53] : memref<3x256x256xbf16, #tpu.memory_space<vmem>>, vector<1x256x256xbf16>
    %72 = vector.shape_cast %71 : vector<1x256x256xbf16> to vector<256x256xbf16>
    %73 = arith.truncf %70 : vector<66x256xf32> to vector<66x256xbf16>
    %cst_54 = arith.constant dense<0.000000e+00> : vector<66x256xf32>
    %74 = tpu.matmul %73, %72, %cst_54 {dimension_numbers = #tpu.dot_dimension_numbers<[1], [0], [0], [1], [0, 0, 1, 1], [], []>} : vector<66x256xbf16>, vector<256x256xbf16>, vector<66x256xf32> -> vector<66x256xf32>
    %c1_55 = arith.constant 1 : index
    %c0_56 = arith.constant 0 : index
    %75 = vector.load %arg14[%c1_55, %c0_56] : memref<68x256xf32, #tpu.memory_space<vmem>>, vector<66x256xf32>
    %c1_57 = arith.constant 1 : index
    %c0_58 = arith.constant 0 : index
    %c0_59 = arith.constant 0 : index
    %76 = vector.load %arg5[%c1_57, %c0_58, %c0_59] : memref<3x256x256xbf16, #tpu.memory_space<vmem>>, vector<1x256x256xbf16>
    %77 = vector.shape_cast %76 : vector<1x256x256xbf16> to vector<256x256xbf16>
    %78 = arith.truncf %75 : vector<66x256xf32> to vector<66x256xbf16>
    %cst_60 = arith.constant dense<0.000000e+00> : vector<66x256xf32>
    %79 = tpu.matmul %78, %77, %cst_60 {dimension_numbers = #tpu.dot_dimension_numbers<[1], [0], [0], [1], [0, 0, 1, 1], [], []>} : vector<66x256xbf16>, vector<256x256xbf16>, vector<66x256xf32> -> vector<66x256xf32>
    %80 = arith.addf %74, %79 : vector<66x256xf32>
    %c2_61 = arith.constant 2 : index
    %c0_62 = arith.constant 0 : index
    %81 = vector.load %arg14[%c2_61, %c0_62] : memref<68x256xf32, #tpu.memory_space<vmem>>, vector<66x256xf32>
    %c2_63 = arith.constant 2 : index
    %c0_64 = arith.constant 0 : index
    %c0_65 = arith.constant 0 : index
    %82 = vector.load %arg5[%c2_63, %c0_64, %c0_65] : memref<3x256x256xbf16, #tpu.memory_space<vmem>>, vector<1x256x256xbf16>
    %83 = vector.shape_cast %82 : vector<1x256x256xbf16> to vector<256x256xbf16>
    %84 = arith.truncf %81 : vector<66x256xf32> to vector<66x256xbf16>
    %cst_66 = arith.constant dense<0.000000e+00> : vector<66x256xf32>
    %85 = tpu.matmul %84, %83, %cst_66 {dimension_numbers = #tpu.dot_dimension_numbers<[1], [0], [0], [1], [0, 0, 1, 1], [], []>} : vector<66x256xbf16>, vector<256x256xbf16>, vector<66x256xf32> -> vector<66x256xf32>
    %86 = arith.addf %80, %85 : vector<66x256xf32>
    %87 = vector.broadcast %0 : vector<66x1xf32> to vector<66x256xf32>
    %88 = arith.mulf %86, %87 : vector<66x256xf32>
    %c0_67 = arith.constant 0 : index
    %c0_68 = arith.constant 0 : index
    %89 = vector.load %arg6[%c0_67, %c0_68] : memref<256x8xbf16, #tpu.memory_space<vmem>>, vector<256x8xbf16>
    %90 = arith.truncf %88 : vector<66x256xf32> to vector<66x256xbf16>
    %cst_69 = arith.constant dense<0.000000e+00> : vector<66x8xf32>
    %91 = tpu.matmul %90, %89, %cst_69 {dimension_numbers = #tpu.dot_dimension_numbers<[1], [0], [0], [1], [0, 0, 1, 1], [], []>} : vector<66x256xbf16>, vector<256x8xbf16>, vector<66x8xf32> -> vector<66x8xf32>
    %cst_70 = arith.constant dense<0.000000e+00> : vector<8xf32>
    %92 = vector.multi_reduction <add>, %91, %cst_70 [0] : vector<66x8xf32> to vector<8xf32>
    %93 = vector.shape_cast %92 : vector<8xf32> to vector<1x8xf32>
    %94 = arith.mulf %88, %88 : vector<66x256xf32>
    %c0_71 = arith.constant 0 : index
    %c0_72 = arith.constant 0 : index
    %95 = vector.load %arg6[%c0_71, %c0_72] : memref<256x8xbf16, #tpu.memory_space<vmem>>, vector<256x8xbf16>
    %96 = arith.truncf %94 : vector<66x256xf32> to vector<66x256xbf16>
    %cst_73 = arith.constant dense<0.000000e+00> : vector<66x8xf32>
    %97 = tpu.matmul %96, %95, %cst_73 {dimension_numbers = #tpu.dot_dimension_numbers<[1], [0], [0], [1], [0, 0, 1, 1], [], []>} : vector<66x256xbf16>, vector<256x8xbf16>, vector<66x8xf32> -> vector<66x8xf32>
    %cst_74 = arith.constant dense<0.000000e+00> : vector<8xf32>
    %98 = vector.multi_reduction <add>, %97, %cst_74 [0] : vector<66x8xf32> to vector<8xf32>
    %99 = vector.shape_cast %98 : vector<8xf32> to vector<1x8xf32>
    %cst_75 = arith.constant 2.048000e+03 : f32
    %100 = vector.broadcast %cst_75 : f32 to vector<1x8xf32>
    %101 = arith.divf %93, %100 : vector<1x8xf32>
    %cst_76 = arith.constant 2.048000e+03 : f32
    %102 = vector.broadcast %cst_76 : f32 to vector<1x8xf32>
    %103 = arith.divf %99, %102 : vector<1x8xf32>
    %104 = arith.mulf %101, %101 : vector<1x8xf32>
    %105 = arith.subf %103, %104 : vector<1x8xf32>
    %c0_77 = arith.constant 0 : index
    %c0_78 = arith.constant 0 : index
    %106 = vector.load %arg11[%c0_77, %c0_78] : memref<1x8xf32, #tpu.memory_space<vmem>>, vector<1x8xf32>
    %cst_79 = arith.constant 9.99999974E-6 : f32
    %107 = vector.broadcast %cst_79 : f32 to vector<1x8xf32>
    %108 = arith.addf %105, %107 : vector<1x8xf32>
    %109 = math.rsqrt %108 : vector<1x8xf32>
    %110 = arith.mulf %106, %109 : vector<1x8xf32>
    %c0_80 = arith.constant 0 : index
    %c0_81 = arith.constant 0 : index
    %111 = vector.load %arg12[%c0_80, %c0_81] : memref<1x8xf32, #tpu.memory_space<vmem>>, vector<1x8xf32>
    %112 = arith.mulf %101, %110 : vector<1x8xf32>
    %113 = arith.subf %111, %112 : vector<1x8xf32>
    %c0_82 = arith.constant 0 : index
    %c0_83 = arith.constant 0 : index
    %114 = vector.load %arg7[%c0_82, %c0_83] : memref<8x256xf32, #tpu.memory_space<vmem>>, vector<8x256xf32>
    %cst_84 = arith.constant dense<0.000000e+00> : vector<1x256xf32>
    %115 = tpu.matmul %110, %114, %cst_84 {dimension_numbers = #tpu.dot_dimension_numbers<[1], [0], [0], [1], [0, 0, 1, 1], [], []>, precision = #tpu.contract_precision<fp32>} : vector<1x8xf32>, vector<8x256xf32>, vector<1x256xf32> -> vector<1x256xf32>
    %c0_85 = arith.constant 0 : index
    %c0_86 = arith.constant 0 : index
    %116 = vector.load %arg7[%c0_85, %c0_86] : memref<8x256xf32, #tpu.memory_space<vmem>>, vector<8x256xf32>
    %cst_87 = arith.constant dense<0.000000e+00> : vector<1x256xf32>
    %117 = tpu.matmul %113, %116, %cst_87 {dimension_numbers = #tpu.dot_dimension_numbers<[1], [0], [0], [1], [0, 0, 1, 1], [], []>, precision = #tpu.contract_precision<fp32>} : vector<1x8xf32>, vector<8x256xf32>, vector<1x256xf32> -> vector<1x256xf32>
    %118 = vector.broadcast %115 : vector<1x256xf32> to vector<66x256xf32>
    %119 = arith.mulf %88, %118 : vector<66x256xf32>
    %120 = vector.broadcast %117 : vector<1x256xf32> to vector<66x256xf32>
    %121 = arith.addf %119, %120 : vector<66x256xf32>
    %cst_88 = arith.constant 0.000000e+00 : f32
    %122 = vector.broadcast %cst_88 : f32 to vector<66x256xf32>
    %123 = arith.maximumf %121, %122 : vector<66x256xf32>
    %124 = vector.extract_strided_slice %123 {offsets = [0, 0], sizes = [32, 256], strides = [1, 1]} : vector<66x256xf32> to vector<32x256xf32>
    %c0_89 = arith.constant 0 : index
    %c0_90 = arith.constant 0 : index
    %125 = vector.load %arg13[%c0_89, %c0_90] : memref<64x256xf32, #tpu.memory_space<vmem>>, vector<32x256xf32>
    tpu.vector_store %arg13[%c0_89, %c0_90], %124 {strides = array<i32>} : memref<64x256xf32, #tpu.memory_space<vmem>>, vector<32x256xf32>,
    %126 = vector.extract_strided_slice %123 {offsets = [34, 0], sizes = [32, 256], strides = [1, 1]} : vector<66x256xf32> to vector<32x256xf32>
    %c32 = arith.constant 32 : index
    %c0_91 = arith.constant 0 : index
    %127 = vector.load %arg13[%c32, %c0_91] : memref<64x256xf32, #tpu.memory_space<vmem>>, vector<32x256xf32>
    tpu.vector_store %arg13[%c32, %c0_91], %126 {strides = array<i32>} : memref<64x256xf32, #tpu.memory_space<vmem>>, vector<32x256xf32>,
    return
  }
}

</mosaic_0001>

<llo_original>
// kernel: tpu_custom_call.1
$region0: #{tpu_custom_call.1}
  #allocation0 [shape = 'u32[]', space=smem, size = 0x4, offset = 0x4, fixed_abs, tag = 'smem constant byte address 0x4 - core index']
  #allocation1 [shape = 'u32[72,128]{1,0:T(1,128)}', space=vmem, size = 0x9000, scoped, tag = 'internal scratch']
  #allocation2 [shape = 'f32[68,256]{1,0:T(8,128)}', space=vmem, size = 0x12000, scoped, tag = 'scratch operand']
  %s0 = inlined_call_operand.vmem [shape: bf16[32,64], index: 0, kind: input, shape index: {}]
  %s1 = inlined_call_operand.vmem [shape: f32[68,256], index: 1, kind: input, shape index: {}]
  %s2 = inlined_call_operand.vmem [shape: bf16[68,32], index: 2, kind: input, shape index: {}]
  %s3 = inlined_call_operand.vmem [shape: bf16[64,256], index: 3, kind: input, shape index: {}]
  %s4 = inlined_call_operand.hbm [shape: bf16[3,256,256], index: 4, kind: input, shape index: {}]
  %s5 = inlined_call_operand.hbm [shape: bf16[3,256,256], index: 5, kind: input, shape index: {}]
  %s6 = inlined_call_operand.vmem [shape: bf16[256,8], index: 6, kind: input, shape index: {}]
  %s7 = inlined_call_operand.vmem [shape: f32[8,256], index: 7, kind: input, shape index: {}]
  %s8 = inlined_call_operand.vmem [shape: f32[66,1], index: 8, kind: input, shape index: {}]
  %s9 = inlined_call_operand.vmem [shape: f32[1,8], index: 9, kind: input, shape index: {}]
  %s10 = inlined_call_operand.vmem [shape: f32[1,8], index: 10, kind: input, shape index: {}]
  %s11 = inlined_call_operand.vmem [shape: f32[1,8], index: 11, kind: input, shape index: {}]
  %s12 = inlined_call_operand.vmem [shape: f32[1,8], index: 12, kind: input, shape index: {}]
  %s13 = inlined_call_operand.hbm [shape: f32[64,256], index: 13, kind: output, shape index: {}]
  %s14 = sld [smem:[#allocation0]]
  $region70: #{tpu_custom_call.1} parent=0
    _
  %s16 = ssub.s32 1, %s14
  %s17 = scalar_select 0, %s16, %s14
  $region1: #{tpu_custom_call.1} parent=0
    #allocation3 [shape = 'u8[393216]{0}', space=vmem, size = 0x60000, scoped, tag = 'input window, operand 4, single buffered']
    #allocation4 [shape = 's32[1]{0}', space=sflag, size = 0x4, scoped, tag = 'scoped memory for tpu_custom_call.1']
    #allocation5 [shape = 's32[1]{0}', space=sflag, size = 0x4, scoped, tag = 'scoped memory for tpu_custom_call.1']
    #allocation6 [shape = 'u8[393216]{0}', space=vmem, size = 0x60000, scoped, tag = 'input window, operand 5, single buffered']
    #allocation7 [shape = 's32[1]{0}', space=sflag, size = 0x4, scoped, tag = 'scoped memory for tpu_custom_call.1']
    #allocation8 [shape = 'u8[65536]{0}', space=vmem, size = 0x10000, scoped, tag = 'output window, operand 0, single buffered']
    %18 = vsyncpa [#allocation4], 0
    %19 = vsyncpa [#allocation7], 0
    %20 = vsyncpa [#allocation5], 0
    // Predicated region
    $region2: #{tpu_custom_call.1} parent=1 // pred_check
      _
    $region3: #{tpu_custom_call.1} parent=1 // pred_check_branch
      %22 = sbr.rel (0) target = $region5
    $region4: #{tpu_custom_call.1} parent=1 // pred_region
      _
    $region5: #{tpu_custom_call.1} parent=1 // pred_fallthru
      _
    // Predicated region
    $region6: #{tpu_custom_call.1} parent=1 // pred_check
      _
    $region7: #{tpu_custom_call.1} parent=1 // pred_check_branch
      %24 = sbr.rel (0) target = $region9
    $region8: #{tpu_custom_call.1} parent=1 // pred_region
      _
    $region9: #{tpu_custom_call.1} parent=1 // pred_fallthru
      _
    // Predicated region
    $region10: #{tpu_custom_call.1} parent=1 // pred_check
      _
    $region11: #{tpu_custom_call.1} parent=1 // pred_check_branch
      %26 = sbr.rel (0) target = $region13
    $region12: #{tpu_custom_call.1} parent=1 // pred_region
      _
    $region13: #{tpu_custom_call.1} parent=1 // pred_fallthru
      _
    // Predicated region
    $region14: #{tpu_custom_call.1} parent=1 // pred_check
      _
    $region15: #{tpu_custom_call.1} parent=1 // pred_check_branch
      %28 = sbr.rel (0) target = $region17
    $region16: #{tpu_custom_call.1} parent=1 // pred_region
      _
    $region17: #{tpu_custom_call.1} parent=1 // pred_fallthru
      _
    // Predicated region
    $region18: #{tpu_custom_call.1} parent=1 // pred_check
      _
    $region19: #{tpu_custom_call.1} parent=1 // pred_check_branch
      %30 = sbr.rel (0) target = $region21
    $region20: #{tpu_custom_call.1} parent=1 // pred_region
      %32 = vsyncadd [#allocation4], 0
      %s33 = sshll.u32 %s4, 4
      %s34 = int_to_ptr.hbm [resolvable:$true] %s33
      %s35 = sshll.u32 [#allocation3], 4
      %s36 = int_to_ptr.vmem [resolvable:$true] %s35
      %41 = dma.hbm_to_vmem [thread:$0]  %s34, 12288, %s36, [#allocation4], 128, 128, 8
    $region21: #{tpu_custom_call.1} parent=1 // pred_fallthru
      _
    // Predicated region
    $region22: #{tpu_custom_call.1} parent=1 // pred_check
      _
    $region23: #{tpu_custom_call.1} parent=1 // pred_check_branch
      %43 = sbr.rel (0) target = $region25
    $region24: #{tpu_custom_call.1} parent=1 // pred_region
      %45 = vsyncadd [#allocation7], 0
      %s46 = sshll.u32 %s5, 4
      %s47 = int_to_ptr.hbm [resolvable:$true] %s46
      %s48 = sshll.u32 [#allocation6], 4
      %s49 = int_to_ptr.vmem [resolvable:$true] %s48
      %54 = dma.hbm_to_vmem [thread:$0]  %s47, 12288, %s49, [#allocation7], 128, 128, 8
    $region25: #{tpu_custom_call.1} parent=1 // pred_fallthru
      _
    // Predicated region
    $region26: #{tpu_custom_call.1} parent=1 // pred_check
      _
    $region27: #{tpu_custom_call.1} parent=1 // pred_check_branch
      %56 = sbr.rel (0) target = $region29
    $region28: #{tpu_custom_call.1} parent=1 // pred_region
      _
    $region29: #{tpu_custom_call.1} parent=1 // pred_fallthru
      _
    // Predicated region
    $region30: #{tpu_custom_call.1} parent=1 // pred_check
      _
    $region31: #{tpu_custom_call.1} parent=1 // pred_check_branch
      %58 = sbr.rel (0) target = $region33
    $region32: #{tpu_custom_call.1} parent=1 // pred_region
      _
    $region33: #{tpu_custom_call.1} parent=1 // pred_fallthru
      _
    // Predicated region
    $region34: #{tpu_custom_call.1} parent=1 // pred_check
      _
    $region35: #{tpu_custom_call.1} parent=1 // pred_check_branch
      %60 = sbr.rel (0) target = $region37
    $region36: #{tpu_custom_call.1} parent=1 // pred_region
      _
    $region37: #{tpu_custom_call.1} parent=1 // pred_fallthru
      _
    // Predicated region
    $region38: #{tpu_custom_call.1} parent=1 // pred_check
      _
    $region39: #{tpu_custom_call.1} parent=1 // pred_check_branch
      %62 = sbr.rel (0) target = $region41
    $region40: #{tpu_custom_call.1} parent=1 // pred_region
      _
    $region41: #{tpu_custom_call.1} parent=1 // pred_fallthru
      _
    // Predicated region
    $region42: #{tpu_custom_call.1} parent=1 // pred_check
      _
    $region43: #{tpu_custom_call.1} parent=1 // pred_check_branch
      %64 = sbr.rel (0) target = $region45
    $region44: #{tpu_custom_call.1} parent=1 // pred_region
      _
    $region45: #{tpu_custom_call.1} parent=1 // pred_fallthru
      _
    // Predicated region
    $region46: #{tpu_custom_call.1} parent=1 // pred_check
      _
    $region47: #{tpu_custom_call.1} parent=1 // pred_check_branch
      %66 = sbr.rel (0) target = $region49
    $region48: #{tpu_custom_call.1} parent=1 // pred_region
      _
    $region49: #{tpu_custom_call.1} parent=1 // pred_fallthru
      _
    // Predicated region
    $region50: #{tpu_custom_call.1} parent=1 // pred_check
      _
    $region51: #{tpu_custom_call.1} parent=1 // pred_check_branch
      %68 = sbr.rel (0) target = $region53
    $region52: #{tpu_custom_call.1} parent=1 // pred_region
      _
    $region53: #{tpu_custom_call.1} parent=1 // pred_fallthru
      _
    // Predicated region
    $region54: #{tpu_custom_call.1} parent=1 // pred_check
      _
    $region55: #{tpu_custom_call.1} parent=1 // pred_check_branch
      %70 = sbr.rel (0) target = $region57
    $region56: #{tpu_custom_call.1} parent=1 // pred_region
      %72 = dma.done [#allocation4], 12288
    $region57: #{tpu_custom_call.1} parent=1 // pred_fallthru
      _
    // Predicated region
    $region58: #{tpu_custom_call.1} parent=1 // pred_check
      _
    $region59: #{tpu_custom_call.1} parent=1 // pred_check_branch
      %74 = sbr.rel (0) target = $region61
    $region60: #{tpu_custom_call.1} parent=1 // pred_region
      %76 = dma.done [#allocation7], 12288
    $region61: #{tpu_custom_call.1} parent=1 // pred_fallthru
      _
    %v78 = vld [vmem:[%s8] sm:$0xff]
    %v79 = vld [vmem:[%s8 + $0x8] sm:$0xff]
    %v80 = vld [vmem:[%s8 + $0x10] sm:$0xff]
    %v81 = vld [vmem:[%s8 + $0x18] sm:$0xff]
    %v82 = vld [vmem:[%s8 + $0x20] sm:$0xff]
    %v83 = vld [vmem:[%s8 + $0x28] sm:$0xff]
    %v84 = vld [vmem:[%s8 + $0x30] sm:$0xff]
    %v85 = vld [vmem:[%s8 + $0x38] sm:$0xff]
    %v86 = vld [vmem:[%s8 + $0x40] sm:$0x3]
    %v87 = vld [vmem:[%s2] sm:$0xf]
    %v88 = vld [vmem:[%s2 + $0x4] sm:$0xf]
    %v89 = vld [vmem:[%s2 + $0x8] sm:$0xf]
    %v90 = vld [vmem:[%s2 + $0xc] sm:$0xf]
    %v91 = vld [vmem:[%s2 + $0x10] sm:$0xf]
    %v92 = vld [vmem:[%s2 + $0x14] sm:$0xf]
    %v93 = vld [vmem:[%s2 + $0x18] sm:$0xf]
    %v94 = vld [vmem:[%s2 + $0x1c] sm:$0xf]
    %v95 = vld [vmem:[%s2 + $0x20] sm:$0x3]
    %v96 = vld [vmem:[%s0] sm:$0xf]
    %v97 = vld [vmem:[%s0 + $0x4] sm:$0xf]
    %v98 = vld [vmem:[%s0 + $0x8] sm:$0xf]
    %v99 = vld [vmem:[%s0 + $0xc] sm:$0xf]
    %v109 = vunpack.c.l.b16 %v87
    %v110 = vunpack.c.l.b16 %v88
    %v111 = vunpack.c.l.b16 %v89
    %v112 = vunpack.c.l.b16 %v90
    %v113 = vunpack.c.l.b16 %v91
    %v114 = vunpack.c.l.b16 %v92
    %v115 = vunpack.c.l.b16 %v93
    %v116 = vunpack.c.l.b16 %v94
    %v117 = vunpack.c.l.b16 %v95
    %v118 = vpack.c.b16 %v110, %v109
    %v119 = vpack.c.b16 %v112, %v111
    %v120 = vpack.c.b16 %v114, %v113
    %v121 = vpack.c.b16 %v116, %v115
    %v122 = vpack.c.b16 %v117, %v117
    %v127 = vunpack.c.l.b16 %v96
    %v128 = vunpack.c.l.b16 %v97
    %v129 = vunpack.c.l.b16 %v98
    %v130 = vunpack.c.l.b16 %v99
    %v131 = vpack.c.b16 %v128, %v127
    %v132 = vpack.c.b16 %v130, %v129
    %vm135 = vcmask 261120
    %v137 = vsel %vm135, %v118, 0
    %v140 = vsel %vm135, %v119, 0
    %v143 = vsel %vm135, %v120, 0
    %v146 = vsel %vm135, %v121, 0
    %v149 = vsel %vm135, %v122, 0
    %151 = vmatpush.bf16.msra.mxu0 0
    %152 = vmatpush.bf16.msra.mxu0 0
    %153 = vmatpush.bf16.msra.mxu0 0
    %154 = vmatpush.bf16.msra.mxu0 0
    %155 = vmatpush.bf16.msra.mxu0 0
    %156 = vmatpush.bf16.msra.mxu0 0
    %157 = vmatpush.bf16.msra.mxu0 %v132
    %158 = vmatpush.bf16.msra.mxu0 %v131
    %159 = vmatmul.bf16.gmra.mxu0 %v137
    %v160 = vpop.f32.mrf.mxu0
    %v161 = vadd.f32 0.0, %v160
    %v162 = vpop.f32.mrf.mxu0
    %v163 = vadd.f32 0.0, %v162
    %164 = vmatmul.bf16.gmra.mxu0 %v140
    %v165 = vpop.f32.mrf.mxu0
    %v166 = vadd.f32 0.0, %v165
    %v167 = vpop.f32.mrf.mxu0
    %v168 = vadd.f32 0.0, %v167
    %169 = vmatmul.bf16.gmra.mxu0 %v143
    %v170 = vpop.f32.mrf.mxu0
    %v171 = vadd.f32 0.0, %v170
    %v172 = vpop.f32.mrf.mxu0
    %v173 = vadd.f32 0.0, %v172
    %174 = vmatmul.bf16.gmra.mxu0 %v146
    %v175 = vpop.f32.mrf.mxu0
    %v176 = vadd.f32 0.0, %v175
    %v177 = vpop.f32.mrf.mxu0
    %v178 = vadd.f32 0.0, %v177
    %179 = vmatmul.bf16.gmra.mxu0 %v149
    %v180 = vpop.f32.mrf.mxu0
    %v181 = vadd.f32 0.0, %v180
    %v182 = vpop.f32.mrf.mxu0
    %183 = vdwg.mxu0
    %v184 = vld [vmem:[%s3] sm:$0xff]
    %v185 = vld [vmem:[%s3 + $0x8] sm:$0xff]
    %v186 = vld [vmem:[%s3 + $0x10] sm:$0xff]
    %v187 = vld [vmem:[%s3 + $0x18] sm:$0xff]
    %v188 = vld [vmem:[%s3 + $0x20] sm:$0xff]
    %v189 = vld [vmem:[%s3 + $0x28] sm:$0xff]
    %v190 = vld [vmem:[%s3 + $0x30] sm:$0xff]
    %v191 = vld [vmem:[%s3 + $0x38] sm:$0xff]
    %v192 = vpack.c.bf16 %v163, %v161
    %v193 = vpack.c.bf16 %v168, %v166
    %v194 = vpack.c.bf16 %v173, %v171
    %v195 = vpack.c.bf16 %v178, %v176
    %v196 = vpack.c.bf16 %v181, %v181
    %v205 = vunpack.c.l.b16 %v184
    %v206 = vunpack.c.h.b16 %v184
    %v207 = vunpack.c.l.b16 %v185
    %v208 = vunpack.c.h.b16 %v185
    %v209 = vunpack.c.l.b16 %v186
    %v210 = vunpack.c.h.b16 %v186
    %v211 = vunpack.c.l.b16 %v187
    %v212 = vunpack.c.h.b16 %v187
    %v213 = vunpack.c.l.b16 %v188
    %v214 = vunpack.c.h.b16 %v188
    %v215 = vunpack.c.l.b16 %v189
    %v216 = vunpack.c.h.b16 %v189
    %v217 = vunpack.c.l.b16 %v190
    %v218 = vunpack.c.h.b16 %v190
    %v219 = vunpack.c.l.b16 %v191
    %v220 = vunpack.c.h.b16 %v191
    %v221 = vpack.c.b16 %v207, %v205
    %v222 = vpack.c.b16 %v208, %v206
    %v223 = vpack.c.b16 %v211, %v209
    %v224 = vpack.c.b16 %v212, %v210
    %v225 = vpack.c.b16 %v215, %v213
    %v226 = vpack.c.b16 %v216, %v214
    %v227 = vpack.c.b16 %v219, %v217
    %v228 = vpack.c.b16 %v220, %v218
    %vm237 = vcmask 523264
    %v239 = vsel %vm237, %v192, 0
    %v242 = vsel %vm237, %v193, 0
    %v245 = vsel %vm237, %v194, 0
    %v248 = vsel %vm237, %v195, 0
    %v251 = vsel %vm237, %v196, 0
    %253 = vmatpush.bf16.msra.mxu0 0
    %254 = vmatpush.bf16.msra.mxu0 0
    %255 = vmatpush.bf16.msra.mxu0 0
    %256 = vmatpush.bf16.msra.mxu0 0
    %257 = vmatpush.bf16.msra.mxu0 %v227
    %258 = vmatpush.bf16.msra.mxu0 %v225
    %259 = vmatpush.bf16.msra.mxu0 %v223
    %260 = vmatpush.bf16.msra.mxu0 %v221
    %261 = vmatmul.bf16.gmra.mxu0 %v239
    %v262 = vpop.f32.mrf.mxu0
    %v263 = vadd.f32 0.0, %v262
    %v264 = vpop.f32.mrf.mxu0
    %v265 = vadd.f32 0.0, %v264
    %266 = vmatmul.bf16.gmra.mxu0 %v242
    %v267 = vpop.f32.mrf.mxu0
    %v268 = vadd.f32 0.0, %v267
    %v269 = vpop.f32.mrf.mxu0
    %v270 = vadd.f32 0.0, %v269
    %271 = vmatmul.bf16.gmra.mxu0 %v245
    %v272 = vpop.f32.mrf.mxu0
    %v273 = vadd.f32 0.0, %v272
    %v274 = vpop.f32.mrf.mxu0
    %v275 = vadd.f32 0.0, %v274
    %276 = vmatmul.bf16.gmra.mxu0 %v248
    %v277 = vpop.f32.mrf.mxu0
    %v278 = vadd.f32 0.0, %v277
    %v279 = vpop.f32.mrf.mxu0
    %v280 = vadd.f32 0.0, %v279
    %281 = vmatmul.bf16.gmra.mxu0 %v251
    %v282 = vpop.f32.mrf.mxu0
    %v283 = vadd.f32 0.0, %v282
    %v284 = vpop.f32.mrf.mxu0
    %285 = vdwg.mxu0
    %286 = vmatpush.bf16.msra.mxu0 0
    %287 = vmatpush.bf16.msra.mxu0 0
    %288 = vmatpush.bf16.msra.mxu0 0
    %289 = vmatpush.bf16.msra.mxu0 0
    %290 = vmatpush.bf16.msra.mxu0 %v228
    %291 = vmatpush.bf16.msra.mxu0 %v226
    %292 = vmatpush.bf16.msra.mxu0 %v224
    %293 = vmatpush.bf16.msra.mxu0 %v222
    %294 = vmatmul.bf16.gmra.mxu0 %v239
    %v295 = vpop.f32.mrf.mxu0
    %v296 = vadd.f32 0.0, %v295
    %v297 = vpop.f32.mrf.mxu0
    %v298 = vadd.f32 0.0, %v297
    %299 = vmatmul.bf16.gmra.mxu0 %v242
    %v300 = vpop.f32.mrf.mxu0
    %v301 = vadd.f32 0.0, %v300
    %v302 = vpop.f32.mrf.mxu0
    %v303 = vadd.f32 0.0, %v302
    %304 = vmatmul.bf16.gmra.mxu0 %v245
    %v305 = vpop.f32.mrf.mxu0
    %v306 = vadd.f32 0.0, %v305
    %v307 = vpop.f32.mrf.mxu0
    %v308 = vadd.f32 0.0, %v307
    %309 = vmatmul.bf16.gmra.mxu0 %v248
    %v310 = vpop.f32.mrf.mxu0
    %v311 = vadd.f32 0.0, %v310
    %v312 = vpop.f32.mrf.mxu0
    %v313 = vadd.f32 0.0, %v312
    %314 = vmatmul.bf16.gmra.mxu0 %v251
    %v315 = vpop.f32.mrf.mxu0
    %v316 = vadd.f32 0.0, %v315
    %v317 = vpop.f32.mrf.mxu0
    %318 = vdwg.mxu0
    %v319 = vld [vmem:[%s1] sm:$0xff]
    %v320 = vld [vmem:[%s1 + $0x8] sm:$0xff]
    %v321 = vld [vmem:[%s1 + $0x10] sm:$0xff]
    %v322 = vld [vmem:[%s1 + $0x18] sm:$0xff]
    %v323 = vld [vmem:[%s1 + $0x20] sm:$0xff]
    %v324 = vld [vmem:[%s1 + $0x28] sm:$0xff]
    %v325 = vld [vmem:[%s1 + $0x30] sm:$0xff]
    %v326 = vld [vmem:[%s1 + $0x38] sm:$0xff]
    %v327 = vld [vmem:[%s1 + $0x40] sm:$0xff]
    %v328 = vld [vmem:[%s1 + $0x48] sm:$0xff]
    %v329 = vld [vmem:[%s1 + $0x50] sm:$0xff]
    %v330 = vld [vmem:[%s1 + $0x58] sm:$0xff]
    %v331 = vld [vmem:[%s1 + $0x60] sm:$0xff]
    %v332 = vld [vmem:[%s1 + $0x68] sm:$0xff]
    %v333 = vld [vmem:[%s1 + $0x70] sm:$0xff]
    %v334 = vld [vmem:[%s1 + $0x78] sm:$0xff]
    %v335 = vld [vmem:[%s1 + $0x80] sm:$0xf]
    %v336 = vld [vmem:[%s1 + $0x88] sm:$0xf]
    %v337 = vadd.f32 %v319, %v263
    %v338 = vadd.f32 %v320, %v296
    %v339 = vadd.f32 %v321, %v265
    %v340 = vadd.f32 %v322, %v298
    %v341 = vadd.f32 %v323, %v268
    %v342 = vadd.f32 %v324, %v301
    %v343 = vadd.f32 %v325, %v270
    %v344 = vadd.f32 %v326, %v303
    %v345 = vadd.f32 %v327, %v273
    %v346 = vadd.f32 %v328, %v306
    %v347 = vadd.f32 %v329, %v275
    %v348 = vadd.f32 %v330, %v308
    %v349 = vadd.f32 %v331, %v278
    %v350 = vadd.f32 %v332, %v311
    %v351 = vadd.f32 %v333, %v280
    %v352 = vadd.f32 %v334, %v313
    %v353 = vadd.f32 %v335, %v283
    %v354 = vadd.f32 %v336, %v316
    %v355 = vld [vmem:[#allocation3] sm:$0xff]
    %v356 = vld [vmem:[#allocation3 + $0x8] sm:$0xff]
    %v357 = vld [vmem:[#allocation3 + $0x10] sm:$0xff]
    %v358 = vld [vmem:[#allocation3 + $0x18] sm:$0xff]
    %v359 = vld [vmem:[#allocation3 + $0x20] sm:$0xff]
    %v360 = vld [vmem:[#allocation3 + $0x28] sm:$0xff]
    %v361 = vld [vmem:[#allocation3 + $0x30] sm:$0xff]
    %v362 = vld [vmem:[#allocation3 + $0x38] sm:$0xff]
    %v363 = vld [vmem:[#allocation3 + $0x40] sm:$0xff]
    %v364 = vld [vmem:[#allocation3 + $0x48] sm:$0xff]
    %v365 = vld [vmem:[#allocation3 + $0x50] sm:$0xff]
    %v366 = vld [vmem:[#allocation3 + $0x58] sm:$0xff]
    %v367 = vld [vmem:[#allocation3 + $0x60] sm:$0xff]
    %v368 = vld [vmem:[#allocation3 + $0x68] sm:$0xff]
    %v369 = vld [vmem:[#allocation3 + $0x70] sm:$0xff]
    %v370 = vld [vmem:[#allocation3 + $0x78] sm:$0xff]
    %v371 = vld [vmem:[#allocation3 + $0x80] sm:$0xff]
    %v372 = vld [vmem:[#allocation3 + $0x88] sm:$0xff]
    %v373 = vld [vmem:[#allocation3 + $0x90] sm:$0xff]
    %v374 = vld [vmem:[#allocation3 + $0x98] sm:$0xff]
    %v375 = vld [vmem:[#allocation3 + $0xa0] sm:$0xff]
    %v376 = vld [vmem:[#allocation3 + $0xa8] sm:$0xff]
    %v377 = vld [vmem:[#allocation3 + $0xb0] sm:$0xff]
    %v378 = vld [vmem:[#allocation3 + $0xb8] sm:$0xff]
    %v379 = vld [vmem:[#allocation3 + $0xc0] sm:$0xff]
    %v380 = vld [vmem:[#allocation3 + $0xc8] sm:$0xff]
    %v381 = vld [vmem:[#allocation3 + $0xd0] sm:$0xff]
    %v382 = vld [vmem:[#allocation3 + $0xd8] sm:$0xff]
    %v383 = vld [vmem:[#allocation3 + $0xe0] sm:$0xff]
    %v384 = vld [vmem:[#allocation3 + $0xe8] sm:$0xff]
    %v385 = vld [vmem:[#allocation3 + $0xf0] sm:$0xff]
    %v386 = vld [vmem:[#allocation3 + $0xf8] sm:$0xff]
    %v387 = vpack.c.bf16 %v339, %v337
    %v388 = vpack.c.bf16 %v340, %v338
    %v389 = vpack.c.bf16 %v343, %v341
    %v390 = vpack.c.bf16 %v344, %v342
    %v391 = vpack.c.bf16 %v347, %v345
    %v392 = vpack.c.bf16 %v348, %v346
    %v393 = vpack.c.bf16 %v351, %v349
    %v394 = vpack.c.bf16 %v352, %v350
    %v395 = vpack.c.bf16 %v353, %v353
    %v396 = vpack.c.bf16 %v354, %v354
    %s397 = scalar_lea.vmem [#allocation3], 256
    %v398 = vld [vmem:[%s397] sm:$0xff]
    %v399 = vld [vmem:[%s397 + $0x8] sm:$0xff]
    %v400 = vld [vmem:[%s397 + $0x10] sm:$0xff]
    %v401 = vld [vmem:[%s397 + $0x18] sm:$0xff]
    %v402 = vld [vmem:[%s397 + $0x20] sm:$0xff]
    %v403 = vld [vmem:[%s397 + $0x28] sm:$0xff]
    %v404 = vld [vmem:[%s397 + $0x30] sm:$0xff]
    %v405 = vld [vmem:[%s397 + $0x38] sm:$0xff]
    %v406 = vld [vmem:[%s397 + $0x40] sm:$0xff]
    %v407 = vld [vmem:[%s397 + $0x48] sm:$0xff]
    %v408 = vld [vmem:[%s397 + $0x50] sm:$0xff]
    %v409 = vld [vmem:[%s397 + $0x58] sm:$0xff]
    %v410 = vld [vmem:[%s397 + $0x60] sm:$0xff]
    %v411 = vld [vmem:[%s397 + $0x68] sm:$0xff]
    %v412 = vld [vmem:[%s397 + $0x70] sm:$0xff]
    %v413 = vld [vmem:[%s397 + $0x78] sm:$0xff]
    %v414 = vld [vmem:[%s397 + $0x80] sm:$0xff]
    %v415 = vld [vmem:[%s397 + $0x88] sm:$0xff]
    %v416 = vld [vmem:[%s397 + $0x90] sm:$0xff]
    %v417 = vld [vmem:[%s397 + $0x98] sm:$0xff]
    %v418 = vld [vmem:[%s397 + $0xa0] sm:$0xff]
    %v419 = vld [vmem:[%s397 + $0xa8] sm:$0xff]
    %v420 = vld [vmem:[%s397 + $0xb0] sm:$0xff]
    %v421 = vld [vmem:[%s397 + $0xb8] sm:$0xff]
    %v422 = vld [vmem:[%s397 + $0xc0] sm:$0xff]
    %v423 = vld [vmem:[%s397 + $0xc8] sm:$0xff]
    %v424 = vld [vmem:[%s397 + $0xd0] sm:$0xff]
    %v425 = vld [vmem:[%s397 + $0xd8] sm:$0xff]
    %v426 = vld [vmem:[%s397 + $0xe0] sm:$0xff]
    %v427 = vld [vmem:[%s397 + $0xe8] sm:$0xff]
    %v428 = vld [vmem:[%s397 + $0xf0] sm:$0xff]
    %v429 = vld [vmem:[%s397 + $0xf8] sm:$0xff]
    %vm430 = vsmask.f32 7424
    %v432 = vshrl.u32 %v387, 16
    %v434 = vshll.u32 %v387, 16
    %v436 = vrot.slane %v434, 1
    %v437 = vor.u32 %v432, %v436
    %v439 = vshll.u32 %v389, 16
    %v441 = vrot.slane %v439, 1
    %v442 = vsel %vm430, %v437, %v441
    %v444 = vshrl.u32 %v388, 16
    %v446 = vshll.u32 %v388, 16
    %v448 = vrot.slane %v446, 1
    %v449 = vor.u32 %v444, %v448
    %v451 = vshll.u32 %v390, 16
    %v453 = vrot.slane %v451, 1
    %v454 = vsel %vm430, %v449, %v453
    %v455 = vshrl.u32 %v389, 16
    %v457 = vor.u32 %v455, %v441
    %v459 = vshll.u32 %v391, 16
    %v461 = vrot.slane %v459, 1
    %v462 = vsel %vm430, %v457, %v461
    %v463 = vshrl.u32 %v390, 16
    %v465 = vor.u32 %v463, %v453
    %v467 = vshll.u32 %v392, 16
    %v469 = vrot.slane %v467, 1
    %v470 = vsel %vm430, %v465, %v469
    %v471 = vshrl.u32 %v391, 16
    %v473 = vor.u32 %v471, %v461
    %v475 = vshll.u32 %v393, 16
    %v477 = vrot.slane %v475, 1
    %v478 = vsel %vm430, %v473, %v477
    %v479 = vshrl.u32 %v392, 16
    %v481 = vor.u32 %v479, %v469
    %v483 = vshll.u32 %v394, 16
    %v485 = vrot.slane %v483, 1
    %v486 = vsel %vm430, %v481, %v485
    %v487 = vshrl.u32 %v393, 16
    %v489 = vor.u32 %v487, %v477
    %v491 = vshll.u32 %v395, 16
    %v493 = vrot.slane %v491, 1
    %v494 = vsel %vm430, %v489, %v493
    %v495 = vshrl.u32 %v394, 16
    %v497 = vor.u32 %v495, %v485
    %v499 = vshll.u32 %v396, 16
    %v501 = vrot.slane %v499, 1
    %v502 = vsel %vm430, %v497, %v501
    %v503 = vshrl.u32 %v395, 16
    %v505 = vor.u32 %v503, %v493
    %v506 = vshrl.u32 %v396, 16
    %v508 = vor.u32 %v506, %v501
    %v551 = vunpack.c.l.b16 %v398
    %v552 = vunpack.c.h.b16 %v398
    %v553 = vunpack.c.l.b16 %v399
    %v554 = vunpack.c.h.b16 %v399
    %v555 = vunpack.c.l.b16 %v400
    %v556 = vunpack.c.h.b16 %v400
    %v557 = vunpack.c.l.b16 %v401
    %v558 = vunpack.c.h.b16 %v401
    %v559 = vunpack.c.l.b16 %v402
    %v560 = vunpack.c.h.b16 %v402
    %v561 = vunpack.c.l.b16 %v403
    %v562 = vunpack.c.h.b16 %v403
    %v563 = vunpack.c.l.b16 %v404
    %v564 = vunpack.c.h.b16 %v404
    %v565 = vunpack.c.l.b16 %v405
    %v566 = vunpack.c.h.b16 %v405
    %v567 = vunpack.c.l.b16 %v406
    %v568 = vunpack.c.h.b16 %v406
    %v569 = vunpack.c.l.b16 %v407
    %v570 = vunpack.c.h.b16 %v407
    %v571 = vunpack.c.l.b16 %v408
    %v572 = vunpack.c.h.b16 %v408
    %v573 = vunpack.c.l.b16 %v409
    %v574 = vunpack.c.h.b16 %v409
    %v575 = vunpack.c.l.b16 %v410
    %v576 = vunpack.c.h.b16 %v410
    %v577 = vunpack.c.l.b16 %v411
    %v578 = vunpack.c.h.b16 %v411
    %v579 = vunpack.c.l.b16 %v412
    %v580 = vunpack.c.h.b16 %v412
    %v581 = vunpack.c.l.b16 %v413
    %v582 = vunpack.c.h.b16 %v413
    %v583 = vunpack.c.l.b16 %v414
    %v584 = vunpack.c.h.b16 %v414
    %v585 = vunpack.c.l.b16 %v415
    %v586 = vunpack.c.h.b16 %v415
    %v587 = vunpack.c.l.b16 %v416
    %v588 = vunpack.c.h.b16 %v416
    %v589 = vunpack.c.l.b16 %v417
    %v590 = vunpack.c.h.b16 %v417
    %v591 = vunpack.c.l.b16 %v418
    %v592 = vunpack.c.h.b16 %v418
    %v593 = vunpack.c.l.b16 %v419
    %v594 = vunpack.c.h.b16 %v419
    %v595 = vunpack.c.l.b16 %v420
    %v596 = vunpack.c.h.b16 %v420
    %v597 = vunpack.c.l.b16 %v421
    %v598 = vunpack.c.h.b16 %v421
    %v599 = vunpack.c.l.b16 %v422
    %v600 = vunpack.c.h.b16 %v422
    %v601 = vunpack.c.l.b16 %v423
    %v602 = vunpack.c.h.b16 %v423
    %v603 = vunpack.c.l.b16 %v424
    %v604 = vunpack.c.h.b16 %v424
    %v605 = vunpack.c.l.b16 %v425
    %v606 = vunpack.c.h.b16 %v425
    %v607 = vunpack.c.l.b16 %v426
    %v608 = vunpack.c.h.b16 %v426
    %v609 = vunpack.c.l.b16 %v427
    %v610 = vunpack.c.h.b16 %v427
    %v611 = vunpack.c.l.b16 %v428
    %v612 = vunpack.c.h.b16 %v428
    %v613 = vunpack.c.l.b16 %v429
    %v614 = vunpack.c.h.b16 %v429
    %v615 = vpack.c.b16 %v553, %v551
    %v616 = vpack.c.b16 %v554, %v552
    %v617 = vpack.c.b16 %v557, %v555
    %v618 = vpack.c.b16 %v558, %v556
    %v619 = vpack.c.b16 %v561, %v559
    %v620 = vpack.c.b16 %v562, %v560
    %v621 = vpack.c.b16 %v565, %v563
    %v622 = vpack.c.b16 %v566, %v564
    %v623 = vpack.c.b16 %v569, %v567
    %v624 = vpack.c.b16 %v570, %v568
    %v625 = vpack.c.b16 %v573, %v571
    %v626 = vpack.c.b16 %v574, %v572
    %v627 = vpack.c.b16 %v577, %v575
    %v628 = vpack.c.b16 %v578, %v576
    %v629 = vpack.c.b16 %v581, %v579
    %v630 = vpack.c.b16 %v582, %v580
    %v631 = vpack.c.b16 %v585, %v583
    %v632 = vpack.c.b16 %v586, %v584
    %v633 = vpack.c.b16 %v589, %v587
    %v634 = vpack.c.b16 %v590, %v588
    %v635 = vpack.c.b16 %v593, %v591
    %v636 = vpack.c.b16 %v594, %v592
    %v637 = vpack.c.b16 %v597, %v595
    %v638 = vpack.c.b16 %v598, %v596
    %v639 = vpack.c.b16 %v601, %v599
    %v640 = vpack.c.b16 %v602, %v600
    %v641 = vpack.c.b16 %v605, %v603
    %v642 = vpack.c.b16 %v606, %v604
    %v643 = vpack.c.b16 %v609, %v607
    %v644 = vpack.c.b16 %v610, %v608
    %v645 = vpack.c.b16 %v613, %v611
    %v646 = vpack.c.b16 %v614, %v612
    %679 = vmatpush.bf16.msra.mxu0 %v629
    %680 = vmatpush.bf16.msra.mxu0 %v627
    %681 = vmatpush.bf16.msra.mxu0 %v625
    %682 = vmatpush.bf16.msra.mxu0 %v623
    %683 = vmatpush.bf16.msra.mxu0 %v621
    %684 = vmatpush.bf16.msra.mxu0 %v619
    %685 = vmatpush.bf16.msra.mxu0 %v617
    %686 = vmatpush.bf16.msra.mxu0 %v615
    %687 = vmatmul.bf16.gmra.mxu0 %v442
    %v688 = vpop.f32.mrf.mxu0
    %v689 = vadd.f32 0.0, %v688
    %v690 = vpop.f32.mrf.mxu0
    %v691 = vadd.f32 0.0, %v690
    %692 = vmatmul.bf16.gmra.mxu0 %v462
    %v693 = vpop.f32.mrf.mxu0
    %v694 = vadd.f32 0.0, %v693
    %v695 = vpop.f32.mrf.mxu0
    %v696 = vadd.f32 0.0, %v695
    %697 = vmatmul.bf16.gmra.mxu0 %v478
    %v698 = vpop.f32.mrf.mxu0
    %v699 = vadd.f32 0.0, %v698
    %v700 = vpop.f32.mrf.mxu0
    %v701 = vadd.f32 0.0, %v700
    %702 = vmatmul.bf16.gmra.mxu0 %v494
    %v703 = vpop.f32.mrf.mxu0
    %v704 = vadd.f32 0.0, %v703
    %v705 = vpop.f32.mrf.mxu0
    %v706 = vadd.f32 0.0, %v705
    %707 = vmatmul.bf16.gmra.mxu0 %v505
    %v708 = vpop.f32.mrf.mxu0
    %v709 = vadd.f32 0.0, %v708
    %v710 = vpop.f32.mrf.mxu0
    %711 = vdwg.mxu0
    %712 = vmatpush.bf16.msra.mxu0 %v645
    %713 = vmatpush.bf16.msra.mxu0 %v643
    %714 = vmatpush.bf16.msra.mxu0 %v641
    %715 = vmatpush.bf16.msra.mxu0 %v639
    %716 = vmatpush.bf16.msra.mxu0 %v637
    %717 = vmatpush.bf16.msra.mxu0 %v635
    %718 = vmatpush.bf16.msra.mxu0 %v633
    %719 = vmatpush.bf16.msra.mxu0 %v631
    %720 = vmatmul.bf16.gmra.mxu0 %v454
    %v721 = vpop.f32.mrf.mxu0
    %v722 = vadd.f32 %v689, %v721
    %v723 = vpop.f32.mrf.mxu0
    %v724 = vadd.f32 %v691, %v723
    %725 = vmatmul.bf16.gmra.mxu0 %v470
    %v726 = vpop.f32.mrf.mxu0
    %v727 = vadd.f32 %v694, %v726
    %v728 = vpop.f32.mrf.mxu0
    %v729 = vadd.f32 %v696, %v728
    %730 = vmatmul.bf16.gmra.mxu0 %v486
    %v731 = vpop.f32.mrf.mxu0
    %v732 = vadd.f32 %v699, %v731
    %v733 = vpop.f32.mrf.mxu0
    %v734 = vadd.f32 %v701, %v733
    %735 = vmatmul.bf16.gmra.mxu0 %v502
    %v736 = vpop.f32.mrf.mxu0
    %v737 = vadd.f32 %v704, %v736
    %v738 = vpop.f32.mrf.mxu0
    %v739 = vadd.f32 %v706, %v738
    %740 = vmatmul.bf16.gmra.mxu0 %v508
    %v741 = vpop.f32.mrf.mxu0
    %v742 = vadd.f32 %v709, %v741
    %v743 = vpop.f32.mrf.mxu0
    %744 = vdwg.mxu0
    %745 = vmatpush.bf16.msra.mxu0 %v630
    %746 = vmatpush.bf16.msra.mxu0 %v628
    %747 = vmatpush.bf16.msra.mxu0 %v626
    %748 = vmatpush.bf16.msra.mxu0 %v624
    %749 = vmatpush.bf16.msra.mxu0 %v622
    %750 = vmatpush.bf16.msra.mxu0 %v620
    %751 = vmatpush.bf16.msra.mxu0 %v618
    %752 = vmatpush.bf16.msra.mxu0 %v616
    %753 = vmatmul.bf16.gmra.mxu0 %v442
    %v754 = vpop.f32.mrf.mxu0
    %v755 = vadd.f32 0.0, %v754
    %v756 = vpop.f32.mrf.mxu0
    %v757 = vadd.f32 0.0, %v756
    %758 = vmatmul.bf16.gmra.mxu0 %v462
    %v759 = vpop.f32.mrf.mxu0
    %v760 = vadd.f32 0.0, %v759
    %v761 = vpop.f32.mrf.mxu0
    %v762 = vadd.f32 0.0, %v761
    %763 = vmatmul.bf16.gmra.mxu0 %v478
    %v764 = vpop.f32.mrf.mxu0
    %v765 = vadd.f32 0.0, %v764
    %v766 = vpop.f32.mrf.mxu0
    %v767 = vadd.f32 0.0, %v766
    %768 = vmatmul.bf16.gmra.mxu0 %v494
    %v769 = vpop.f32.mrf.mxu0
    %v770 = vadd.f32 0.0, %v769
    %v771 = vpop.f32.mrf.mxu0
    %v772 = vadd.f32 0.0, %v771
    %773 = vmatmul.bf16.gmra.mxu0 %v505
    %v774 = vpop.f32.mrf.mxu0
    %v775 = vadd.f32 0.0, %v774
    %v776 = vpop.f32.mrf.mxu0
    %777 = vdwg.mxu0
    %778 = vmatpush.bf16.msra.mxu0 %v646
    %779 = vmatpush.bf16.msra.mxu0 %v644
    %780 = vmatpush.bf16.msra.mxu0 %v642
    %781 = vmatpush.bf16.msra.mxu0 %v640
    %782 = vmatpush.bf16.msra.mxu0 %v638
    %783 = vmatpush.bf16.msra.mxu0 %v636
    %784 = vmatpush.bf16.msra.mxu0 %v634
    %785 = vmatpush.bf16.msra.mxu0 %v632
    %786 = vmatmul.bf16.gmra.mxu0 %v454
    %v787 = vpop.f32.mrf.mxu0
    %v788 = vadd.f32 %v755, %v787
    %v789 = vpop.f32.mrf.mxu0
    %v790 = vadd.f32 %v757, %v789
    %791 = vmatmul.bf16.gmra.mxu0 %v470
    %v792 = vpop.f32.mrf.mxu0
    %v793 = vadd.f32 %v760, %v792
    %v794 = vpop.f32.mrf.mxu0
    %v795 = vadd.f32 %v762, %v794
    %796 = vmatmul.bf16.gmra.mxu0 %v486
    %v797 = vpop.f32.mrf.mxu0
    %v798 = vadd.f32 %v765, %v797
    %v799 = vpop.f32.mrf.mxu0
    %v800 = vadd.f32 %v767, %v799
    %801 = vmatmul.bf16.gmra.mxu0 %v502
    %v802 = vpop.f32.mrf.mxu0
    %v803 = vadd.f32 %v770, %v802
    %v804 = vpop.f32.mrf.mxu0
    %v805 = vadd.f32 %v772, %v804
    %806 = vmatmul.bf16.gmra.mxu0 %v508
    %v807 = vpop.f32.mrf.mxu0
    %v808 = vadd.f32 %v775, %v807
    %v809 = vpop.f32.mrf.mxu0
    %810 = vdwg.mxu0
    %v843 = vunpack.c.l.b16 %v355
    %v844 = vunpack.c.h.b16 %v355
    %v845 = vunpack.c.l.b16 %v356
    %v846 = vunpack.c.h.b16 %v356
    %v847 = vunpack.c.l.b16 %v357
    %v848 = vunpack.c.h.b16 %v357
    %v849 = vunpack.c.l.b16 %v358
    %v850 = vunpack.c.h.b16 %v358
    %v851 = vunpack.c.l.b16 %v359
    %v852 = vunpack.c.h.b16 %v359
    %v853 = vunpack.c.l.b16 %v360
    %v854 = vunpack.c.h.b16 %v360
    %v855 = vunpack.c.l.b16 %v361
    %v856 = vunpack.c.h.b16 %v361
    %v857 = vunpack.c.l.b16 %v362
    %v858 = vunpack.c.h.b16 %v362
    %v859 = vunpack.c.l.b16 %v363
    %v860 = vunpack.c.h.b16 %v363
    %v861 = vunpack.c.l.b16 %v364
    %v862 = vunpack.c.h.b16 %v364
    %v863 = vunpack.c.l.b16 %v365
    %v864 = vunpack.c.h.b16 %v365
    %v865 = vunpack.c.l.b16 %v366
    %v866 = vunpack.c.h.b16 %v366
    %v867 = vunpack.c.l.b16 %v367
    %v868 = vunpack.c.h.b16 %v367
    %v869 = vunpack.c.l.b16 %v368
    %v870 = vunpack.c.h.b16 %v368
    %v871 = vunpack.c.l.b16 %v369
    %v872 = vunpack.c.h.b16 %v369
    %v873 = vunpack.c.l.b16 %v370
    %v874 = vunpack.c.h.b16 %v370
    %v875 = vunpack.c.l.b16 %v371
    %v876 = vunpack.c.h.b16 %v371
    %v877 = vunpack.c.l.b16 %v372
    %v878 = vunpack.c.h.b16 %v372
    %v879 = vunpack.c.l.b16 %v373
    %v880 = vunpack.c.h.b16 %v373
    %v881 = vunpack.c.l.b16 %v374
    %v882 = vunpack.c.h.b16 %v374
    %v883 = vunpack.c.l.b16 %v375
    %v884 = vunpack.c.h.b16 %v375
    %v885 = vunpack.c.l.b16 %v376
    %v886 = vunpack.c.h.b16 %v376
    %v887 = vunpack.c.l.b16 %v377
    %v888 = vunpack.c.h.b16 %v377
    %v889 = vunpack.c.l.b16 %v378
    %v890 = vunpack.c.h.b16 %v378
    %v891 = vunpack.c.l.b16 %v379
    %v892 = vunpack.c.h.b16 %v379
    %v893 = vunpack.c.l.b16 %v380
    %v894 = vunpack.c.h.b16 %v380
    %v895 = vunpack.c.l.b16 %v381
    %v896 = vunpack.c.h.b16 %v381
    %v897 = vunpack.c.l.b16 %v382
    %v898 = vunpack.c.h.b16 %v382
    %v899 = vunpack.c.l.b16 %v383
    %v900 = vunpack.c.h.b16 %v383
    %v901 = vunpack.c.l.b16 %v384
    %v902 = vunpack.c.h.b16 %v384
    %v903 = vunpack.c.l.b16 %v385
    %v904 = vunpack.c.h.b16 %v385
    %v905 = vunpack.c.l.b16 %v386
    %v906 = vunpack.c.h.b16 %v386
    %v907 = vpack.c.b16 %v845, %v843
    %v908 = vpack.c.b16 %v846, %v844
    %v909 = vpack.c.b16 %v849, %v847
    %v910 = vpack.c.b16 %v850, %v848
    %v911 = vpack.c.b16 %v853, %v851
    %v912 = vpack.c.b16 %v854, %v852
    %v913 = vpack.c.b16 %v857, %v855
    %v914 = vpack.c.b16 %v858, %v856
    %v915 = vpack.c.b16 %v861, %v859
    %v916 = vpack.c.b16 %v862, %v860
    %v917 = vpack.c.b16 %v865, %v863
    %v918 = vpack.c.b16 %v866, %v864
    %v919 = vpack.c.b16 %v869, %v867
    %v920 = vpack.c.b16 %v870, %v868
    %v921 = vpack.c.b16 %v873, %v871
    %v922 = vpack.c.b16 %v874, %v872
    %v923 = vpack.c.b16 %v877, %v875
    %v924 = vpack.c.b16 %v878, %v876
    %v925 = vpack.c.b16 %v881, %v879
    %v926 = vpack.c.b16 %v882, %v880
    %v927 = vpack.c.b16 %v885, %v883
    %v928 = vpack.c.b16 %v886, %v884
    %v929 = vpack.c.b16 %v889, %v887
    %v930 = vpack.c.b16 %v890, %v888
    %v931 = vpack.c.b16 %v893, %v891
    %v932 = vpack.c.b16 %v894, %v892
    %v933 = vpack.c.b16 %v897, %v895
    %v934 = vpack.c.b16 %v898, %v896
    %v935 = vpack.c.b16 %v901, %v899
    %v936 = vpack.c.b16 %v902, %v900
    %v937 = vpack.c.b16 %v905, %v903
    %v938 = vpack.c.b16 %v906, %v904
    %971 = vmatpush.bf16.msra.mxu0 %v921
    %972 = vmatpush.bf16.msra.mxu0 %v919
    %973 = vmatpush.bf16.msra.mxu0 %v917
    %974 = vmatpush.bf16.msra.mxu0 %v915
    %975 = vmatpush.bf16.msra.mxu0 %v913
    %976 = vmatpush.bf16.msra.mxu0 %v911
    %977 = vmatpush.bf16.msra.mxu0 %v909
    %978 = vmatpush.bf16.msra.mxu0 %v907
    %979 = vmatmul.bf16.gmra.mxu0 %v387
    %v980 = vpop.f32.mrf.mxu0
    %v981 = vadd.f32 %v722, %v980
    %v982 = vpop.f32.mrf.mxu0
    %v983 = vadd.f32 %v724, %v982
    %984 = vmatmul.bf16.gmra.mxu0 %v389
    %v985 = vpop.f32.mrf.mxu0
    %v986 = vadd.f32 %v727, %v985
    %v987 = vpop.f32.mrf.mxu0
    %v988 = vadd.f32 %v729, %v987
    %989 = vmatmul.bf16.gmra.mxu0 %v391
    %v990 = vpop.f32.mrf.mxu0
    %v991 = vadd.f32 %v732, %v990
    %v992 = vpop.f32.mrf.mxu0
    %v993 = vadd.f32 %v734, %v992
    %994 = vmatmul.bf16.gmra.mxu0 %v393
    %v995 = vpop.f32.mrf.mxu0
    %v996 = vadd.f32 %v737, %v995
    %v997 = vpop.f32.mrf.mxu0
    %v998 = vadd.f32 %v739, %v997
    %999 = vmatmul.bf16.gmra.mxu0 %v395
    %v1000 = vpop.f32.mrf.mxu0
    %v1001 = vadd.f32 %v742, %v1000
    %v1002 = vpop.f32.mrf.mxu0
    %1003 = vdwg.mxu0
    %1004 = vmatpush.bf16.msra.mxu0 %v937
    %1005 = vmatpush.bf16.msra.mxu0 %v935
    %1006 = vmatpush.bf16.msra.mxu0 %v933
    %1007 = vmatpush.bf16.msra.mxu0 %v931
    %1008 = vmatpush.bf16.msra.mxu0 %v929
    %1009 = vmatpush.bf16.msra.mxu0 %v927
    %1010 = vmatpush.bf16.msra.mxu0 %v925
    %1011 = vmatpush.bf16.msra.mxu0 %v923
    %1012 = vmatmul.bf16.gmra.mxu0 %v388
    %v1013 = vpop.f32.mrf.mxu0
    %v1014 = vadd.f32 %v981, %v1013
    %v1015 = vpop.f32.mrf.mxu0
    %v1016 = vadd.f32 %v983, %v1015
    %1017 = vmatmul.bf16.gmra.mxu0 %v390
    %v1018 = vpop.f32.mrf.mxu0
    %v1019 = vadd.f32 %v986, %v1018
    %v1020 = vpop.f32.mrf.mxu0
    %v1021 = vadd.f32 %v988, %v1020
    %1022 = vmatmul.bf16.gmra.mxu0 %v392
    %v1023 = vpop.f32.mrf.mxu0
    %v1024 = vadd.f32 %v991, %v1023
    %v1025 = vpop.f32.mrf.mxu0
    %v1026 = vadd.f32 %v993, %v1025
    %1027 = vmatmul.bf16.gmra.mxu0 %v394
    %v1028 = vpop.f32.mrf.mxu0
    %v1029 = vadd.f32 %v996, %v1028
    %v1030 = vpop.f32.mrf.mxu0
    %v1031 = vadd.f32 %v998, %v1030
    %1032 = vmatmul.bf16.gmra.mxu0 %v396
    %v1033 = vpop.f32.mrf.mxu0
    %v1034 = vadd.f32 %v1001, %v1033
    %v1035 = vpop.f32.mrf.mxu0
    %1036 = vdwg.mxu0
    %1037 = vmatpush.bf16.msra.mxu0 %v922
    %1038 = vmatpush.bf16.msra.mxu0 %v920
    %1039 = vmatpush.bf16.msra.mxu0 %v918
    %1040 = vmatpush.bf16.msra.mxu0 %v916
    %1041 = vmatpush.bf16.msra.mxu0 %v914
    %1042 = vmatpush.bf16.msra.mxu0 %v912
    %1043 = vmatpush.bf16.msra.mxu0 %v910
    %1044 = vmatpush.bf16.msra.mxu0 %v908
    %1045 = vmatmul.bf16.gmra.mxu0 %v387
    %v1046 = vpop.f32.mrf.mxu0
    %v1047 = vadd.f32 %v788, %v1046
    %v1048 = vpop.f32.mrf.mxu0
    %v1049 = vadd.f32 %v790, %v1048
    %1050 = vmatmul.bf16.gmra.mxu0 %v389
    %v1051 = vpop.f32.mrf.mxu0
    %v1052 = vadd.f32 %v793, %v1051
    %v1053 = vpop.f32.mrf.mxu0
    %v1054 = vadd.f32 %v795, %v1053
    %1055 = vmatmul.bf16.gmra.mxu0 %v391
    %v1056 = vpop.f32.mrf.mxu0
    %v1057 = vadd.f32 %v798, %v1056
    %v1058 = vpop.f32.mrf.mxu0
    %v1059 = vadd.f32 %v800, %v1058
    %1060 = vmatmul.bf16.gmra.mxu0 %v393
    %v1061 = vpop.f32.mrf.mxu0
    %v1062 = vadd.f32 %v803, %v1061
    %v1063 = vpop.f32.mrf.mxu0
    %v1064 = vadd.f32 %v805, %v1063
    %1065 = vmatmul.bf16.gmra.mxu0 %v395
    %v1066 = vpop.f32.mrf.mxu0
    %v1067 = vadd.f32 %v808, %v1066
    %v1068 = vpop.f32.mrf.mxu0
    %1069 = vdwg.mxu0
    %1070 = vmatpush.bf16.msra.mxu0 %v938
    %1071 = vmatpush.bf16.msra.mxu0 %v936
    %1072 = vmatpush.bf16.msra.mxu0 %v934
    %1073 = vmatpush.bf16.msra.mxu0 %v932
    %1074 = vmatpush.bf16.msra.mxu0 %v930
    %1075 = vmatpush.bf16.msra.mxu0 %v928
    %1076 = vmatpush.bf16.msra.mxu0 %v926
    %1077 = vmatpush.bf16.msra.mxu0 %v924
    %1078 = vmatmul.bf16.gmra.mxu0 %v388
    %v1079 = vpop.f32.mrf.mxu0
    %v1080 = vadd.f32 %v1047, %v1079
    %v1081 = vpop.f32.mrf.mxu0
    %v1082 = vadd.f32 %v1049, %v1081
    %1083 = vmatmul.bf16.gmra.mxu0 %v390
    %v1084 = vpop.f32.mrf.mxu0
    %v1085 = vadd.f32 %v1052, %v1084
    %v1086 = vpop.f32.mrf.mxu0
    %v1087 = vadd.f32 %v1054, %v1086
    %1088 = vmatmul.bf16.gmra.mxu0 %v392
    %v1089 = vpop.f32.mrf.mxu0
    %v1090 = vadd.f32 %v1057, %v1089
    %v1091 = vpop.f32.mrf.mxu0
    %v1092 = vadd.f32 %v1059, %v1091
    %1093 = vmatmul.bf16.gmra.mxu0 %v394
    %v1094 = vpop.f32.mrf.mxu0
    %v1095 = vadd.f32 %v1062, %v1094
    %v1096 = vpop.f32.mrf.mxu0
    %v1097 = vadd.f32 %v1064, %v1096
    %1098 = vmatmul.bf16.gmra.mxu0 %v396
    %v1099 = vpop.f32.mrf.mxu0
    %v1100 = vadd.f32 %v1067, %v1099
    %v1101 = vpop.f32.mrf.mxu0
    %1102 = vdwg.mxu0
    %s1103 = scalar_lea.vmem [#allocation3], 512
    %v1104 = vld [vmem:[%s1103] sm:$0xff]
    %v1105 = vld [vmem:[%s1103 + $0x8] sm:$0xff]
    %v1106 = vld [vmem:[%s1103 + $0x10] sm:$0xff]
    %v1107 = vld [vmem:[%s1103 + $0x18] sm:$0xff]
    %v1108 = vld [vmem:[%s1103 + $0x20] sm:$0xff]
    %v1109 = vld [vmem:[%s1103 + $0x28] sm:$0xff]
    %v1110 = vld [vmem:[%s1103 + $0x30] sm:$0xff]
    %v1111 = vld [vmem:[%s1103 + $0x38] sm:$0xff]
    %v1112 = vld [vmem:[%s1103 + $0x40] sm:$0xff]
    %v1113 = vld [vmem:[%s1103 + $0x48] sm:$0xff]
    %v1114 = vld [vmem:[%s1103 + $0x50] sm:$0xff]
    %v1115 = vld [vmem:[%s1103 + $0x58] sm:$0xff]
    %v1116 = vld [vmem:[%s1103 + $0x60] sm:$0xff]
    %v1117 = vld [vmem:[%s1103 + $0x68] sm:$0xff]
    %v1118 = vld [vmem:[%s1103 + $0x70] sm:$0xff]
    %v1119 = vld [vmem:[%s1103 + $0x78] sm:$0xff]
    %v1120 = vld [vmem:[%s1103 + $0x80] sm:$0xff]
    %v1121 = vld [vmem:[%s1103 + $0x88] sm:$0xff]
    %v1122 = vld [vmem:[%s1103 + $0x90] sm:$0xff]
    %v1123 = vld [vmem:[%s1103 + $0x98] sm:$0xff]
    %v1124 = vld [vmem:[%s1103 + $0xa0] sm:$0xff]
    %v1125 = vld [vmem:[%s1103 + $0xa8] sm:$0xff]
    %v1126 = vld [vmem:[%s1103 + $0xb0] sm:$0xff]
    %v1127 = vld [vmem:[%s1103 + $0xb8] sm:$0xff]
    %v1128 = vld [vmem:[%s1103 + $0xc0] sm:$0xff]
    %v1129 = vld [vmem:[%s1103 + $0xc8] sm:$0xff]
    %v1130 = vld [vmem:[%s1103 + $0xd0] sm:$0xff]
    %v1131 = vld [vmem:[%s1103 + $0xd8] sm:$0xff]
    %v1132 = vld [vmem:[%s1103 + $0xe0] sm:$0xff]
    %v1133 = vld [vmem:[%s1103 + $0xe8] sm:$0xff]
    %v1134 = vld [vmem:[%s1103 + $0xf0] sm:$0xff]
    %v1135 = vld [vmem:[%s1103 + $0xf8] sm:$0xff]
    %vm1146 = vcmask 1046528
    %v1147 = vrot.slane %v387, 1
    %v1148 = vrot.slane %v389, 1
    %v1149 = vsel %vm1146, %v1147, %v1148
    %v1150 = vrot.slane %v388, 1
    %v1151 = vrot.slane %v390, 1
    %v1152 = vsel %vm1146, %v1150, %v1151
    %v1153 = vrot.slane %v391, 1
    %v1154 = vsel %vm1146, %v1148, %v1153
    %v1155 = vrot.slane %v392, 1
    %v1156 = vsel %vm1146, %v1151, %v1155
    %v1157 = vrot.slane %v393, 1
    %v1158 = vsel %vm1146, %v1153, %v1157
    %v1159 = vrot.slane %v394, 1
    %v1160 = vsel %vm1146, %v1155, %v1159
    %v1161 = vrot.slane %v395, 1
    %v1162 = vsel %vm1146, %v1157, %v1161
    %v1163 = vrot.slane %v396, 1
    %v1164 = vsel %vm1146, %v1159, %v1163
    %v1207 = vunpack.c.l.b16 %v1104
    %v1208 = vunpack.c.h.b16 %v1104
    %v1209 = vunpack.c.l.b16 %v1105
    %v1210 = vunpack.c.h.b16 %v1105
    %v1211 = vunpack.c.l.b16 %v1106
    %v1212 = vunpack.c.h.b16 %v1106
    %v1213 = vunpack.c.l.b16 %v1107
    %v1214 = vunpack.c.h.b16 %v1107
    %v1215 = vunpack.c.l.b16 %v1108
    %v1216 = vunpack.c.h.b16 %v1108
    %v1217 = vunpack.c.l.b16 %v1109
    %v1218 = vunpack.c.h.b16 %v1109
    %v1219 = vunpack.c.l.b16 %v1110
    %v1220 = vunpack.c.h.b16 %v1110
    %v1221 = vunpack.c.l.b16 %v1111
    %v1222 = vunpack.c.h.b16 %v1111
    %v1223 = vunpack.c.l.b16 %v1112
    %v1224 = vunpack.c.h.b16 %v1112
    %v1225 = vunpack.c.l.b16 %v1113
    %v1226 = vunpack.c.h.b16 %v1113
    %v1227 = vunpack.c.l.b16 %v1114
    %v1228 = vunpack.c.h.b16 %v1114
    %v1229 = vunpack.c.l.b16 %v1115
    %v1230 = vunpack.c.h.b16 %v1115
    %v1231 = vunpack.c.l.b16 %v1116
    %v1232 = vunpack.c.h.b16 %v1116
    %v1233 = vunpack.c.l.b16 %v1117
    %v1234 = vunpack.c.h.b16 %v1117
    %v1235 = vunpack.c.l.b16 %v1118
    %v1236 = vunpack.c.h.b16 %v1118
    %v1237 = vunpack.c.l.b16 %v1119
    %v1238 = vunpack.c.h.b16 %v1119
    %v1239 = vunpack.c.l.b16 %v1120
    %v1240 = vunpack.c.h.b16 %v1120
    %v1241 = vunpack.c.l.b16 %v1121
    %v1242 = vunpack.c.h.b16 %v1121
    %v1243 = vunpack.c.l.b16 %v1122
    %v1244 = vunpack.c.h.b16 %v1122
    %v1245 = vunpack.c.l.b16 %v1123
    %v1246 = vunpack.c.h.b16 %v1123
    %v1247 = vunpack.c.l.b16 %v1124
    %v1248 = vunpack.c.h.b16 %v1124
    %v1249 = vunpack.c.l.b16 %v1125
    %v1250 = vunpack.c.h.b16 %v1125
    %v1251 = vunpack.c.l.b16 %v1126
    %v1252 = vunpack.c.h.b16 %v1126
    %v1253 = vunpack.c.l.b16 %v1127
    %v1254 = vunpack.c.h.b16 %v1127
    %v1255 = vunpack.c.l.b16 %v1128
    %v1256 = vunpack.c.h.b16 %v1128
    %v1257 = vunpack.c.l.b16 %v1129
    %v1258 = vunpack.c.h.b16 %v1129
    %v1259 = vunpack.c.l.b16 %v1130
    %v1260 = vunpack.c.h.b16 %v1130
    %v1261 = vunpack.c.l.b16 %v1131
    %v1262 = vunpack.c.h.b16 %v1131
    %v1263 = vunpack.c.l.b16 %v1132
    %v1264 = vunpack.c.h.b16 %v1132
    %v1265 = vunpack.c.l.b16 %v1133
    %v1266 = vunpack.c.h.b16 %v1133
    %v1267 = vunpack.c.l.b16 %v1134
    %v1268 = vunpack.c.h.b16 %v1134
    %v1269 = vunpack.c.l.b16 %v1135
    %v1270 = vunpack.c.h.b16 %v1135
    %v1271 = vpack.c.b16 %v1209, %v1207
    %v1272 = vpack.c.b16 %v1210, %v1208
    %v1273 = vpack.c.b16 %v1213, %v1211
    %v1274 = vpack.c.b16 %v1214, %v1212
    %v1275 = vpack.c.b16 %v1217, %v1215
    %v1276 = vpack.c.b16 %v1218, %v1216
    %v1277 = vpack.c.b16 %v1221, %v1219
    %v1278 = vpack.c.b16 %v1222, %v1220
    %v1279 = vpack.c.b16 %v1225, %v1223
    %v1280 = vpack.c.b16 %v1226, %v1224
    %v1281 = vpack.c.b16 %v1229, %v1227
    %v1282 = vpack.c.b16 %v1230, %v1228
    %v1283 = vpack.c.b16 %v1233, %v1231
    %v1284 = vpack.c.b16 %v1234, %v1232
    %v1285 = vpack.c.b16 %v1237, %v1235
    %v1286 = vpack.c.b16 %v1238, %v1236
    %v1287 = vpack.c.b16 %v1241, %v1239
    %v1288 = vpack.c.b16 %v1242, %v1240
    %v1289 = vpack.c.b16 %v1245, %v1243
    %v1290 = vpack.c.b16 %v1246, %v1244
    %v1291 = vpack.c.b16 %v1249, %v1247
    %v1292 = vpack.c.b16 %v1250, %v1248
    %v1293 = vpack.c.b16 %v1253, %v1251
    %v1294 = vpack.c.b16 %v1254, %v1252
    %v1295 = vpack.c.b16 %v1257, %v1255
    %v1296 = vpack.c.b16 %v1258, %v1256
    %v1297 = vpack.c.b16 %v1261, %v1259
    %v1298 = vpack.c.b16 %v1262, %v1260
    %v1299 = vpack.c.b16 %v1265, %v1263
    %v1300 = vpack.c.b16 %v1266, %v1264
    %v1301 = vpack.c.b16 %v1269, %v1267
    %v1302 = vpack.c.b16 %v1270, %v1268
    %1335 = vmatpush.bf16.msra.mxu0 %v1285
    %1336 = vmatpush.bf16.msra.mxu0 %v1283
    %1337 = vmatpush.bf16.msra.mxu0 %v1281
    %1338 = vmatpush.bf16.msra.mxu0 %v1279
    %1339 = vmatpush.bf16.msra.mxu0 %v1277
    %1340 = vmatpush.bf16.msra.mxu0 %v1275
    %1341 = vmatpush.bf16.msra.mxu0 %v1273
    %1342 = vmatpush.bf16.msra.mxu0 %v1271
    %1343 = vmatmul.bf16.gmra.mxu0 %v1149
    %v1344 = vpop.f32.mrf.mxu0
    %v1345 = vadd.f32 0.0, %v1344
    %v1346 = vpop.f32.mrf.mxu0
    %v1347 = vadd.f32 0.0, %v1346
    %1348 = vmatmul.bf16.gmra.mxu0 %v1154
    %v1349 = vpop.f32.mrf.mxu0
    %v1350 = vadd.f32 0.0, %v1349
    %v1351 = vpop.f32.mrf.mxu0
    %v1352 = vadd.f32 0.0, %v1351
    %1353 = vmatmul.bf16.gmra.mxu0 %v1158
    %v1354 = vpop.f32.mrf.mxu0
    %v1355 = vadd.f32 0.0, %v1354
    %v1356 = vpop.f32.mrf.mxu0
    %v1357 = vadd.f32 0.0, %v1356
    %1358 = vmatmul.bf16.gmra.mxu0 %v1162
    %v1359 = vpop.f32.mrf.mxu0
    %v1360 = vadd.f32 0.0, %v1359
    %v1361 = vpop.f32.mrf.mxu0
    %v1362 = vadd.f32 0.0, %v1361
    %1363 = vmatmul.bf16.gmra.mxu0 %v1161
    %v1364 = vpop.f32.mrf.mxu0
    %v1365 = vadd.f32 0.0, %v1364
    %v1366 = vpop.f32.mrf.mxu0
    %1367 = vdwg.mxu0
    %1368 = vmatpush.bf16.msra.mxu0 %v1301
    %1369 = vmatpush.bf16.msra.mxu0 %v1299
    %1370 = vmatpush.bf16.msra.mxu0 %v1297
    %1371 = vmatpush.bf16.msra.mxu0 %v1295
    %1372 = vmatpush.bf16.msra.mxu0 %v1293
    %1373 = vmatpush.bf16.msra.mxu0 %v1291
    %1374 = vmatpush.bf16.msra.mxu0 %v1289
    %1375 = vmatpush.bf16.msra.mxu0 %v1287
    %1376 = vmatmul.bf16.gmra.mxu0 %v1152
    %v1377 = vpop.f32.mrf.mxu0
    %v1378 = vadd.f32 %v1345, %v1377
    %v1379 = vpop.f32.mrf.mxu0
    %v1380 = vadd.f32 %v1347, %v1379
    %1381 = vmatmul.bf16.gmra.mxu0 %v1156
    %v1382 = vpop.f32.mrf.mxu0
    %v1383 = vadd.f32 %v1350, %v1382
    %v1384 = vpop.f32.mrf.mxu0
    %v1385 = vadd.f32 %v1352, %v1384
    %1386 = vmatmul.bf16.gmra.mxu0 %v1160
    %v1387 = vpop.f32.mrf.mxu0
    %v1388 = vadd.f32 %v1355, %v1387
    %v1389 = vpop.f32.mrf.mxu0
    %v1390 = vadd.f32 %v1357, %v1389
    %1391 = vmatmul.bf16.gmra.mxu0 %v1164
    %v1392 = vpop.f32.mrf.mxu0
    %v1393 = vadd.f32 %v1360, %v1392
    %v1394 = vpop.f32.mrf.mxu0
    %v1395 = vadd.f32 %v1362, %v1394
    %1396 = vmatmul.bf16.gmra.mxu0 %v1163
    %v1397 = vpop.f32.mrf.mxu0
    %v1398 = vadd.f32 %v1365, %v1397
    %v1399 = vpop.f32.mrf.mxu0
    %1400 = vdwg.mxu0
    %1401 = vmatpush.bf16.msra.mxu0 %v1286
    %1402 = vmatpush.bf16.msra.mxu0 %v1284
    %1403 = vmatpush.bf16.msra.mxu0 %v1282
    %1404 = vmatpush.bf16.msra.mxu0 %v1280
    %1405 = vmatpush.bf16.msra.mxu0 %v1278
    %1406 = vmatpush.bf16.msra.mxu0 %v1276
    %1407 = vmatpush.bf16.msra.mxu0 %v1274
    %1408 = vmatpush.bf16.msra.mxu0 %v1272
    %1409 = vmatmul.bf16.gmra.mxu0 %v1149
    %v1410 = vpop.f32.mrf.mxu0
    %v1411 = vadd.f32 0.0, %v1410
    %v1412 = vpop.f32.mrf.mxu0
    %v1413 = vadd.f32 0.0, %v1412
    %1414 = vmatmul.bf16.gmra.mxu0 %v1154
    %v1415 = vpop.f32.mrf.mxu0
    %v1416 = vadd.f32 0.0, %v1415
    %v1417 = vpop.f32.mrf.mxu0
    %v1418 = vadd.f32 0.0, %v1417
    %1419 = vmatmul.bf16.gmra.mxu0 %v1158
    %v1420 = vpop.f32.mrf.mxu0
    %v1421 = vadd.f32 0.0, %v1420
    %v1422 = vpop.f32.mrf.mxu0
    %v1423 = vadd.f32 0.0, %v1422
    %1424 = vmatmul.bf16.gmra.mxu0 %v1162
    %v1425 = vpop.f32.mrf.mxu0
    %v1426 = vadd.f32 0.0, %v1425
    %v1427 = vpop.f32.mrf.mxu0
    %v1428 = vadd.f32 0.0, %v1427
    %1429 = vmatmul.bf16.gmra.mxu0 %v1161
    %v1430 = vpop.f32.mrf.mxu0
    %v1431 = vadd.f32 0.0, %v1430
    %v1432 = vpop.f32.mrf.mxu0
    %1433 = vdwg.mxu0
    %1434 = vmatpush.bf16.msra.mxu0 %v1302
    %1435 = vmatpush.bf16.msra.mxu0 %v1300
    %1436 = vmatpush.bf16.msra.mxu0 %v1298
    %1437 = vmatpush.bf16.msra.mxu0 %v1296
    %1438 = vmatpush.bf16.msra.mxu0 %v1294
    %1439 = vmatpush.bf16.msra.mxu0 %v1292
    %1440 = vmatpush.bf16.msra.mxu0 %v1290
    %1441 = vmatpush.bf16.msra.mxu0 %v1288
    %1442 = vmatmul.bf16.gmra.mxu0 %v1152
    %v1443 = vpop.f32.mrf.mxu0
    %v1444 = vadd.f32 %v1411, %v1443
    %v1445 = vpop.f32.mrf.mxu0
    %v1446 = vadd.f32 %v1413, %v1445
    %1447 = vmatmul.bf16.gmra.mxu0 %v1156
    %v1448 = vpop.f32.mrf.mxu0
    %v1449 = vadd.f32 %v1416, %v1448
    %v1450 = vpop.f32.mrf.mxu0
    %v1451 = vadd.f32 %v1418, %v1450
    %1452 = vmatmul.bf16.gmra.mxu0 %v1160
    %v1453 = vpop.f32.mrf.mxu0
    %v1454 = vadd.f32 %v1421, %v1453
    %v1455 = vpop.f32.mrf.mxu0
    %v1456 = vadd.f32 %v1423, %v1455
    %1457 = vmatmul.bf16.gmra.mxu0 %v1164
    %v1458 = vpop.f32.mrf.mxu0
    %v1459 = vadd.f32 %v1426, %v1458
    %v1460 = vpop.f32.mrf.mxu0
    %v1461 = vadd.f32 %v1428, %v1460
    %1462 = vmatmul.bf16.gmra.mxu0 %v1163
    %v1463 = vpop.f32.mrf.mxu0
    %v1464 = vadd.f32 %v1431, %v1463
    %v1465 = vpop.f32.mrf.mxu0
    %1466 = vdwg.mxu0
    %v1467 = vadd.f32 %v1014, %v1378
    %v1468 = vadd.f32 %v1080, %v1444
    %v1469 = vadd.f32 %v1016, %v1380
    %v1470 = vadd.f32 %v1082, %v1446
    %v1471 = vadd.f32 %v1019, %v1383
    %v1472 = vadd.f32 %v1085, %v1449
    %v1473 = vadd.f32 %v1021, %v1385
    %v1474 = vadd.f32 %v1087, %v1451
    %v1475 = vadd.f32 %v1024, %v1388
    %v1476 = vadd.f32 %v1090, %v1454
    %v1477 = vadd.f32 %v1026, %v1390
    %v1478 = vadd.f32 %v1092, %v1456
    %v1479 = vadd.f32 %v1029, %v1393
    %v1480 = vadd.f32 %v1095, %v1459
    %v1481 = vadd.f32 %v1031, %v1395
    %v1482 = vadd.f32 %v1097, %v1461
    %v1483 = vadd.f32 %v1034, %v1398
    %v1484 = vadd.f32 %v1100, %v1464
    %1486 = vset.pattern.permute.xlu0 0
    %1487 = vperm.xlu0 %1486, %v78
    %v1488 = vpop.permute.xlu0 %1487
    %1491 = vset.pattern.permute.xlu0 0
    %1492 = vperm.xlu0 %1491, %v79
    %v1493 = vpop.permute.xlu0 %1492
    %1496 = vset.pattern.permute.xlu0 0
    %1497 = vperm.xlu0 %1496, %v80
    %v1498 = vpop.permute.xlu0 %1497
    %1501 = vset.pattern.permute.xlu0 0
    %1502 = vperm.xlu0 %1501, %v81
    %v1503 = vpop.permute.xlu0 %1502
    %1506 = vset.pattern.permute.xlu0 0
    %1507 = vperm.xlu0 %1506, %v82
    %v1508 = vpop.permute.xlu0 %1507
    %1511 = vset.pattern.permute.xlu0 0
    %1512 = vperm.xlu0 %1511, %v83
    %v1513 = vpop.permute.xlu0 %1512
    %1516 = vset.pattern.permute.xlu0 0
    %1517 = vperm.xlu0 %1516, %v84
    %v1518 = vpop.permute.xlu0 %1517
    %1521 = vset.pattern.permute.xlu0 0
    %1522 = vperm.xlu0 %1521, %v85
    %v1523 = vpop.permute.xlu0 %1522
    %1526 = vset.pattern.permute.xlu0 0
    %1527 = vperm.xlu0 %1526, %v86
    %v1528 = vpop.permute.xlu0 %1527
    %v1530 = vmul.f32 %v1467, %v1488
    %v1531 = vmul.f32 %v1468, %v1488
    %v1532 = vmul.f32 %v1469, %v1493
    %v1533 = vmul.f32 %v1470, %v1493
    %v1534 = vmul.f32 %v1471, %v1498
    %v1535 = vmul.f32 %v1472, %v1498
    %v1536 = vmul.f32 %v1473, %v1503
    %v1537 = vmul.f32 %v1474, %v1503
    %v1538 = vmul.f32 %v1475, %v1508
    %v1539 = vmul.f32 %v1476, %v1508
    %v1540 = vmul.f32 %v1477, %v1513
    %v1541 = vmul.f32 %v1478, %v1513
    %v1542 = vmul.f32 %v1479, %v1518
    %v1543 = vmul.f32 %v1480, %v1518
    %v1544 = vmul.f32 %v1481, %v1523
    %v1545 = vmul.f32 %v1482, %v1523
    %v1546 = vmul.f32 %v1483, %v1528
    %v1547 = vmul.f32 %v1484, %v1528
    %v1548 = vld [vmem:[%s6] sm:$0xf]
    %v1549 = vld [vmem:[%s6 + $0x4] sm:$0xf]
    %v1550 = vld [vmem:[%s6 + $0x8] sm:$0xf]
    %v1551 = vld [vmem:[%s6 + $0xc] sm:$0xf]
    %v1552 = vld [vmem:[%s6 + $0x10] sm:$0xf]
    %v1553 = vld [vmem:[%s6 + $0x14] sm:$0xf]
    %v1554 = vld [vmem:[%s6 + $0x18] sm:$0xf]
    %v1555 = vld [vmem:[%s6 + $0x1c] sm:$0xf]
    %v1556 = vld [vmem:[%s6 + $0x20] sm:$0xf]
    %v1557 = vld [vmem:[%s6 + $0x24] sm:$0xf]
    %v1558 = vld [vmem:[%s6 + $0x28] sm:$0xf]
    %v1559 = vld [vmem:[%s6 + $0x2c] sm:$0xf]
    %v1560 = vld [vmem:[%s6 + $0x30] sm:$0xf]
    %v1561 = vld [vmem:[%s6 + $0x34] sm:$0xf]
    %v1562 = vld [vmem:[%s6 + $0x38] sm:$0xf]
    %v1563 = vld [vmem:[%s6 + $0x3c] sm:$0xf]
    %v1564 = vld [vmem:[%s6 + $0x40] sm:$0xf]
    %v1565 = vld [vmem:[%s6 + $0x44] sm:$0xf]
    %v1566 = vld [vmem:[%s6 + $0x48] sm:$0xf]
    %v1567 = vld [vmem:[%s6 + $0x4c] sm:$0xf]
    %v1568 = vld [vmem:[%s6 + $0x50] sm:$0xf]
    %v1569 = vld [vmem:[%s6 + $0x54] sm:$0xf]
    %v1570 = vld [vmem:[%s6 + $0x58] sm:$0xf]
    %v1571 = vld [vmem:[%s6 + $0x5c] sm:$0xf]
    %v1572 = vld [vmem:[%s6 + $0x60] sm:$0xf]
    %v1573 = vld [vmem:[%s6 + $0x64] sm:$0xf]
    %v1574 = vld [vmem:[%s6 + $0x68] sm:$0xf]
    %v1575 = vld [vmem:[%s6 + $0x6c] sm:$0xf]
    %v1576 = vld [vmem:[%s6 + $0x70] sm:$0xf]
    %v1577 = vld [vmem:[%s6 + $0x74] sm:$0xf]
    %v1578 = vld [vmem:[%s6 + $0x78] sm:$0xf]
    %v1579 = vld [vmem:[%s6 + $0x7c] sm:$0xf]
    %v1580 = vpack.c.bf16 %v1532, %v1530
    %v1581 = vpack.c.bf16 %v1533, %v1531
    %v1582 = vpack.c.bf16 %v1536, %v1534
    %v1583 = vpack.c.bf16 %v1537, %v1535
    %v1584 = vpack.c.bf16 %v1540, %v1538
    %v1585 = vpack.c.bf16 %v1541, %v1539
    %v1586 = vpack.c.bf16 %v1544, %v1542
    %v1587 = vpack.c.bf16 %v1545, %v1543
    %v1588 = vpack.c.bf16 %v1546, %v1546
    %v1589 = vpack.c.bf16 %v1547, %v1547
    %v1622 = vunpack.c.l.b16 %v1548
    %v1623 = vunpack.c.l.b16 %v1549
    %v1624 = vunpack.c.l.b16 %v1550
    %v1625 = vunpack.c.l.b16 %v1551
    %v1626 = vunpack.c.l.b16 %v1552
    %v1627 = vunpack.c.l.b16 %v1553
    %v1628 = vunpack.c.l.b16 %v1554
    %v1629 = vunpack.c.l.b16 %v1555
    %v1630 = vunpack.c.l.b16 %v1556
    %v1631 = vunpack.c.l.b16 %v1557
    %v1632 = vunpack.c.l.b16 %v1558
    %v1633 = vunpack.c.l.b16 %v1559
    %v1634 = vunpack.c.l.b16 %v1560
    %v1635 = vunpack.c.l.b16 %v1561
    %v1636 = vunpack.c.l.b16 %v1562
    %v1637 = vunpack.c.l.b16 %v1563
    %v1638 = vunpack.c.l.b16 %v1564
    %v1639 = vunpack.c.l.b16 %v1565
    %v1640 = vunpack.c.l.b16 %v1566
    %v1641 = vunpack.c.l.b16 %v1567
    %v1642 = vunpack.c.l.b16 %v1568
    %v1643 = vunpack.c.l.b16 %v1569
    %v1644 = vunpack.c.l.b16 %v1570
    %v1645 = vunpack.c.l.b16 %v1571
    %v1646 = vunpack.c.l.b16 %v1572
    %v1647 = vunpack.c.l.b16 %v1573
    %v1648 = vunpack.c.l.b16 %v1574
    %v1649 = vunpack.c.l.b16 %v1575
    %v1650 = vunpack.c.l.b16 %v1576
    %v1651 = vunpack.c.l.b16 %v1577
    %v1652 = vunpack.c.l.b16 %v1578
    %v1653 = vunpack.c.l.b16 %v1579
    %v1654 = vpack.c.b16 %v1623, %v1622
    %v1655 = vpack.c.b16 %v1625, %v1624
    %v1656 = vpack.c.b16 %v1627, %v1626
    %v1657 = vpack.c.b16 %v1629, %v1628
    %v1658 = vpack.c.b16 %v1631, %v1630
    %v1659 = vpack.c.b16 %v1633, %v1632
    %v1660 = vpack.c.b16 %v1635, %v1634
    %v1661 = vpack.c.b16 %v1637, %v1636
    %v1662 = vpack.c.b16 %v1639, %v1638
    %v1663 = vpack.c.b16 %v1641, %v1640
    %v1664 = vpack.c.b16 %v1643, %v1642
    %v1665 = vpack.c.b16 %v1645, %v1644
    %v1666 = vpack.c.b16 %v1647, %v1646
    %v1667 = vpack.c.b16 %v1649, %v1648
    %v1668 = vpack.c.b16 %v1651, %v1650
    %v1669 = vpack.c.b16 %v1653, %v1652
    %1686 = vmatpush.bf16.msra.mxu0 %v1661
    %1687 = vmatpush.bf16.msra.mxu0 %v1660
    %1688 = vmatpush.bf16.msra.mxu0 %v1659
    %1689 = vmatpush.bf16.msra.mxu0 %v1658
    %1690 = vmatpush.bf16.msra.mxu0 %v1657
    %1691 = vmatpush.bf16.msra.mxu0 %v1656
    %1692 = vmatpush.bf16.msra.mxu0 %v1655
    %1693 = vmatpush.bf16.msra.mxu0 %v1654
    %1694 = vmatmul.bf16.gmra.mxu0 %v1580
    %v1695 = vpop.f32.mrf.mxu0
    %v1696 = vadd.f32 0.0, %v1695
    %v1697 = vpop.f32.mrf.mxu0
    %v1698 = vadd.f32 0.0, %v1697
    %1699 = vmatmul.bf16.gmra.mxu0 %v1582
    %v1700 = vpop.f32.mrf.mxu0
    %v1701 = vadd.f32 0.0, %v1700
    %v1702 = vpop.f32.mrf.mxu0
    %v1703 = vadd.f32 0.0, %v1702
    %1704 = vmatmul.bf16.gmra.mxu0 %v1584
    %v1705 = vpop.f32.mrf.mxu0
    %v1706 = vadd.f32 0.0, %v1705
    %v1707 = vpop.f32.mrf.mxu0
    %v1708 = vadd.f32 0.0, %v1707
    %1709 = vmatmul.bf16.gmra.mxu0 %v1586
    %v1710 = vpop.f32.mrf.mxu0
    %v1711 = vadd.f32 0.0, %v1710
    %v1712 = vpop.f32.mrf.mxu0
    %v1713 = vadd.f32 0.0, %v1712
    %1714 = vmatmul.bf16.gmra.mxu0 %v1588
    %v1715 = vpop.f32.mrf.mxu0
    %v1716 = vadd.f32 0.0, %v1715
    %v1717 = vpop.f32.mrf.mxu0
    %1718 = vdwg.mxu0
    %1719 = vmatpush.bf16.msra.mxu0 %v1669
    %1720 = vmatpush.bf16.msra.mxu0 %v1668
    %1721 = vmatpush.bf16.msra.mxu0 %v1667
    %1722 = vmatpush.bf16.msra.mxu0 %v1666
    %1723 = vmatpush.bf16.msra.mxu0 %v1665
    %1724 = vmatpush.bf16.msra.mxu0 %v1664
    %1725 = vmatpush.bf16.msra.mxu0 %v1663
    %1726 = vmatpush.bf16.msra.mxu0 %v1662
    %1727 = vmatmul.bf16.gmra.mxu0 %v1581
    %v1728 = vpop.f32.mrf.mxu0
    %v1729 = vadd.f32 %v1696, %v1728
    %v1730 = vpop.f32.mrf.mxu0
    %v1731 = vadd.f32 %v1698, %v1730
    %1732 = vmatmul.bf16.gmra.mxu0 %v1583
    %v1733 = vpop.f32.mrf.mxu0
    %v1734 = vadd.f32 %v1701, %v1733
    %v1735 = vpop.f32.mrf.mxu0
    %v1736 = vadd.f32 %v1703, %v1735
    %1737 = vmatmul.bf16.gmra.mxu0 %v1585
    %v1738 = vpop.f32.mrf.mxu0
    %v1739 = vadd.f32 %v1706, %v1738
    %v1740 = vpop.f32.mrf.mxu0
    %v1741 = vadd.f32 %v1708, %v1740
    %1742 = vmatmul.bf16.gmra.mxu0 %v1587
    %v1743 = vpop.f32.mrf.mxu0
    %v1744 = vadd.f32 %v1711, %v1743
    %v1745 = vpop.f32.mrf.mxu0
    %v1746 = vadd.f32 %v1713, %v1745
    %1747 = vmatmul.bf16.gmra.mxu0 %v1589
    %v1748 = vpop.f32.mrf.mxu0
    %v1749 = vadd.f32 %v1716, %v1748
    %v1750 = vpop.f32.mrf.mxu0
    %1751 = vdwg.mxu0
    %vm1752 = vcmask 64512
    %v1753 = vsel %vm1752, %v1729, 0.0
    %v1754 = vsel %vm1752, %v1731, 0.0
    %v1755 = vadd.f32 %v1753, %v1754
    %v1756 = vsel %vm1752, %v1734, 0.0
    %v1757 = vadd.f32 %v1755, %v1756
    %v1758 = vsel %vm1752, %v1736, 0.0
    %v1759 = vadd.f32 %v1757, %v1758
    %v1760 = vsel %vm1752, %v1739, 0.0
    %v1761 = vadd.f32 %v1759, %v1760
    %v1762 = vsel %vm1752, %v1741, 0.0
    %v1763 = vadd.f32 %v1761, %v1762
    %v1764 = vsel %vm1752, %v1744, 0.0
    %v1765 = vadd.f32 %v1763, %v1764
    %v1766 = vsel %vm1752, %v1746, 0.0
    %v1767 = vadd.f32 %v1765, %v1766
    %vm1768 = vcmask 58368
    %v1769 = vsel %vm1768, %v1749, 0.0
    %v1770 = vadd.f32 %v1767, %v1769
    %v1771 = vrot.slane %v1770, 4
    %v1772 = vadd.f32 %v1770, %v1771
    %v1773 = vrot.slane %v1772, 2
    %v1774 = vadd.f32 %v1772, %v1773
    %v1775 = vrot.slane %v1774, 1
    %v1776 = vadd.f32 %v1774, %v1775
    %v1777 = vmul.f32 %v1530, %v1530
    %v1778 = vmul.f32 %v1531, %v1531
    %v1779 = vmul.f32 %v1532, %v1532
    %v1780 = vmul.f32 %v1533, %v1533
    %v1781 = vmul.f32 %v1534, %v1534
    %v1782 = vmul.f32 %v1535, %v1535
    %v1783 = vmul.f32 %v1536, %v1536
    %v1784 = vmul.f32 %v1537, %v1537
    %v1785 = vmul.f32 %v1538, %v1538
    %v1786 = vmul.f32 %v1539, %v1539
    %v1787 = vmul.f32 %v1540, %v1540
    %v1788 = vmul.f32 %v1541, %v1541
    %v1789 = vmul.f32 %v1542, %v1542
    %v1790 = vmul.f32 %v1543, %v1543
    %v1791 = vmul.f32 %v1544, %v1544
    %v1792 = vmul.f32 %v1545, %v1545
    %v1793 = vmul.f32 %v1546, %v1546
    %v1794 = vmul.f32 %v1547, %v1547
    %v1795 = vpack.c.bf16 %v1779, %v1777
    %v1796 = vpack.c.bf16 %v1780, %v1778
    %v1797 = vpack.c.bf16 %v1783, %v1781
    %v1798 = vpack.c.bf16 %v1784, %v1782
    %v1799 = vpack.c.bf16 %v1787, %v1785
    %v1800 = vpack.c.bf16 %v1788, %v1786
    %v1801 = vpack.c.bf16 %v1791, %v1789
    %v1802 = vpack.c.bf16 %v1792, %v1790
    %v1803 = vpack.c.bf16 %v1793, %v1793
    %v1804 = vpack.c.bf16 %v1794, %v1794
    %1805 = vmatpush.bf16.msra.mxu0 %v1661
    %1806 = vmatpush.bf16.msra.mxu0 %v1660
    %1807 = vmatpush.bf16.msra.mxu0 %v1659
    %1808 = vmatpush.bf16.msra.mxu0 %v1658
    %1809 = vmatpush.bf16.msra.mxu0 %v1657
    %1810 = vmatpush.bf16.msra.mxu0 %v1656
    %1811 = vmatpush.bf16.msra.mxu0 %v1655
    %1812 = vmatpush.bf16.msra.mxu0 %v1654
    %1813 = vmatmul.bf16.gmra.mxu0 %v1795
    %v1814 = vpop.f32.mrf.mxu0
    %v1815 = vadd.f32 0.0, %v1814
    %v1816 = vpop.f32.mrf.mxu0
    %v1817 = vadd.f32 0.0, %v1816
    %1818 = vmatmul.bf16.gmra.mxu0 %v1797
    %v1819 = vpop.f32.mrf.mxu0
    %v1820 = vadd.f32 0.0, %v1819
    %v1821 = vpop.f32.mrf.mxu0
    %v1822 = vadd.f32 0.0, %v1821
    %1823 = vmatmul.bf16.gmra.mxu0 %v1799
    %v1824 = vpop.f32.mrf.mxu0
    %v1825 = vadd.f32 0.0, %v1824
    %v1826 = vpop.f32.mrf.mxu0
    %v1827 = vadd.f32 0.0, %v1826
    %1828 = vmatmul.bf16.gmra.mxu0 %v1801
    %v1829 = vpop.f32.mrf.mxu0
    %v1830 = vadd.f32 0.0, %v1829
    %v1831 = vpop.f32.mrf.mxu0
    %v1832 = vadd.f32 0.0, %v1831
    %1833 = vmatmul.bf16.gmra.mxu0 %v1803
    %v1834 = vpop.f32.mrf.mxu0
    %v1835 = vadd.f32 0.0, %v1834
    %v1836 = vpop.f32.mrf.mxu0
    %1837 = vdwg.mxu0
    %1838 = vmatpush.bf16.msra.mxu0 %v1669
    %1839 = vmatpush.bf16.msra.mxu0 %v1668
    %1840 = vmatpush.bf16.msra.mxu0 %v1667
    %1841 = vmatpush.bf16.msra.mxu0 %v1666
    %1842 = vmatpush.bf16.msra.mxu0 %v1665
    %1843 = vmatpush.bf16.msra.mxu0 %v1664
    %1844 = vmatpush.bf16.msra.mxu0 %v1663
    %1845 = vmatpush.bf16.msra.mxu0 %v1662
    %1846 = vmatmul.bf16.gmra.mxu0 %v1796
    %v1847 = vpop.f32.mrf.mxu0
    %v1848 = vadd.f32 %v1815, %v1847
    %v1849 = vpop.f32.mrf.mxu0
    %v1850 = vadd.f32 %v1817, %v1849
    %1851 = vmatmul.bf16.gmra.mxu0 %v1798
    %v1852 = vpop.f32.mrf.mxu0
    %v1853 = vadd.f32 %v1820, %v1852
    %v1854 = vpop.f32.mrf.mxu0
    %v1855 = vadd.f32 %v1822, %v1854
    %1856 = vmatmul.bf16.gmra.mxu0 %v1800
    %v1857 = vpop.f32.mrf.mxu0
    %v1858 = vadd.f32 %v1825, %v1857
    %v1859 = vpop.f32.mrf.mxu0
    %v1860 = vadd.f32 %v1827, %v1859
    %1861 = vmatmul.bf16.gmra.mxu0 %v1802
    %v1862 = vpop.f32.mrf.mxu0
    %v1863 = vadd.f32 %v1830, %v1862
    %v1864 = vpop.f32.mrf.mxu0
    %v1865 = vadd.f32 %v1832, %v1864
    %1866 = vmatmul.bf16.gmra.mxu0 %v1804
    %v1867 = vpop.f32.mrf.mxu0
    %v1868 = vadd.f32 %v1835, %v1867
    %v1869 = vpop.f32.mrf.mxu0
    %1870 = vdwg.mxu0
    %v1871 = vsel %vm1752, %v1848, 0.0
    %v1872 = vsel %vm1752, %v1850, 0.0
    %v1873 = vadd.f32 %v1871, %v1872
    %v1874 = vsel %vm1752, %v1853, 0.0
    %v1875 = vadd.f32 %v1873, %v1874
    %v1876 = vsel %vm1752, %v1855, 0.0
    %v1877 = vadd.f32 %v1875, %v1876
    %v1878 = vsel %vm1752, %v1858, 0.0
    %v1879 = vadd.f32 %v1877, %v1878
    %v1880 = vsel %vm1752, %v1860, 0.0
    %v1881 = vadd.f32 %v1879, %v1880
    %v1882 = vsel %vm1752, %v1863, 0.0
    %v1883 = vadd.f32 %v1881, %v1882
    %v1884 = vsel %vm1752, %v1865, 0.0
    %v1885 = vadd.f32 %v1883, %v1884
    %v1886 = vsel %vm1768, %v1868, 0.0
    %v1887 = vadd.f32 %v1885, %v1886
    %v1888 = vrot.slane %v1887, 4
    %v1889 = vadd.f32 %v1887, %v1888
    %v1890 = vrot.slane %v1889, 2
    %v1891 = vadd.f32 %v1889, %v1890
    %v1892 = vrot.slane %v1891, 1
    %v1893 = vadd.f32 %v1891, %v1892
    %v1894 = vrcp.pop 2048.0
    %v1895 = vmul.f32 2048.0, %v1894
    %v1896 = vsub.f32 1.0, %v1895
    %v1897 = vmul.f32 %v1894, %v1896
    %v1898 = vadd.f32 %v1894, %v1897
    %vm1899 = vweird.f32 %v1894
    %v1900 = vsel %vm1899, %v1894, %v1898
    %v1901 = vmul.f32 %v1776, %v1900
    %v1902 = vmul.f32 %v1893, %v1900
    %v1903 = vmul.f32 %v1901, %v1901
    %v1904 = vsub.f32 %v1902, %v1903
    %v1905 = vld [vmem:[%s9] sm:$0x1]
    %v1906 = vadd.f32 %v1904, 1e-05
    %v1907 = vrsqrt.pop %v1906
    %v1908 = vmul.f32 %v1907, %v1906
    %v1909 = vmul.f32 %v1908, %v1907
    %v1910 = vmul.f32 0.5, %v1909
    %v1911 = vsub.f32 1.5, %v1910
    %v1912 = vmul.f32 %v1907, %v1911
    %vm1913 = vweird.f32 %v1906
    %vm1914 = vweird.f32 %v1907
    %vm1915 = vmor %vm1913, %vm1914
    %v1916 = vsel %vm1915, %v1907, %v1912
    %v1917 = vmul.f32 %v1905, %v1916
    %v1918 = vld [vmem:[%s10] sm:$0x1]
    %v1919 = vmul.f32 %v1901, %v1917
    %v1920 = vsub.f32 %v1918, %v1919
    %v1921 = vld [vmem:[%s7] sm:$0xff]
    %v1922 = vld [vmem:[%s7 + $0x8] sm:$0xff]
    %v1924 = vsel %vm1752, %v1917, 0
    %1926 = vmatpush.msra.mxu0 0.0
    %1927 = vmatpush.msra.mxu0 0.0
    %1928 = vmatpush.msra.mxu0 0.0
    %1929 = vmatpush.msra.mxu0 0.0
    %1930 = vmatpush.msra.mxu0 0.0
    %1931 = vmatpush.msra.mxu0 0.0
    %1932 = vmatpush.msra.mxu0 0.0
    %1933 = vmatpush.msra.mxu0 0.0
    %1934 = vmatpush.msra.mxu0 0.0
    %1935 = vmatpush.msra.mxu0 0.0
    %1936 = vmatpush.msra.mxu0 0.0
    %1937 = vmatpush.msra.mxu0 0.0
    %1938 = vmatpush.msra.mxu0 0.0
    %1939 = vmatpush.msra.mxu0 0.0
    %1940 = vmatpush.msra.mxu0 0.0
    %v1941 = vand.u32 %v1921, 4294901760
    %1942 = vmatpush.msra.mxu0 %v1941
    %v1943 = vand.u32 %v1924, 4294901760
    %v1944 = vsub.f32 %v1924, %v1943
    %v1945 = vand.u32 %v1944, 4294901760
    %v1946 = vsub.f32 %v1944, %v1945
    %v1947 = vand.u32 %v1946, 4294901760
    %1948 = vmatmul.f32.gmra.mxu0 %v1947
    %v1949 = vpop.f32.mrf.mxu0
    %v1950 = vadd.f32 0.0, %v1949
    %1951 = vdwg.mxu0
    %1952 = vmatpush.msra.mxu0 0.0
    %1953 = vmatpush.msra.mxu0 0.0
    %1954 = vmatpush.msra.mxu0 0.0
    %1955 = vmatpush.msra.mxu0 0.0
    %1956 = vmatpush.msra.mxu0 0.0
    %1957 = vmatpush.msra.mxu0 0.0
    %1958 = vmatpush.msra.mxu0 0.0
    %1959 = vmatpush.msra.mxu0 0.0
    %1960 = vmatpush.msra.mxu0 0.0
    %1961 = vmatpush.msra.mxu0 0.0
    %1962 = vmatpush.msra.mxu0 0.0
    %1963 = vmatpush.msra.mxu0 0.0
    %1964 = vmatpush.msra.mxu0 0.0
    %1965 = vmatpush.msra.mxu0 0.0
    %1966 = vmatpush.msra.mxu0 0.0
    %v1967 = vand.u32 %v1921, 4294901760
    %v1968 = vsub.f32 %v1921, %v1967
    %v1969 = vand.u32 %v1968, 4294901760
    %v1970 = vsub.f32 %v1968, %v1969
    %v1971 = vand.u32 %v1970, 4294901760
    %1972 = vmatpush.msra.mxu0 %v1971
    %v1973 = vand.u32 %v1924, 4294901760
    %1974 = vmatmul.f32.gmra.mxu0 %v1973
    %v1975 = vpop.f32.mrf.mxu0
    %v1976 = vadd.f32 %v1950, %v1975
    %1977 = vdwg.mxu0
    %1978 = vmatpush.msra.mxu0 0.0
    %1979 = vmatpush.msra.mxu0 0.0
    %1980 = vmatpush.msra.mxu0 0.0
    %1981 = vmatpush.msra.mxu0 0.0
    %1982 = vmatpush.msra.mxu0 0.0
    %1983 = vmatpush.msra.mxu0 0.0
    %1984 = vmatpush.msra.mxu0 0.0
    %1985 = vmatpush.msra.mxu0 0.0
    %1986 = vmatpush.msra.mxu0 0.0
    %1987 = vmatpush.msra.mxu0 0.0
    %1988 = vmatpush.msra.mxu0 0.0
    %1989 = vmatpush.msra.mxu0 0.0
    %1990 = vmatpush.msra.mxu0 0.0
    %1991 = vmatpush.msra.mxu0 0.0
    %1992 = vmatpush.msra.mxu0 0.0
    %v1993 = vand.u32 %v1921, 4294901760
    %v1994 = vsub.f32 %v1921, %v1993
    %1995 = vmatpush.msra.mxu0 %v1994
    %v1996 = vand.u32 %v1924, 4294901760
    %v1997 = vsub.f32 %v1924, %v1996
    %1998 = vmatmul.f32.gmra.mxu0 %v1997
    %v1999 = vpop.f32.mrf.mxu0
    %v2000 = vadd.f32 %v1976, %v1999
    %2001 = vdwg.mxu0
    %2002 = vmatpush.msra.mxu0 0.0
    %2003 = vmatpush.msra.mxu0 0.0
    %2004 = vmatpush.msra.mxu0 0.0
    %2005 = vmatpush.msra.mxu0 0.0
    %2006 = vmatpush.msra.mxu0 0.0
    %2007 = vmatpush.msra.mxu0 0.0
    %2008 = vmatpush.msra.mxu0 0.0
    %2009 = vmatpush.msra.mxu0 0.0
    %2010 = vmatpush.msra.mxu0 0.0
    %2011 = vmatpush.msra.mxu0 0.0
    %2012 = vmatpush.msra.mxu0 0.0
    %2013 = vmatpush.msra.mxu0 0.0
    %2014 = vmatpush.msra.mxu0 0.0
    %2015 = vmatpush.msra.mxu0 0.0
    %2016 = vmatpush.msra.mxu0 0.0
    %v2017 = vand.u32 %v1921, 4294901760
    %2018 = vmatpush.msra.mxu0 %v2017
    %v2019 = vand.u32 %v1924, 4294901760
    %v2020 = vsub.f32 %v1924, %v2019
    %v2021 = vand.u32 %v2020, 4294901760
    %2022 = vmatmul.f32.gmra.mxu0 %v2021
    %v2023 = vpop.f32.mrf.mxu0
    %v2024 = vadd.f32 %v2000, %v2023
    %2025 = vdwg.mxu0
    %2026 = vmatpush.msra.mxu0 0.0
    %2027 = vmatpush.msra.mxu0 0.0
    %2028 = vmatpush.msra.mxu0 0.0
    %2029 = vmatpush.msra.mxu0 0.0
    %2030 = vmatpush.msra.mxu0 0.0
    %2031 = vmatpush.msra.mxu0 0.0
    %2032 = vmatpush.msra.mxu0 0.0
    %2033 = vmatpush.msra.mxu0 0.0
    %2034 = vmatpush.msra.mxu0 0.0
    %2035 = vmatpush.msra.mxu0 0.0
    %2036 = vmatpush.msra.mxu0 0.0
    %2037 = vmatpush.msra.mxu0 0.0
    %2038 = vmatpush.msra.mxu0 0.0
    %2039 = vmatpush.msra.mxu0 0.0
    %2040 = vmatpush.msra.mxu0 0.0
    %v2041 = vand.u32 %v1921, 4294901760
    %v2042 = vsub.f32 %v1921, %v2041
    %v2043 = vand.u32 %v2042, 4294901760
    %2044 = vmatpush.msra.mxu0 %v2043
    %v2045 = vand.u32 %v1924, 4294901760
    %2046 = vmatmul.f32.gmra.mxu0 %v2045
    %v2047 = vpop.f32.mrf.mxu0
    %v2048 = vadd.f32 %v2024, %v2047
    %2049 = vdwg.mxu0
    %2050 = vmatpush.msra.mxu0 0.0
    %2051 = vmatpush.msra.mxu0 0.0
    %2052 = vmatpush.msra.mxu0 0.0
    %2053 = vmatpush.msra.mxu0 0.0
    %2054 = vmatpush.msra.mxu0 0.0
    %2055 = vmatpush.msra.mxu0 0.0
    %2056 = vmatpush.msra.mxu0 0.0
    %2057 = vmatpush.msra.mxu0 0.0
    %2058 = vmatpush.msra.mxu0 0.0
    %2059 = vmatpush.msra.mxu0 0.0
    %2060 = vmatpush.msra.mxu0 0.0
    %2061 = vmatpush.msra.mxu0 0.0
    %2062 = vmatpush.msra.mxu0 0.0
    %2063 = vmatpush.msra.mxu0 0.0
    %2064 = vmatpush.msra.mxu0 0.0
    %v2065 = vand.u32 %v1921, 4294901760
    %2066 = vmatpush.msra.mxu0 %v2065
    %v2067 = vand.u32 %v1924, 4294901760
    %2068 = vmatmul.f32.gmra.mxu0 %v2067
    %v2069 = vpop.f32.mrf.mxu0
    %v2070 = vadd.f32 %v2048, %v2069
    %2071 = vdwg.mxu0
    %2072 = vmatpush.msra.mxu0 0.0
    %2073 = vmatpush.msra.mxu0 0.0
    %2074 = vmatpush.msra.mxu0 0.0
    %2075 = vmatpush.msra.mxu0 0.0
    %2076 = vmatpush.msra.mxu0 0.0
    %2077 = vmatpush.msra.mxu0 0.0
    %2078 = vmatpush.msra.mxu0 0.0
    %2079 = vmatpush.msra.mxu0 0.0
    %2080 = vmatpush.msra.mxu0 0.0
    %2081 = vmatpush.msra.mxu0 0.0
    %2082 = vmatpush.msra.mxu0 0.0
    %2083 = vmatpush.msra.mxu0 0.0
    %2084 = vmatpush.msra.mxu0 0.0
    %2085 = vmatpush.msra.mxu0 0.0
    %2086 = vmatpush.msra.mxu0 0.0
    %v2087 = vand.u32 %v1922, 4294901760
    %2088 = vmatpush.msra.mxu0 %v2087
    %v2089 = vand.u32 %v1924, 4294901760
    %v2090 = vsub.f32 %v1924, %v2089
    %v2091 = vand.u32 %v2090, 4294901760
    %v2092 = vsub.f32 %v2090, %v2091
    %v2093 = vand.u32 %v2092, 4294901760
    %2094 = vmatmul.f32.gmra.mxu0 %v2093
    %v2095 = vpop.f32.mrf.mxu0
    %v2096 = vadd.f32 0.0, %v2095
    %2097 = vdwg.mxu0
    %2098 = vmatpush.msra.mxu0 0.0
    %2099 = vmatpush.msra.mxu0 0.0
    %2100 = vmatpush.msra.mxu0 0.0
    %2101 = vmatpush.msra.mxu0 0.0
    %2102 = vmatpush.msra.mxu0 0.0
    %2103 = vmatpush.msra.mxu0 0.0
    %2104 = vmatpush.msra.mxu0 0.0
    %2105 = vmatpush.msra.mxu0 0.0
    %2106 = vmatpush.msra.mxu0 0.0
    %2107 = vmatpush.msra.mxu0 0.0
    %2108 = vmatpush.msra.mxu0 0.0
    %2109 = vmatpush.msra.mxu0 0.0
    %2110 = vmatpush.msra.mxu0 0.0
    %2111 = vmatpush.msra.mxu0 0.0
    %2112 = vmatpush.msra.mxu0 0.0
    %v2113 = vand.u32 %v1922, 4294901760
    %v2114 = vsub.f32 %v1922, %v2113
    %v2115 = vand.u32 %v2114, 4294901760
    %v2116 = vsub.f32 %v2114, %v2115
    %v2117 = vand.u32 %v2116, 4294901760
    %2118 = vmatpush.msra.mxu0 %v2117
    %v2119 = vand.u32 %v1924, 4294901760
    %2120 = vmatmul.f32.gmra.mxu0 %v2119
    %v2121 = vpop.f32.mrf.mxu0
    %v2122 = vadd.f32 %v2096, %v2121
    %2123 = vdwg.mxu0
    %2124 = vmatpush.msra.mxu0 0.0
    %2125 = vmatpush.msra.mxu0 0.0
    %2126 = vmatpush.msra.mxu0 0.0
    %2127 = vmatpush.msra.mxu0 0.0
    %2128 = vmatpush.msra.mxu0 0.0
    %2129 = vmatpush.msra.mxu0 0.0
    %2130 = vmatpush.msra.mxu0 0.0
    %2131 = vmatpush.msra.mxu0 0.0
    %2132 = vmatpush.msra.mxu0 0.0
    %2133 = vmatpush.msra.mxu0 0.0
    %2134 = vmatpush.msra.mxu0 0.0
    %2135 = vmatpush.msra.mxu0 0.0
    %2136 = vmatpush.msra.mxu0 0.0
    %2137 = vmatpush.msra.mxu0 0.0
    %2138 = vmatpush.msra.mxu0 0.0
    %v2139 = vand.u32 %v1922, 4294901760
    %v2140 = vsub.f32 %v1922, %v2139
    %2141 = vmatpush.msra.mxu0 %v2140
    %v2142 = vand.u32 %v1924, 4294901760
    %v2143 = vsub.f32 %v1924, %v2142
    %2144 = vmatmul.f32.gmra.mxu0 %v2143
    %v2145 = vpop.f32.mrf.mxu0
    %v2146 = vadd.f32 %v2122, %v2145
    %2147 = vdwg.mxu0
    %2148 = vmatpush.msra.mxu0 0.0
    %2149 = vmatpush.msra.mxu0 0.0
    %2150 = vmatpush.msra.mxu0 0.0
    %2151 = vmatpush.msra.mxu0 0.0
    %2152 = vmatpush.msra.mxu0 0.0
    %2153 = vmatpush.msra.mxu0 0.0
    %2154 = vmatpush.msra.mxu0 0.0
    %2155 = vmatpush.msra.mxu0 0.0
    %2156 = vmatpush.msra.mxu0 0.0
    %2157 = vmatpush.msra.mxu0 0.0
    %2158 = vmatpush.msra.mxu0 0.0
    %2159 = vmatpush.msra.mxu0 0.0
    %2160 = vmatpush.msra.mxu0 0.0
    %2161 = vmatpush.msra.mxu0 0.0
    %2162 = vmatpush.msra.mxu0 0.0
    %v2163 = vand.u32 %v1922, 4294901760
    %2164 = vmatpush.msra.mxu0 %v2163
    %v2165 = vand.u32 %v1924, 4294901760
    %v2166 = vsub.f32 %v1924, %v2165
    %v2167 = vand.u32 %v2166, 4294901760
    %2168 = vmatmul.f32.gmra.mxu0 %v2167
    %v2169 = vpop.f32.mrf.mxu0
    %v2170 = vadd.f32 %v2146, %v2169
    %2171 = vdwg.mxu0
    %2172 = vmatpush.msra.mxu0 0.0
    %2173 = vmatpush.msra.mxu0 0.0
    %2174 = vmatpush.msra.mxu0 0.0
    %2175 = vmatpush.msra.mxu0 0.0
    %2176 = vmatpush.msra.mxu0 0.0
    %2177 = vmatpush.msra.mxu0 0.0
    %2178 = vmatpush.msra.mxu0 0.0
    %2179 = vmatpush.msra.mxu0 0.0
    %2180 = vmatpush.msra.mxu0 0.0
    %2181 = vmatpush.msra.mxu0 0.0
    %2182 = vmatpush.msra.mxu0 0.0
    %2183 = vmatpush.msra.mxu0 0.0
    %2184 = vmatpush.msra.mxu0 0.0
    %2185 = vmatpush.msra.mxu0 0.0
    %2186 = vmatpush.msra.mxu0 0.0
    %v2187 = vand.u32 %v1922, 4294901760
    %v2188 = vsub.f32 %v1922, %v2187
    %v2189 = vand.u32 %v2188, 4294901760
    %2190 = vmatpush.msra.mxu0 %v2189
    %v2191 = vand.u32 %v1924, 4294901760
    %2192 = vmatmul.f32.gmra.mxu0 %v2191
    %v2193 = vpop.f32.mrf.mxu0
    %v2194 = vadd.f32 %v2170, %v2193
    %2195 = vdwg.mxu0
    %2196 = vmatpush.msra.mxu0 0.0
    %2197 = vmatpush.msra.mxu0 0.0
    %2198 = vmatpush.msra.mxu0 0.0
    %2199 = vmatpush.msra.mxu0 0.0
    %2200 = vmatpush.msra.mxu0 0.0
    %2201 = vmatpush.msra.mxu0 0.0
    %2202 = vmatpush.msra.mxu0 0.0
    %2203 = vmatpush.msra.mxu0 0.0
    %2204 = vmatpush.msra.mxu0 0.0
    %2205 = vmatpush.msra.mxu0 0.0
    %2206 = vmatpush.msra.mxu0 0.0
    %2207 = vmatpush.msra.mxu0 0.0
    %2208 = vmatpush.msra.mxu0 0.0
    %2209 = vmatpush.msra.mxu0 0.0
    %2210 = vmatpush.msra.mxu0 0.0
    %v2211 = vand.u32 %v1922, 4294901760
    %2212 = vmatpush.msra.mxu0 %v2211
    %v2213 = vand.u32 %v1924, 4294901760
    %2214 = vmatmul.f32.gmra.mxu0 %v2213
    %v2215 = vpop.f32.mrf.mxu0
    %v2216 = vadd.f32 %v2194, %v2215
    %2217 = vdwg.mxu0
    %v2219 = vsel %vm1752, %v1920, 0
    %2221 = vmatpush.msra.mxu0 0.0
    %2222 = vmatpush.msra.mxu0 0.0
    %2223 = vmatpush.msra.mxu0 0.0
    %2224 = vmatpush.msra.mxu0 0.0
    %2225 = vmatpush.msra.mxu0 0.0
    %2226 = vmatpush.msra.mxu0 0.0
    %2227 = vmatpush.msra.mxu0 0.0
    %2228 = vmatpush.msra.mxu0 0.0
    %2229 = vmatpush.msra.mxu0 0.0
    %2230 = vmatpush.msra.mxu0 0.0
    %2231 = vmatpush.msra.mxu0 0.0
    %2232 = vmatpush.msra.mxu0 0.0
    %2233 = vmatpush.msra.mxu0 0.0
    %2234 = vmatpush.msra.mxu0 0.0
    %2235 = vmatpush.msra.mxu0 0.0
    %v2236 = vand.u32 %v1921, 4294901760
    %2237 = vmatpush.msra.mxu0 %v2236
    %v2238 = vand.u32 %v2219, 4294901760
    %v2239 = vsub.f32 %v2219, %v2238
    %v2240 = vand.u32 %v2239, 4294901760
    %v2241 = vsub.f32 %v2239, %v2240
    %v2242 = vand.u32 %v2241, 4294901760
    %2243 = vmatmul.f32.gmra.mxu0 %v2242
    %v2244 = vpop.f32.mrf.mxu0
    %v2245 = vadd.f32 0.0, %v2244
    %2246 = vdwg.mxu0
    %2247 = vmatpush.msra.mxu0 0.0
    %2248 = vmatpush.msra.mxu0 0.0
    %2249 = vmatpush.msra.mxu0 0.0
    %2250 = vmatpush.msra.mxu0 0.0
    %2251 = vmatpush.msra.mxu0 0.0
    %2252 = vmatpush.msra.mxu0 0.0
    %2253 = vmatpush.msra.mxu0 0.0
    %2254 = vmatpush.msra.mxu0 0.0
    %2255 = vmatpush.msra.mxu0 0.0
    %2256 = vmatpush.msra.mxu0 0.0
    %2257 = vmatpush.msra.mxu0 0.0
    %2258 = vmatpush.msra.mxu0 0.0
    %2259 = vmatpush.msra.mxu0 0.0
    %2260 = vmatpush.msra.mxu0 0.0
    %2261 = vmatpush.msra.mxu0 0.0
    %v2262 = vand.u32 %v1921, 4294901760
    %v2263 = vsub.f32 %v1921, %v2262
    %v2264 = vand.u32 %v2263, 4294901760
    %v2265 = vsub.f32 %v2263, %v2264
    %v2266 = vand.u32 %v2265, 4294901760
    %2267 = vmatpush.msra.mxu0 %v2266
    %v2268 = vand.u32 %v2219, 4294901760
    %2269 = vmatmul.f32.gmra.mxu0 %v2268
    %v2270 = vpop.f32.mrf.mxu0
    %v2271 = vadd.f32 %v2245, %v2270
    %2272 = vdwg.mxu0
    %2273 = vmatpush.msra.mxu0 0.0
    %2274 = vmatpush.msra.mxu0 0.0
    %2275 = vmatpush.msra.mxu0 0.0
    %2276 = vmatpush.msra.mxu0 0.0
    %2277 = vmatpush.msra.mxu0 0.0
    %2278 = vmatpush.msra.mxu0 0.0
    %2279 = vmatpush.msra.mxu0 0.0
    %2280 = vmatpush.msra.mxu0 0.0
    %2281 = vmatpush.msra.mxu0 0.0
    %2282 = vmatpush.msra.mxu0 0.0
    %2283 = vmatpush.msra.mxu0 0.0
    %2284 = vmatpush.msra.mxu0 0.0
    %2285 = vmatpush.msra.mxu0 0.0
    %2286 = vmatpush.msra.mxu0 0.0
    %2287 = vmatpush.msra.mxu0 0.0
    %v2288 = vand.u32 %v1921, 4294901760
    %v2289 = vsub.f32 %v1921, %v2288
    %2290 = vmatpush.msra.mxu0 %v2289
    %v2291 = vand.u32 %v2219, 4294901760
    %v2292 = vsub.f32 %v2219, %v2291
    %2293 = vmatmul.f32.gmra.mxu0 %v2292
    %v2294 = vpop.f32.mrf.mxu0
    %v2295 = vadd.f32 %v2271, %v2294
    %2296 = vdwg.mxu0
    %2297 = vmatpush.msra.mxu0 0.0
    %2298 = vmatpush.msra.mxu0 0.0
    %2299 = vmatpush.msra.mxu0 0.0
    %2300 = vmatpush.msra.mxu0 0.0
    %2301 = vmatpush.msra.mxu0 0.0
    %2302 = vmatpush.msra.mxu0 0.0
    %2303 = vmatpush.msra.mxu0 0.0
    %2304 = vmatpush.msra.mxu0 0.0
    %2305 = vmatpush.msra.mxu0 0.0
    %2306 = vmatpush.msra.mxu0 0.0
    %2307 = vmatpush.msra.mxu0 0.0
    %2308 = vmatpush.msra.mxu0 0.0
    %2309 = vmatpush.msra.mxu0 0.0
    %2310 = vmatpush.msra.mxu0 0.0
    %2311 = vmatpush.msra.mxu0 0.0
    %v2312 = vand.u32 %v1921, 4294901760
    %2313 = vmatpush.msra.mxu0 %v2312
    %v2314 = vand.u32 %v2219, 4294901760
    %v2315 = vsub.f32 %v2219, %v2314
    %v2316 = vand.u32 %v2315, 4294901760
    %2317 = vmatmul.f32.gmra.mxu0 %v2316
    %v2318 = vpop.f32.mrf.mxu0
    %v2319 = vadd.f32 %v2295, %v2318
    %2320 = vdwg.mxu0
    %2321 = vmatpush.msra.mxu0 0.0
    %2322 = vmatpush.msra.mxu0 0.0
    %2323 = vmatpush.msra.mxu0 0.0
    %2324 = vmatpush.msra.mxu0 0.0
    %2325 = vmatpush.msra.mxu0 0.0
    %2326 = vmatpush.msra.mxu0 0.0
    %2327 = vmatpush.msra.mxu0 0.0
    %2328 = vmatpush.msra.mxu0 0.0
    %2329 = vmatpush.msra.mxu0 0.0
    %2330 = vmatpush.msra.mxu0 0.0
    %2331 = vmatpush.msra.mxu0 0.0
    %2332 = vmatpush.msra.mxu0 0.0
    %2333 = vmatpush.msra.mxu0 0.0
    %2334 = vmatpush.msra.mxu0 0.0
    %2335 = vmatpush.msra.mxu0 0.0
    %v2336 = vand.u32 %v1921, 4294901760
    %v2337 = vsub.f32 %v1921, %v2336
    %v2338 = vand.u32 %v2337, 4294901760
    %2339 = vmatpush.msra.mxu0 %v2338
    %v2340 = vand.u32 %v2219, 4294901760
    %2341 = vmatmul.f32.gmra.mxu0 %v2340
    %v2342 = vpop.f32.mrf.mxu0
    %v2343 = vadd.f32 %v2319, %v2342
    %2344 = vdwg.mxu0
    %2345 = vmatpush.msra.mxu0 0.0
    %2346 = vmatpush.msra.mxu0 0.0
    %2347 = vmatpush.msra.mxu0 0.0
    %2348 = vmatpush.msra.mxu0 0.0
    %2349 = vmatpush.msra.mxu0 0.0
    %2350 = vmatpush.msra.mxu0 0.0
    %2351 = vmatpush.msra.mxu0 0.0
    %2352 = vmatpush.msra.mxu0 0.0
    %2353 = vmatpush.msra.mxu0 0.0
    %2354 = vmatpush.msra.mxu0 0.0
    %2355 = vmatpush.msra.mxu0 0.0
    %2356 = vmatpush.msra.mxu0 0.0
    %2357 = vmatpush.msra.mxu0 0.0
    %2358 = vmatpush.msra.mxu0 0.0
    %2359 = vmatpush.msra.mxu0 0.0
    %v2360 = vand.u32 %v1921, 4294901760
    %2361 = vmatpush.msra.mxu0 %v2360
    %v2362 = vand.u32 %v2219, 4294901760
    %2363 = vmatmul.f32.gmra.mxu0 %v2362
    %v2364 = vpop.f32.mrf.mxu0
    %v2365 = vadd.f32 %v2343, %v2364
    %2366 = vdwg.mxu0
    %2367 = vmatpush.msra.mxu0 0.0
    %2368 = vmatpush.msra.mxu0 0.0
    %2369 = vmatpush.msra.mxu0 0.0
    %2370 = vmatpush.msra.mxu0 0.0
    %2371 = vmatpush.msra.mxu0 0.0
    %2372 = vmatpush.msra.mxu0 0.0
    %2373 = vmatpush.msra.mxu0 0.0
    %2374 = vmatpush.msra.mxu0 0.0
    %2375 = vmatpush.msra.mxu0 0.0
    %2376 = vmatpush.msra.mxu0 0.0
    %2377 = vmatpush.msra.mxu0 0.0
    %2378 = vmatpush.msra.mxu0 0.0
    %2379 = vmatpush.msra.mxu0 0.0
    %2380 = vmatpush.msra.mxu0 0.0
    %2381 = vmatpush.msra.mxu0 0.0
    %v2382 = vand.u32 %v1922, 4294901760
    %2383 = vmatpush.msra.mxu0 %v2382
    %v2384 = vand.u32 %v2219, 4294901760
    %v2385 = vsub.f32 %v2219, %v2384
    %v2386 = vand.u32 %v2385, 4294901760
    %v2387 = vsub.f32 %v2385, %v2386
    %v2388 = vand.u32 %v2387, 4294901760
    %2389 = vmatmul.f32.gmra.mxu0 %v2388
    %v2390 = vpop.f32.mrf.mxu0
    %v2391 = vadd.f32 0.0, %v2390
    %2392 = vdwg.mxu0
    %2393 = vmatpush.msra.mxu0 0.0
    %2394 = vmatpush.msra.mxu0 0.0
    %2395 = vmatpush.msra.mxu0 0.0
    %2396 = vmatpush.msra.mxu0 0.0
    %2397 = vmatpush.msra.mxu0 0.0
    %2398 = vmatpush.msra.mxu0 0.0
    %2399 = vmatpush.msra.mxu0 0.0
    %2400 = vmatpush.msra.mxu0 0.0
    %2401 = vmatpush.msra.mxu0 0.0
    %2402 = vmatpush.msra.mxu0 0.0
    %2403 = vmatpush.msra.mxu0 0.0
    %2404 = vmatpush.msra.mxu0 0.0
    %2405 = vmatpush.msra.mxu0 0.0
    %2406 = vmatpush.msra.mxu0 0.0
    %2407 = vmatpush.msra.mxu0 0.0
    %v2408 = vand.u32 %v1922, 4294901760
    %v2409 = vsub.f32 %v1922, %v2408
    %v2410 = vand.u32 %v2409, 4294901760
    %v2411 = vsub.f32 %v2409, %v2410
    %v2412 = vand.u32 %v2411, 4294901760
    %2413 = vmatpush.msra.mxu0 %v2412
    %v2414 = vand.u32 %v2219, 4294901760
    %2415 = vmatmul.f32.gmra.mxu0 %v2414
    %v2416 = vpop.f32.mrf.mxu0
    %v2417 = vadd.f32 %v2391, %v2416
    %2418 = vdwg.mxu0
    %2419 = vmatpush.msra.mxu0 0.0
    %2420 = vmatpush.msra.mxu0 0.0
    %2421 = vmatpush.msra.mxu0 0.0
    %2422 = vmatpush.msra.mxu0 0.0
    %2423 = vmatpush.msra.mxu0 0.0
    %2424 = vmatpush.msra.mxu0 0.0
    %2425 = vmatpush.msra.mxu0 0.0
    %2426 = vmatpush.msra.mxu0 0.0
    %2427 = vmatpush.msra.mxu0 0.0
    %2428 = vmatpush.msra.mxu0 0.0
    %2429 = vmatpush.msra.mxu0 0.0
    %2430 = vmatpush.msra.mxu0 0.0
    %2431 = vmatpush.msra.mxu0 0.0
    %2432 = vmatpush.msra.mxu0 0.0
    %2433 = vmatpush.msra.mxu0 0.0
    %v2434 = vand.u32 %v1922, 4294901760
    %v2435 = vsub.f32 %v1922, %v2434
    %2436 = vmatpush.msra.mxu0 %v2435
    %v2437 = vand.u32 %v2219, 4294901760
    %v2438 = vsub.f32 %v2219, %v2437
    %2439 = vmatmul.f32.gmra.mxu0 %v2438
    %v2440 = vpop.f32.mrf.mxu0
    %v2441 = vadd.f32 %v2417, %v2440
    %2442 = vdwg.mxu0
    %2443 = vmatpush.msra.mxu0 0.0
    %2444 = vmatpush.msra.mxu0 0.0
    %2445 = vmatpush.msra.mxu0 0.0
    %2446 = vmatpush.msra.mxu0 0.0
    %2447 = vmatpush.msra.mxu0 0.0
    %2448 = vmatpush.msra.mxu0 0.0
    %2449 = vmatpush.msra.mxu0 0.0
    %2450 = vmatpush.msra.mxu0 0.0
    %2451 = vmatpush.msra.mxu0 0.0
    %2452 = vmatpush.msra.mxu0 0.0
    %2453 = vmatpush.msra.mxu0 0.0
    %2454 = vmatpush.msra.mxu0 0.0
    %2455 = vmatpush.msra.mxu0 0.0
    %2456 = vmatpush.msra.mxu0 0.0
    %2457 = vmatpush.msra.mxu0 0.0
    %v2458 = vand.u32 %v1922, 4294901760
    %2459 = vmatpush.msra.mxu0 %v2458
    %v2460 = vand.u32 %v2219, 4294901760
    %v2461 = vsub.f32 %v2219, %v2460
    %v2462 = vand.u32 %v2461, 4294901760
    %2463 = vmatmul.f32.gmra.mxu0 %v2462
    %v2464 = vpop.f32.mrf.mxu0
    %v2465 = vadd.f32 %v2441, %v2464
    %2466 = vdwg.mxu0
    %2467 = vmatpush.msra.mxu0 0.0
    %2468 = vmatpush.msra.mxu0 0.0
    %2469 = vmatpush.msra.mxu0 0.0
    %2470 = vmatpush.msra.mxu0 0.0
    %2471 = vmatpush.msra.mxu0 0.0
    %2472 = vmatpush.msra.mxu0 0.0
    %2473 = vmatpush.msra.mxu0 0.0
    %2474 = vmatpush.msra.mxu0 0.0
    %2475 = vmatpush.msra.mxu0 0.0
    %2476 = vmatpush.msra.mxu0 0.0
    %2477 = vmatpush.msra.mxu0 0.0
    %2478 = vmatpush.msra.mxu0 0.0
    %2479 = vmatpush.msra.mxu0 0.0
    %2480 = vmatpush.msra.mxu0 0.0
    %2481 = vmatpush.msra.mxu0 0.0
    %v2482 = vand.u32 %v1922, 4294901760
    %v2483 = vsub.f32 %v1922, %v2482
    %v2484 = vand.u32 %v2483, 4294901760
    %2485 = vmatpush.msra.mxu0 %v2484
    %v2486 = vand.u32 %v2219, 4294901760
    %2487 = vmatmul.f32.gmra.mxu0 %v2486
    %v2488 = vpop.f32.mrf.mxu0
    %v2489 = vadd.f32 %v2465, %v2488
    %2490 = vdwg.mxu0
    %2491 = vmatpush.msra.mxu0 0.0
    %2492 = vmatpush.msra.mxu0 0.0
    %2493 = vmatpush.msra.mxu0 0.0
    %2494 = vmatpush.msra.mxu0 0.0
    %2495 = vmatpush.msra.mxu0 0.0
    %2496 = vmatpush.msra.mxu0 0.0
    %2497 = vmatpush.msra.mxu0 0.0
    %2498 = vmatpush.msra.mxu0 0.0
    %2499 = vmatpush.msra.mxu0 0.0
    %2500 = vmatpush.msra.mxu0 0.0
    %2501 = vmatpush.msra.mxu0 0.0
    %2502 = vmatpush.msra.mxu0 0.0
    %2503 = vmatpush.msra.mxu0 0.0
    %2504 = vmatpush.msra.mxu0 0.0
    %2505 = vmatpush.msra.mxu0 0.0
    %v2506 = vand.u32 %v1922, 4294901760
    %2507 = vmatpush.msra.mxu0 %v2506
    %v2508 = vand.u32 %v2219, 4294901760
    %2509 = vmatmul.f32.gmra.mxu0 %v2508
    %v2510 = vpop.f32.mrf.mxu0
    %v2511 = vadd.f32 %v2489, %v2510
    %2512 = vdwg.mxu0
    %v2513 = vperm.slane %v2070, 0
    %v2514 = vperm.slane %v2216, 0
    %v2515 = vmul.f32 %v1530, %v2513
    %v2516 = vmul.f32 %v1531, %v2514
    %v2517 = vmul.f32 %v1532, %v2513
    %v2518 = vmul.f32 %v1533, %v2514
    %v2519 = vmul.f32 %v1534, %v2513
    %v2520 = vmul.f32 %v1535, %v2514
    %v2521 = vmul.f32 %v1536, %v2513
    %v2522 = vmul.f32 %v1537, %v2514
    %v2523 = vmul.f32 %v1538, %v2513
    %v2524 = vmul.f32 %v1539, %v2514
    %v2525 = vmul.f32 %v1540, %v2513
    %v2526 = vmul.f32 %v1541, %v2514
    %v2527 = vmul.f32 %v1542, %v2513
    %v2528 = vmul.f32 %v1543, %v2514
    %v2529 = vmul.f32 %v1544, %v2513
    %v2530 = vmul.f32 %v1545, %v2514
    %v2531 = vmul.f32 %v1546, %v2513
    %v2532 = vmul.f32 %v1547, %v2514
    %v2533 = vperm.slane %v2365, 0
    %v2534 = vperm.slane %v2511, 0
    %v2535 = vadd.f32 %v2515, %v2533
    %v2536 = vadd.f32 %v2516, %v2534
    %v2537 = vadd.f32 %v2517, %v2533
    %v2538 = vadd.f32 %v2518, %v2534
    %v2539 = vadd.f32 %v2519, %v2533
    %v2540 = vadd.f32 %v2520, %v2534
    %v2541 = vadd.f32 %v2521, %v2533
    %v2542 = vadd.f32 %v2522, %v2534
    %v2543 = vadd.f32 %v2523, %v2533
    %v2544 = vadd.f32 %v2524, %v2534
    %v2545 = vadd.f32 %v2525, %v2533
    %v2546 = vadd.f32 %v2526, %v2534
    %v2547 = vadd.f32 %v2527, %v2533
    %v2548 = vadd.f32 %v2528, %v2534
    %v2549 = vadd.f32 %v2529, %v2533
    %v2550 = vadd.f32 %v2530, %v2534
    %v2551 = vadd.f32 %v2531, %v2533
    %v2552 = vadd.f32 %v2532, %v2534
    %v2553 = vmax.f32 %v2535, 0.0
    %v2554 = vmax.f32 %v2536, 0.0
    %v2555 = vmax.f32 %v2537, 0.0
    %v2556 = vmax.f32 %v2538, 0.0
    %v2557 = vmax.f32 %v2539, 0.0
    %v2558 = vmax.f32 %v2540, 0.0
    %v2559 = vmax.f32 %v2541, 0.0
    %v2560 = vmax.f32 %v2542, 0.0
    %v2561 = vmax.f32 %v2543, 0.0
    %v2562 = vmax.f32 %v2544, 0.0
    %v2563 = vmax.f32 %v2545, 0.0
    %v2564 = vmax.f32 %v2546, 0.0
    %v2565 = vmax.f32 %v2547, 0.0
    %v2566 = vmax.f32 %v2548, 0.0
    %v2567 = vmax.f32 %v2549, 0.0
    %v2568 = vmax.f32 %v2550, 0.0
    %v2569 = vmax.f32 %v2551, 0.0
    %v2570 = vmax.f32 %v2552, 0.0
    %v2571 = vmul.f32 %v2553, %v1488
    %v2572 = vmul.f32 %v2554, %v1488
    %v2573 = vmul.f32 %v2555, %v1493
    %v2574 = vmul.f32 %v2556, %v1493
    %v2575 = vmul.f32 %v2557, %v1498
    %v2576 = vmul.f32 %v2558, %v1498
    %v2577 = vmul.f32 %v2559, %v1503
    %v2578 = vmul.f32 %v2560, %v1503
    %v2579 = vmul.f32 %v2561, %v1508
    %v2580 = vmul.f32 %v2562, %v1508
    %v2581 = vmul.f32 %v2563, %v1513
    %v2582 = vmul.f32 %v2564, %v1513
    %v2583 = vmul.f32 %v2565, %v1518
    %v2584 = vmul.f32 %v2566, %v1518
    %v2585 = vmul.f32 %v2567, %v1523
    %v2586 = vmul.f32 %v2568, %v1523
    %v2587 = vmul.f32 %v2569, %v1528
    %v2588 = vmul.f32 %v2570, %v1528
    %v2589 = vlaneseq
    %vm2590 = vcmp.ge.s32.totalorder %v2589, 0
    %vm2591 = vcmp.lt.s32.totalorder %v2589, 256
    %vm2592 = vmand %vm2590, %vm2591
    %2593 = vst.msk [vmem:[#allocation2] ss:$8 sm:$0x3] %vm2592, 0.0
    %2594 = vst.msk [vmem:[#allocation2] ss:$8 sm:$0x0] %vm2592, 0.0
    %s2595 = scalar_lea.vmem [#allocation2], 131
    %2596 = vst.msk [vmem:[%s2595] ss:$8 sm:$0x3] %vm2592, 0.0
    %2597 = vst.msk [vmem:[%s2595] ss:$8 sm:$0x0] %vm2592, 0.0
    %vm2616 = vcmask 1040384
    %v2617 = vrot.slane %v2571, 7
    %v2618 = vrot.slane %v2572, 7
    %v2619 = vrot.slane %v2573, 7
    %v2620 = vsel %vm2616, %v2617, %v2619
    %v2621 = vrot.slane %v2574, 7
    %v2622 = vsel %vm2616, %v2618, %v2621
    %v2623 = vrot.slane %v2575, 7
    %v2624 = vsel %vm2616, %v2619, %v2623
    %v2625 = vrot.slane %v2576, 7
    %v2626 = vsel %vm2616, %v2621, %v2625
    %v2627 = vrot.slane %v2577, 7
    %v2628 = vsel %vm2616, %v2623, %v2627
    %v2629 = vrot.slane %v2578, 7
    %v2630 = vsel %vm2616, %v2625, %v2629
    %v2631 = vrot.slane %v2579, 7
    %v2632 = vsel %vm2616, %v2627, %v2631
    %v2633 = vrot.slane %v2580, 7
    %v2634 = vsel %vm2616, %v2629, %v2633
    %v2635 = vrot.slane %v2581, 7
    %v2636 = vsel %vm2616, %v2631, %v2635
    %v2637 = vrot.slane %v2582, 7
    %v2638 = vsel %vm2616, %v2633, %v2637
    %v2639 = vrot.slane %v2583, 7
    %v2640 = vsel %vm2616, %v2635, %v2639
    %v2641 = vrot.slane %v2584, 7
    %v2642 = vsel %vm2616, %v2637, %v2641
    %v2643 = vrot.slane %v2585, 7
    %v2644 = vsel %vm2616, %v2639, %v2643
    %v2645 = vrot.slane %v2586, 7
    %v2646 = vsel %vm2616, %v2641, %v2645
    %v2647 = vrot.slane %v2587, 7
    %v2648 = vsel %vm2616, %v2643, %v2647
    %v2649 = vrot.slane %v2588, 7
    %v2650 = vsel %vm2616, %v2645, %v2649
    %2669 = vst [vmem:[#allocation2] sm:$0xfe] %v2617
    %2670 = vst [vmem:[#allocation2 + $0x8] sm:$0xfe] %v2618
    %2671 = vst [vmem:[#allocation2 + $0x10] sm:$0xff] %v2620
    %2672 = vst [vmem:[#allocation2 + $0x18] sm:$0xff] %v2622
    %2673 = vst [vmem:[#allocation2 + $0x20] sm:$0xff] %v2624
    %2674 = vst [vmem:[#allocation2 + $0x28] sm:$0xff] %v2626
    %2675 = vst [vmem:[#allocation2 + $0x30] sm:$0xff] %v2628
    %2676 = vst [vmem:[#allocation2 + $0x38] sm:$0xff] %v2630
    %2677 = vst [vmem:[#allocation2 + $0x40] sm:$0xff] %v2632
    %2678 = vst [vmem:[#allocation2 + $0x48] sm:$0xff] %v2634
    %2679 = vst [vmem:[#allocation2 + $0x50] sm:$0xff] %v2636
    %2680 = vst [vmem:[#allocation2 + $0x58] sm:$0xff] %v2638
    %2681 = vst [vmem:[#allocation2 + $0x60] sm:$0xff] %v2640
    %2682 = vst [vmem:[#allocation2 + $0x68] sm:$0xff] %v2642
    %2683 = vst [vmem:[#allocation2 + $0x70] sm:$0xff] %v2644
    %2684 = vst [vmem:[#allocation2 + $0x78] sm:$0xff] %v2646
    %2685 = vst [vmem:[#allocation2 + $0x80] sm:$0x7] %v2648
    %2686 = vst [vmem:[#allocation2 + $0x88] sm:$0x7] %v2650
    %v2687 = vld [vmem:[#allocation2] sm:$0xff]
    %v2688 = vld [vmem:[#allocation2 + $0x8] sm:$0xff]
    %v2689 = vld [vmem:[#allocation2 + $0x10] sm:$0xff]
    %v2690 = vld [vmem:[#allocation2 + $0x18] sm:$0xff]
    %v2691 = vld [vmem:[#allocation2 + $0x20] sm:$0xff]
    %v2692 = vld [vmem:[#allocation2 + $0x28] sm:$0xff]
    %v2693 = vld [vmem:[#allocation2 + $0x30] sm:$0xff]
    %v2694 = vld [vmem:[#allocation2 + $0x38] sm:$0xff]
    %v2695 = vld [vmem:[#allocation2 + $0x40] sm:$0xff]
    %v2696 = vld [vmem:[#allocation2 + $0x48] sm:$0xff]
    %v2697 = vld [vmem:[#allocation2 + $0x50] sm:$0xff]
    %v2698 = vld [vmem:[#allocation2 + $0x58] sm:$0xff]
    %v2699 = vld [vmem:[#allocation2 + $0x60] sm:$0xff]
    %v2700 = vld [vmem:[#allocation2 + $0x68] sm:$0xff]
    %v2701 = vld [vmem:[#allocation2 + $0x70] sm:$0xff]
    %v2702 = vld [vmem:[#allocation2 + $0x78] sm:$0xff]
    %v2703 = vld [vmem:[#allocation2 + $0x80] sm:$0x3]
    %v2704 = vld [vmem:[#allocation2 + $0x88] sm:$0x3]
    %v2705 = vld [vmem:[#allocation6] sm:$0xff]
    %v2706 = vld [vmem:[#allocation6 + $0x8] sm:$0xff]
    %v2707 = vld [vmem:[#allocation6 + $0x10] sm:$0xff]
    %v2708 = vld [vmem:[#allocation6 + $0x18] sm:$0xff]
    %v2709 = vld [vmem:[#allocation6 + $0x20] sm:$0xff]
    %v2710 = vld [vmem:[#allocation6 + $0x28] sm:$0xff]
    %v2711 = vld [vmem:[#allocation6 + $0x30] sm:$0xff]
    %v2712 = vld [vmem:[#allocation6 + $0x38] sm:$0xff]
    %v2713 = vld [vmem:[#allocation6 + $0x40] sm:$0xff]
    %v2714 = vld [vmem:[#allocation6 + $0x48] sm:$0xff]
    %v2715 = vld [vmem:[#allocation6 + $0x50] sm:$0xff]
    %v2716 = vld [vmem:[#allocation6 + $0x58] sm:$0xff]
    %v2717 = vld [vmem:[#allocation6 + $0x60] sm:$0xff]
    %v2718 = vld [vmem:[#allocation6 + $0x68] sm:$0xff]
    %v2719 = vld [vmem:[#allocation6 + $0x70] sm:$0xff]
    %v2720 = vld [vmem:[#allocation6 + $0x78] sm:$0xff]
    %v2721 = vld [vmem:[#allocation6 + $0x80] sm:$0xff]
    %v2722 = vld [vmem:[#allocation6 + $0x88] sm:$0xff]
    %v2723 = vld [vmem:[#allocation6 + $0x90] sm:$0xff]
    %v2724 = vld [vmem:[#allocation6 + $0x98] sm:$0xff]
    %v2725 = vld [vmem:[#allocation6 + $0xa0] sm:$0xff]
    %v2726 = vld [vmem:[#allocation6 + $0xa8] sm:$0xff]
    %v2727 = vld [vmem:[#allocation6 + $0xb0] sm:$0xff]
    %v2728 = vld [vmem:[#allocation6 + $0xb8] sm:$0xff]
    %v2729 = vld [vmem:[#allocation6 + $0xc0] sm:$0xff]
    %v2730 = vld [vmem:[#allocation6 + $0xc8] sm:$0xff]
    %v2731 = vld [vmem:[#allocation6 + $0xd0] sm:$0xff]
    %v2732 = vld [vmem:[#allocation6 + $0xd8] sm:$0xff]
    %v2733 = vld [vmem:[#allocation6 + $0xe0] sm:$0xff]
    %v2734 = vld [vmem:[#allocation6 + $0xe8] sm:$0xff]
    %v2735 = vld [vmem:[#allocation6 + $0xf0] sm:$0xff]
    %v2736 = vld [vmem:[#allocation6 + $0xf8] sm:$0xff]
    %v2737 = vpack.c.bf16 %v2689, %v2687
    %v2738 = vpack.c.bf16 %v2690, %v2688
    %v2739 = vpack.c.bf16 %v2693, %v2691
    %v2740 = vpack.c.bf16 %v2694, %v2692
    %v2741 = vpack.c.bf16 %v2697, %v2695
    %v2742 = vpack.c.bf16 %v2698, %v2696
    %v2743 = vpack.c.bf16 %v2701, %v2699
    %v2744 = vpack.c.bf16 %v2702, %v2700
    %v2745 = vpack.c.bf16 %v2703, %v2703
    %v2746 = vpack.c.bf16 %v2704, %v2704
    %v2747 = vld [vmem:[#allocation2] sm:$0xfe]
    %v2748 = vld [vmem:[#allocation2 + $0x8] sm:$0xfe]
    %v2749 = vld [vmem:[#allocation2 + $0x80] sm:$0x7]
    %v2750 = vld [vmem:[#allocation2 + $0x88] sm:$0x7]
    %s2751 = scalar_lea.vmem [#allocation6], 256
    %v2752 = vld [vmem:[%s2751] sm:$0xff]
    %v2753 = vld [vmem:[%s2751 + $0x8] sm:$0xff]
    %v2754 = vld [vmem:[%s2751 + $0x10] sm:$0xff]
    %v2755 = vld [vmem:[%s2751 + $0x18] sm:$0xff]
    %v2756 = vld [vmem:[%s2751 + $0x20] sm:$0xff]
    %v2757 = vld [vmem:[%s2751 + $0x28] sm:$0xff]
    %v2758 = vld [vmem:[%s2751 + $0x30] sm:$0xff]
    %v2759 = vld [vmem:[%s2751 + $0x38] sm:$0xff]
    %v2760 = vld [vmem:[%s2751 + $0x40] sm:$0xff]
    %v2761 = vld [vmem:[%s2751 + $0x48] sm:$0xff]
    %v2762 = vld [vmem:[%s2751 + $0x50] sm:$0xff]
    %v2763 = vld [vmem:[%s2751 + $0x58] sm:$0xff]
    %v2764 = vld [vmem:[%s2751 + $0x60] sm:$0xff]
    %v2765 = vld [vmem:[%s2751 + $0x68] sm:$0xff]
    %v2766 = vld [vmem:[%s2751 + $0x70] sm:$0xff]
    %v2767 = vld [vmem:[%s2751 + $0x78] sm:$0xff]
    %v2768 = vld [vmem:[%s2751 + $0x80] sm:$0xff]
    %v2769 = vld [vmem:[%s2751 + $0x88] sm:$0xff]
    %v2770 = vld [vmem:[%s2751 + $0x90] sm:$0xff]
    %v2771 = vld [vmem:[%s2751 + $0x98] sm:$0xff]
    %v2772 = vld [vmem:[%s2751 + $0xa0] sm:$0xff]
    %v2773 = vld [vmem:[%s2751 + $0xa8] sm:$0xff]
    %v2774 = vld [vmem:[%s2751 + $0xb0] sm:$0xff]
    %v2775 = vld [vmem:[%s2751 + $0xb8] sm:$0xff]
    %v2776 = vld [vmem:[%s2751 + $0xc0] sm:$0xff]
    %v2777 = vld [vmem:[%s2751 + $0xc8] sm:$0xff]
    %v2778 = vld [vmem:[%s2751 + $0xd0] sm:$0xff]
    %v2779 = vld [vmem:[%s2751 + $0xd8] sm:$0xff]
    %v2780 = vld [vmem:[%s2751 + $0xe0] sm:$0xff]
    %v2781 = vld [vmem:[%s2751 + $0xe8] sm:$0xff]
    %v2782 = vld [vmem:[%s2751 + $0xf0] sm:$0xff]
    %v2783 = vld [vmem:[%s2751 + $0xf8] sm:$0xff]
    %v2784 = vpack.c.bf16 %v2689, %v2747
    %v2785 = vpack.c.bf16 %v2690, %v2748
    %v2786 = vpack.c.bf16 %v2749, %v2749
    %v2787 = vpack.c.bf16 %v2750, %v2750
    %v2789 = vshrl.u32 %v2784, 16
    %v2791 = vshll.u32 %v2784, 16
    %v2793 = vrot.slane %v2791, 1
    %v2794 = vor.u32 %v2789, %v2793
    %v2796 = vshll.u32 %v2739, 16
    %v2798 = vrot.slane %v2796, 1
    %v2799 = vsel %vm430, %v2794, %v2798
    %v2801 = vshrl.u32 %v2785, 16
    %v2803 = vshll.u32 %v2785, 16
    %v2805 = vrot.slane %v2803, 1
    %v2806 = vor.u32 %v2801, %v2805
    %v2808 = vshll.u32 %v2740, 16
    %v2810 = vrot.slane %v2808, 1
    %v2811 = vsel %vm430, %v2806, %v2810
    %v2812 = vshrl.u32 %v2739, 16
    %v2814 = vor.u32 %v2812, %v2798
    %v2816 = vshll.u32 %v2741, 16
    %v2818 = vrot.slane %v2816, 1
    %v2819 = vsel %vm430, %v2814, %v2818
    %v2820 = vshrl.u32 %v2740, 16
    %v2822 = vor.u32 %v2820, %v2810
    %v2824 = vshll.u32 %v2742, 16
    %v2826 = vrot.slane %v2824, 1
    %v2827 = vsel %vm430, %v2822, %v2826
    %v2828 = vshrl.u32 %v2741, 16
    %v2830 = vor.u32 %v2828, %v2818
    %v2832 = vshll.u32 %v2743, 16
    %v2834 = vrot.slane %v2832, 1
    %v2835 = vsel %vm430, %v2830, %v2834
    %v2836 = vshrl.u32 %v2742, 16
    %v2838 = vor.u32 %v2836, %v2826
    %v2840 = vshll.u32 %v2744, 16
    %v2842 = vrot.slane %v2840, 1
    %v2843 = vsel %vm430, %v2838, %v2842
    %v2844 = vshrl.u32 %v2743, 16
    %v2846 = vor.u32 %v2844, %v2834
    %v2848 = vshll.u32 %v2786, 16
    %v2850 = vrot.slane %v2848, 1
    %v2851 = vsel %vm430, %v2846, %v2850
    %v2852 = vshrl.u32 %v2744, 16
    %v2854 = vor.u32 %v2852, %v2842
    %v2856 = vshll.u32 %v2787, 16
    %v2858 = vrot.slane %v2856, 1
    %v2859 = vsel %vm430, %v2854, %v2858
    %v2860 = vshrl.u32 %v2786, 16
    %v2862 = vor.u32 %v2860, %v2850
    %v2863 = vshrl.u32 %v2787, 16
    %v2865 = vor.u32 %v2863, %v2858
    %v2908 = vunpack.c.l.b16 %v2752
    %v2909 = vunpack.c.h.b16 %v2752
    %v2910 = vunpack.c.l.b16 %v2753
    %v2911 = vunpack.c.h.b16 %v2753
    %v2912 = vunpack.c.l.b16 %v2754
    %v2913 = vunpack.c.h.b16 %v2754
    %v2914 = vunpack.c.l.b16 %v2755
    %v2915 = vunpack.c.h.b16 %v2755
    %v2916 = vunpack.c.l.b16 %v2756
    %v2917 = vunpack.c.h.b16 %v2756
    %v2918 = vunpack.c.l.b16 %v2757
    %v2919 = vunpack.c.h.b16 %v2757
    %v2920 = vunpack.c.l.b16 %v2758
    %v2921 = vunpack.c.h.b16 %v2758
    %v2922 = vunpack.c.l.b16 %v2759
    %v2923 = vunpack.c.h.b16 %v2759
    %v2924 = vunpack.c.l.b16 %v2760
    %v2925 = vunpack.c.h.b16 %v2760
    %v2926 = vunpack.c.l.b16 %v2761
    %v2927 = vunpack.c.h.b16 %v2761
    %v2928 = vunpack.c.l.b16 %v2762
    %v2929 = vunpack.c.h.b16 %v2762
    %v2930 = vunpack.c.l.b16 %v2763
    %v2931 = vunpack.c.h.b16 %v2763
    %v2932 = vunpack.c.l.b16 %v2764
    %v2933 = vunpack.c.h.b16 %v2764
    %v2934 = vunpack.c.l.b16 %v2765
    %v2935 = vunpack.c.h.b16 %v2765
    %v2936 = vunpack.c.l.b16 %v2766
    %v2937 = vunpack.c.h.b16 %v2766
    %v2938 = vunpack.c.l.b16 %v2767
    %v2939 = vunpack.c.h.b16 %v2767
    %v2940 = vunpack.c.l.b16 %v2768
    %v2941 = vunpack.c.h.b16 %v2768
    %v2942 = vunpack.c.l.b16 %v2769
    %v2943 = vunpack.c.h.b16 %v2769
    %v2944 = vunpack.c.l.b16 %v2770
    %v2945 = vunpack.c.h.b16 %v2770
    %v2946 = vunpack.c.l.b16 %v2771
    %v2947 = vunpack.c.h.b16 %v2771
    %v2948 = vunpack.c.l.b16 %v2772
    %v2949 = vunpack.c.h.b16 %v2772
    %v2950 = vunpack.c.l.b16 %v2773
    %v2951 = vunpack.c.h.b16 %v2773
    %v2952 = vunpack.c.l.b16 %v2774
    %v2953 = vunpack.c.h.b16 %v2774
    %v2954 = vunpack.c.l.b16 %v2775
    %v2955 = vunpack.c.h.b16 %v2775
    %v2956 = vunpack.c.l.b16 %v2776
    %v2957 = vunpack.c.h.b16 %v2776
    %v2958 = vunpack.c.l.b16 %v2777
    %v2959 = vunpack.c.h.b16 %v2777
    %v2960 = vunpack.c.l.b16 %v2778
    %v2961 = vunpack.c.h.b16 %v2778
    %v2962 = vunpack.c.l.b16 %v2779
    %v2963 = vunpack.c.h.b16 %v2779
    %v2964 = vunpack.c.l.b16 %v2780
    %v2965 = vunpack.c.h.b16 %v2780
    %v2966 = vunpack.c.l.b16 %v2781
    %v2967 = vunpack.c.h.b16 %v2781
    %v2968 = vunpack.c.l.b16 %v2782
    %v2969 = vunpack.c.h.b16 %v2782
    %v2970 = vunpack.c.l.b16 %v2783
    %v2971 = vunpack.c.h.b16 %v2783
    %v2972 = vpack.c.b16 %v2910, %v2908
    %v2973 = vpack.c.b16 %v2911, %v2909
    %v2974 = vpack.c.b16 %v2914, %v2912
    %v2975 = vpack.c.b16 %v2915, %v2913
    %v2976 = vpack.c.b16 %v2918, %v2916
    %v2977 = vpack.c.b16 %v2919, %v2917
    %v2978 = vpack.c.b16 %v2922, %v2920
    %v2979 = vpack.c.b16 %v2923, %v2921
    %v2980 = vpack.c.b16 %v2926, %v2924
    %v2981 = vpack.c.b16 %v2927, %v2925
    %v2982 = vpack.c.b16 %v2930, %v2928
    %v2983 = vpack.c.b16 %v2931, %v2929
    %v2984 = vpack.c.b16 %v2934, %v2932
    %v2985 = vpack.c.b16 %v2935, %v2933
    %v2986 = vpack.c.b16 %v2938, %v2936
    %v2987 = vpack.c.b16 %v2939, %v2937
    %v2988 = vpack.c.b16 %v2942, %v2940
    %v2989 = vpack.c.b16 %v2943, %v2941
    %v2990 = vpack.c.b16 %v2946, %v2944
    %v2991 = vpack.c.b16 %v2947, %v2945
    %v2992 = vpack.c.b16 %v2950, %v2948
    %v2993 = vpack.c.b16 %v2951, %v2949
    %v2994 = vpack.c.b16 %v2954, %v2952
    %v2995 = vpack.c.b16 %v2955, %v2953
    %v2996 = vpack.c.b16 %v2958, %v2956
    %v2997 = vpack.c.b16 %v2959, %v2957
    %v2998 = vpack.c.b16 %v2962, %v2960
    %v2999 = vpack.c.b16 %v2963, %v2961
    %v3000 = vpack.c.b16 %v2966, %v2964
    %v3001 = vpack.c.b16 %v2967, %v2965
    %v3002 = vpack.c.b16 %v2970, %v2968
    %v3003 = vpack.c.b16 %v2971, %v2969
    %3036 = vmatpush.bf16.msra.mxu0 %v2986
    %3037 = vmatpush.bf16.msra.mxu0 %v2984
    %3038 = vmatpush.bf16.msra.mxu0 %v2982
    %3039 = vmatpush.bf16.msra.mxu0 %v2980
    %3040 = vmatpush.bf16.msra.mxu0 %v2978
    %3041 = vmatpush.bf16.msra.mxu0 %v2976
    %3042 = vmatpush.bf16.msra.mxu0 %v2974
    %3043 = vmatpush.bf16.msra.mxu0 %v2972
    %3044 = vmatmul.bf16.gmra.mxu0 %v2799
    %v3045 = vpop.f32.mrf.mxu0
    %v3046 = vadd.f32 0.0, %v3045
    %v3047 = vpop.f32.mrf.mxu0
    %v3048 = vadd.f32 0.0, %v3047
    %3049 = vmatmul.bf16.gmra.mxu0 %v2819
    %v3050 = vpop.f32.mrf.mxu0
    %v3051 = vadd.f32 0.0, %v3050
    %v3052 = vpop.f32.mrf.mxu0
    %v3053 = vadd.f32 0.0, %v3052
    %3054 = vmatmul.bf16.gmra.mxu0 %v2835
    %v3055 = vpop.f32.mrf.mxu0
    %v3056 = vadd.f32 0.0, %v3055
    %v3057 = vpop.f32.mrf.mxu0
    %v3058 = vadd.f32 0.0, %v3057
    %3059 = vmatmul.bf16.gmra.mxu0 %v2851
    %v3060 = vpop.f32.mrf.mxu0
    %v3061 = vadd.f32 0.0, %v3060
    %v3062 = vpop.f32.mrf.mxu0
    %v3063 = vadd.f32 0.0, %v3062
    %3064 = vmatmul.bf16.gmra.mxu0 %v2862
    %v3065 = vpop.f32.mrf.mxu0
    %v3066 = vadd.f32 0.0, %v3065
    %v3067 = vpop.f32.mrf.mxu0
    %3068 = vdwg.mxu0
    %3069 = vmatpush.bf16.msra.mxu0 %v3002
    %3070 = vmatpush.bf16.msra.mxu0 %v3000
    %3071 = vmatpush.bf16.msra.mxu0 %v2998
    %3072 = vmatpush.bf16.msra.mxu0 %v2996
    %3073 = vmatpush.bf16.msra.mxu0 %v2994
    %3074 = vmatpush.bf16.msra.mxu0 %v2992
    %3075 = vmatpush.bf16.msra.mxu0 %v2990
    %3076 = vmatpush.bf16.msra.mxu0 %v2988
    %3077 = vmatmul.bf16.gmra.mxu0 %v2811
    %v3078 = vpop.f32.mrf.mxu0
    %v3079 = vadd.f32 %v3046, %v3078
    %v3080 = vpop.f32.mrf.mxu0
    %v3081 = vadd.f32 %v3048, %v3080
    %3082 = vmatmul.bf16.gmra.mxu0 %v2827
    %v3083 = vpop.f32.mrf.mxu0
    %v3084 = vadd.f32 %v3051, %v3083
    %v3085 = vpop.f32.mrf.mxu0
    %v3086 = vadd.f32 %v3053, %v3085
    %3087 = vmatmul.bf16.gmra.mxu0 %v2843
    %v3088 = vpop.f32.mrf.mxu0
    %v3089 = vadd.f32 %v3056, %v3088
    %v3090 = vpop.f32.mrf.mxu0
    %v3091 = vadd.f32 %v3058, %v3090
    %3092 = vmatmul.bf16.gmra.mxu0 %v2859
    %v3093 = vpop.f32.mrf.mxu0
    %v3094 = vadd.f32 %v3061, %v3093
    %v3095 = vpop.f32.mrf.mxu0
    %v3096 = vadd.f32 %v3063, %v3095
    %3097 = vmatmul.bf16.gmra.mxu0 %v2865
    %v3098 = vpop.f32.mrf.mxu0
    %v3099 = vadd.f32 %v3066, %v3098
    %v3100 = vpop.f32.mrf.mxu0
    %3101 = vdwg.mxu0
    %3102 = vmatpush.bf16.msra.mxu0 %v2987
    %3103 = vmatpush.bf16.msra.mxu0 %v2985
    %3104 = vmatpush.bf16.msra.mxu0 %v2983
    %3105 = vmatpush.bf16.msra.mxu0 %v2981
    %3106 = vmatpush.bf16.msra.mxu0 %v2979
    %3107 = vmatpush.bf16.msra.mxu0 %v2977
    %3108 = vmatpush.bf16.msra.mxu0 %v2975
    %3109 = vmatpush.bf16.msra.mxu0 %v2973
    %3110 = vmatmul.bf16.gmra.mxu0 %v2799
    %v3111 = vpop.f32.mrf.mxu0
    %v3112 = vadd.f32 0.0, %v3111
    %v3113 = vpop.f32.mrf.mxu0
    %v3114 = vadd.f32 0.0, %v3113
    %3115 = vmatmul.bf16.gmra.mxu0 %v2819
    %v3116 = vpop.f32.mrf.mxu0
    %v3117 = vadd.f32 0.0, %v3116
    %v3118 = vpop.f32.mrf.mxu0
    %v3119 = vadd.f32 0.0, %v3118
    %3120 = vmatmul.bf16.gmra.mxu0 %v2835
    %v3121 = vpop.f32.mrf.mxu0
    %v3122 = vadd.f32 0.0, %v3121
    %v3123 = vpop.f32.mrf.mxu0
    %v3124 = vadd.f32 0.0, %v3123
    %3125 = vmatmul.bf16.gmra.mxu0 %v2851
    %v3126 = vpop.f32.mrf.mxu0
    %v3127 = vadd.f32 0.0, %v3126
    %v3128 = vpop.f32.mrf.mxu0
    %v3129 = vadd.f32 0.0, %v3128
    %3130 = vmatmul.bf16.gmra.mxu0 %v2862
    %v3131 = vpop.f32.mrf.mxu0
    %v3132 = vadd.f32 0.0, %v3131
    %v3133 = vpop.f32.mrf.mxu0
    %3134 = vdwg.mxu0
    %3135 = vmatpush.bf16.msra.mxu0 %v3003
    %3136 = vmatpush.bf16.msra.mxu0 %v3001
    %3137 = vmatpush.bf16.msra.mxu0 %v2999
    %3138 = vmatpush.bf16.msra.mxu0 %v2997
    %3139 = vmatpush.bf16.msra.mxu0 %v2995
    %3140 = vmatpush.bf16.msra.mxu0 %v2993
    %3141 = vmatpush.bf16.msra.mxu0 %v2991
    %3142 = vmatpush.bf16.msra.mxu0 %v2989
    %3143 = vmatmul.bf16.gmra.mxu0 %v2811
    %v3144 = vpop.f32.mrf.mxu0
    %v3145 = vadd.f32 %v3112, %v3144
    %v3146 = vpop.f32.mrf.mxu0
    %v3147 = vadd.f32 %v3114, %v3146
    %3148 = vmatmul.bf16.gmra.mxu0 %v2827
    %v3149 = vpop.f32.mrf.mxu0
    %v3150 = vadd.f32 %v3117, %v3149
    %v3151 = vpop.f32.mrf.mxu0
    %v3152 = vadd.f32 %v3119, %v3151
    %3153 = vmatmul.bf16.gmra.mxu0 %v2843
    %v3154 = vpop.f32.mrf.mxu0
    %v3155 = vadd.f32 %v3122, %v3154
    %v3156 = vpop.f32.mrf.mxu0
    %v3157 = vadd.f32 %v3124, %v3156
    %3158 = vmatmul.bf16.gmra.mxu0 %v2859
    %v3159 = vpop.f32.mrf.mxu0
    %v3160 = vadd.f32 %v3127, %v3159
    %v3161 = vpop.f32.mrf.mxu0
    %v3162 = vadd.f32 %v3129, %v3161
    %3163 = vmatmul.bf16.gmra.mxu0 %v2865
    %v3164 = vpop.f32.mrf.mxu0
    %v3165 = vadd.f32 %v3132, %v3164
    %v3166 = vpop.f32.mrf.mxu0
    %3167 = vdwg.mxu0
    %v3200 = vunpack.c.l.b16 %v2705
    %v3201 = vunpack.c.h.b16 %v2705
    %v3202 = vunpack.c.l.b16 %v2706
    %v3203 = vunpack.c.h.b16 %v2706
    %v3204 = vunpack.c.l.b16 %v2707
    %v3205 = vunpack.c.h.b16 %v2707
    %v3206 = vunpack.c.l.b16 %v2708
    %v3207 = vunpack.c.h.b16 %v2708
    %v3208 = vunpack.c.l.b16 %v2709
    %v3209 = vunpack.c.h.b16 %v2709
    %v3210 = vunpack.c.l.b16 %v2710
    %v3211 = vunpack.c.h.b16 %v2710
    %v3212 = vunpack.c.l.b16 %v2711
    %v3213 = vunpack.c.h.b16 %v2711
    %v3214 = vunpack.c.l.b16 %v2712
    %v3215 = vunpack.c.h.b16 %v2712
    %v3216 = vunpack.c.l.b16 %v2713
    %v3217 = vunpack.c.h.b16 %v2713
    %v3218 = vunpack.c.l.b16 %v2714
    %v3219 = vunpack.c.h.b16 %v2714
    %v3220 = vunpack.c.l.b16 %v2715
    %v3221 = vunpack.c.h.b16 %v2715
    %v3222 = vunpack.c.l.b16 %v2716
    %v3223 = vunpack.c.h.b16 %v2716
    %v3224 = vunpack.c.l.b16 %v2717
    %v3225 = vunpack.c.h.b16 %v2717
    %v3226 = vunpack.c.l.b16 %v2718
    %v3227 = vunpack.c.h.b16 %v2718
    %v3228 = vunpack.c.l.b16 %v2719
    %v3229 = vunpack.c.h.b16 %v2719
    %v3230 = vunpack.c.l.b16 %v2720
    %v3231 = vunpack.c.h.b16 %v2720
    %v3232 = vunpack.c.l.b16 %v2721
    %v3233 = vunpack.c.h.b16 %v2721
    %v3234 = vunpack.c.l.b16 %v2722
    %v3235 = vunpack.c.h.b16 %v2722
    %v3236 = vunpack.c.l.b16 %v2723
    %v3237 = vunpack.c.h.b16 %v2723
    %v3238 = vunpack.c.l.b16 %v2724
    %v3239 = vunpack.c.h.b16 %v2724
    %v3240 = vunpack.c.l.b16 %v2725
    %v3241 = vunpack.c.h.b16 %v2725
    %v3242 = vunpack.c.l.b16 %v2726
    %v3243 = vunpack.c.h.b16 %v2726
    %v3244 = vunpack.c.l.b16 %v2727
    %v3245 = vunpack.c.h.b16 %v2727
    %v3246 = vunpack.c.l.b16 %v2728
    %v3247 = vunpack.c.h.b16 %v2728
    %v3248 = vunpack.c.l.b16 %v2729
    %v3249 = vunpack.c.h.b16 %v2729
    %v3250 = vunpack.c.l.b16 %v2730
    %v3251 = vunpack.c.h.b16 %v2730
    %v3252 = vunpack.c.l.b16 %v2731
    %v3253 = vunpack.c.h.b16 %v2731
    %v3254 = vunpack.c.l.b16 %v2732
    %v3255 = vunpack.c.h.b16 %v2732
    %v3256 = vunpack.c.l.b16 %v2733
    %v3257 = vunpack.c.h.b16 %v2733
    %v3258 = vunpack.c.l.b16 %v2734
    %v3259 = vunpack.c.h.b16 %v2734
    %v3260 = vunpack.c.l.b16 %v2735
    %v3261 = vunpack.c.h.b16 %v2735
    %v3262 = vunpack.c.l.b16 %v2736
    %v3263 = vunpack.c.h.b16 %v2736
    %v3264 = vpack.c.b16 %v3202, %v3200
    %v3265 = vpack.c.b16 %v3203, %v3201
    %v3266 = vpack.c.b16 %v3206, %v3204
    %v3267 = vpack.c.b16 %v3207, %v3205
    %v3268 = vpack.c.b16 %v3210, %v3208
    %v3269 = vpack.c.b16 %v3211, %v3209
    %v3270 = vpack.c.b16 %v3214, %v3212
    %v3271 = vpack.c.b16 %v3215, %v3213
    %v3272 = vpack.c.b16 %v3218, %v3216
    %v3273 = vpack.c.b16 %v3219, %v3217
    %v3274 = vpack.c.b16 %v3222, %v3220
    %v3275 = vpack.c.b16 %v3223, %v3221
    %v3276 = vpack.c.b16 %v3226, %v3224
    %v3277 = vpack.c.b16 %v3227, %v3225
    %v3278 = vpack.c.b16 %v3230, %v3228
    %v3279 = vpack.c.b16 %v3231, %v3229
    %v3280 = vpack.c.b16 %v3234, %v3232
    %v3281 = vpack.c.b16 %v3235, %v3233
    %v3282 = vpack.c.b16 %v3238, %v3236
    %v3283 = vpack.c.b16 %v3239, %v3237
    %v3284 = vpack.c.b16 %v3242, %v3240
    %v3285 = vpack.c.b16 %v3243, %v3241
    %v3286 = vpack.c.b16 %v3246, %v3244
    %v3287 = vpack.c.b16 %v3247, %v3245
    %v3288 = vpack.c.b16 %v3250, %v3248
    %v3289 = vpack.c.b16 %v3251, %v3249
    %v3290 = vpack.c.b16 %v3254, %v3252
    %v3291 = vpack.c.b16 %v3255, %v3253
    %v3292 = vpack.c.b16 %v3258, %v3256
    %v3293 = vpack.c.b16 %v3259, %v3257
    %v3294 = vpack.c.b16 %v3262, %v3260
    %v3295 = vpack.c.b16 %v3263, %v3261
    %3328 = vmatpush.bf16.msra.mxu0 %v3278
    %3329 = vmatpush.bf16.msra.mxu0 %v3276
    %3330 = vmatpush.bf16.msra.mxu0 %v3274
    %3331 = vmatpush.bf16.msra.mxu0 %v3272
    %3332 = vmatpush.bf16.msra.mxu0 %v3270
    %3333 = vmatpush.bf16.msra.mxu0 %v3268
    %3334 = vmatpush.bf16.msra.mxu0 %v3266
    %3335 = vmatpush.bf16.msra.mxu0 %v3264
    %3336 = vmatmul.bf16.gmra.mxu0 %v2737
    %v3337 = vpop.f32.mrf.mxu0
    %v3338 = vadd.f32 %v3079, %v3337
    %v3339 = vpop.f32.mrf.mxu0
    %v3340 = vadd.f32 %v3081, %v3339
    %3341 = vmatmul.bf16.gmra.mxu0 %v2739
    %v3342 = vpop.f32.mrf.mxu0
    %v3343 = vadd.f32 %v3084, %v3342
    %v3344 = vpop.f32.mrf.mxu0
    %v3345 = vadd.f32 %v3086, %v3344
    %3346 = vmatmul.bf16.gmra.mxu0 %v2741
    %v3347 = vpop.f32.mrf.mxu0
    %v3348 = vadd.f32 %v3089, %v3347
    %v3349 = vpop.f32.mrf.mxu0
    %v3350 = vadd.f32 %v3091, %v3349
    %3351 = vmatmul.bf16.gmra.mxu0 %v2743
    %v3352 = vpop.f32.mrf.mxu0
    %v3353 = vadd.f32 %v3094, %v3352
    %v3354 = vpop.f32.mrf.mxu0
    %v3355 = vadd.f32 %v3096, %v3354
    %3356 = vmatmul.bf16.gmra.mxu0 %v2745
    %v3357 = vpop.f32.mrf.mxu0
    %v3358 = vadd.f32 %v3099, %v3357
    %v3359 = vpop.f32.mrf.mxu0
    %3360 = vdwg.mxu0
    %3361 = vmatpush.bf16.msra.mxu0 %v3294
    %3362 = vmatpush.bf16.msra.mxu0 %v3292
    %3363 = vmatpush.bf16.msra.mxu0 %v3290
    %3364 = vmatpush.bf16.msra.mxu0 %v3288
    %3365 = vmatpush.bf16.msra.mxu0 %v3286
    %3366 = vmatpush.bf16.msra.mxu0 %v3284
    %3367 = vmatpush.bf16.msra.mxu0 %v3282
    %3368 = vmatpush.bf16.msra.mxu0 %v3280
    %3369 = vmatmul.bf16.gmra.mxu0 %v2738
    %v3370 = vpop.f32.mrf.mxu0
    %v3371 = vadd.f32 %v3338, %v3370
    %v3372 = vpop.f32.mrf.mxu0
    %v3373 = vadd.f32 %v3340, %v3372
    %3374 = vmatmul.bf16.gmra.mxu0 %v2740
    %v3375 = vpop.f32.mrf.mxu0
    %v3376 = vadd.f32 %v3343, %v3375
    %v3377 = vpop.f32.mrf.mxu0
    %v3378 = vadd.f32 %v3345, %v3377
    %3379 = vmatmul.bf16.gmra.mxu0 %v2742
    %v3380 = vpop.f32.mrf.mxu0
    %v3381 = vadd.f32 %v3348, %v3380
    %v3382 = vpop.f32.mrf.mxu0
    %v3383 = vadd.f32 %v3350, %v3382
    %3384 = vmatmul.bf16.gmra.mxu0 %v2744
    %v3385 = vpop.f32.mrf.mxu0
    %v3386 = vadd.f32 %v3353, %v3385
    %v3387 = vpop.f32.mrf.mxu0
    %v3388 = vadd.f32 %v3355, %v3387
    %3389 = vmatmul.bf16.gmra.mxu0 %v2746
    %v3390 = vpop.f32.mrf.mxu0
    %v3391 = vadd.f32 %v3358, %v3390
    %v3392 = vpop.f32.mrf.mxu0
    %3393 = vdwg.mxu0
    %3394 = vmatpush.bf16.msra.mxu0 %v3279
    %3395 = vmatpush.bf16.msra.mxu0 %v3277
    %3396 = vmatpush.bf16.msra.mxu0 %v3275
    %3397 = vmatpush.bf16.msra.mxu0 %v3273
    %3398 = vmatpush.bf16.msra.mxu0 %v3271
    %3399 = vmatpush.bf16.msra.mxu0 %v3269
    %3400 = vmatpush.bf16.msra.mxu0 %v3267
    %3401 = vmatpush.bf16.msra.mxu0 %v3265
    %3402 = vmatmul.bf16.gmra.mxu0 %v2737
    %v3403 = vpop.f32.mrf.mxu0
    %v3404 = vadd.f32 %v3145, %v3403
    %v3405 = vpop.f32.mrf.mxu0
    %v3406 = vadd.f32 %v3147, %v3405
    %3407 = vmatmul.bf16.gmra.mxu0 %v2739
    %v3408 = vpop.f32.mrf.mxu0
    %v3409 = vadd.f32 %v3150, %v3408
    %v3410 = vpop.f32.mrf.mxu0
    %v3411 = vadd.f32 %v3152, %v3410
    %3412 = vmatmul.bf16.gmra.mxu0 %v2741
    %v3413 = vpop.f32.mrf.mxu0
    %v3414 = vadd.f32 %v3155, %v3413
    %v3415 = vpop.f32.mrf.mxu0
    %v3416 = vadd.f32 %v3157, %v3415
    %3417 = vmatmul.bf16.gmra.mxu0 %v2743
    %v3418 = vpop.f32.mrf.mxu0
    %v3419 = vadd.f32 %v3160, %v3418
    %v3420 = vpop.f32.mrf.mxu0
    %v3421 = vadd.f32 %v3162, %v3420
    %3422 = vmatmul.bf16.gmra.mxu0 %v2745
    %v3423 = vpop.f32.mrf.mxu0
    %v3424 = vadd.f32 %v3165, %v3423
    %v3425 = vpop.f32.mrf.mxu0
    %3426 = vdwg.mxu0
    %3427 = vmatpush.bf16.msra.mxu0 %v3295
    %3428 = vmatpush.bf16.msra.mxu0 %v3293
    %3429 = vmatpush.bf16.msra.mxu0 %v3291
    %3430 = vmatpush.bf16.msra.mxu0 %v3289
    %3431 = vmatpush.bf16.msra.mxu0 %v3287
    %3432 = vmatpush.bf16.msra.mxu0 %v3285
    %3433 = vmatpush.bf16.msra.mxu0 %v3283
    %3434 = vmatpush.bf16.msra.mxu0 %v3281
    %3435 = vmatmul.bf16.gmra.mxu0 %v2738
    %v3436 = vpop.f32.mrf.mxu0
    %v3437 = vadd.f32 %v3404, %v3436
    %v3438 = vpop.f32.mrf.mxu0
    %v3439 = vadd.f32 %v3406, %v3438
    %3440 = vmatmul.bf16.gmra.mxu0 %v2740
    %v3441 = vpop.f32.mrf.mxu0
    %v3442 = vadd.f32 %v3409, %v3441
    %v3443 = vpop.f32.mrf.mxu0
    %v3444 = vadd.f32 %v3411, %v3443
    %3445 = vmatmul.bf16.gmra.mxu0 %v2742
    %v3446 = vpop.f32.mrf.mxu0
    %v3447 = vadd.f32 %v3414, %v3446
    %v3448 = vpop.f32.mrf.mxu0
    %v3449 = vadd.f32 %v3416, %v3448
    %3450 = vmatmul.bf16.gmra.mxu0 %v2744
    %v3451 = vpop.f32.mrf.mxu0
    %v3452 = vadd.f32 %v3419, %v3451
    %v3453 = vpop.f32.mrf.mxu0
    %v3454 = vadd.f32 %v3421, %v3453
    %3455 = vmatmul.bf16.gmra.mxu0 %v2746
    %v3456 = vpop.f32.mrf.mxu0
    %v3457 = vadd.f32 %v3424, %v3456
    %v3458 = vpop.f32.mrf.mxu0
    %3459 = vdwg.mxu0
    %v3460 = vld [vmem:[#allocation2] sm:$0xfc]
    %v3461 = vld [vmem:[#allocation2 + $0x8] sm:$0xfc]
    %v3462 = vld [vmem:[#allocation2 + $0x80] sm:$0xf]
    %v3463 = vld [vmem:[#allocation2 + $0x88] sm:$0xf]
    %s3464 = scalar_lea.vmem [#allocation6], 512
    %v3465 = vld [vmem:[%s3464] sm:$0xff]
    %v3466 = vld [vmem:[%s3464 + $0x8] sm:$0xff]
    %v3467 = vld [vmem:[%s3464 + $0x10] sm:$0xff]
    %v3468 = vld [vmem:[%s3464 + $0x18] sm:$0xff]
    %v3469 = vld [vmem:[%s3464 + $0x20] sm:$0xff]
    %v3470 = vld [vmem:[%s3464 + $0x28] sm:$0xff]
    %v3471 = vld [vmem:[%s3464 + $0x30] sm:$0xff]
    %v3472 = vld [vmem:[%s3464 + $0x38] sm:$0xff]
    %v3473 = vld [vmem:[%s3464 + $0x40] sm:$0xff]
    %v3474 = vld [vmem:[%s3464 + $0x48] sm:$0xff]
    %v3475 = vld [vmem:[%s3464 + $0x50] sm:$0xff]
    %v3476 = vld [vmem:[%s3464 + $0x58] sm:$0xff]
    %v3477 = vld [vmem:[%s3464 + $0x60] sm:$0xff]
    %v3478 = vld [vmem:[%s3464 + $0x68] sm:$0xff]
    %v3479 = vld [vmem:[%s3464 + $0x70] sm:$0xff]
    %v3480 = vld [vmem:[%s3464 + $0x78] sm:$0xff]
    %v3481 = vld [vmem:[%s3464 + $0x80] sm:$0xff]
    %v3482 = vld [vmem:[%s3464 + $0x88] sm:$0xff]
    %v3483 = vld [vmem:[%s3464 + $0x90] sm:$0xff]
    %v3484 = vld [vmem:[%s3464 + $0x98] sm:$0xff]
    %v3485 = vld [vmem:[%s3464 + $0xa0] sm:$0xff]
    %v3486 = vld [vmem:[%s3464 + $0xa8] sm:$0xff]
    %v3487 = vld [vmem:[%s3464 + $0xb0] sm:$0xff]
    %v3488 = vld [vmem:[%s3464 + $0xb8] sm:$0xff]
    %v3489 = vld [vmem:[%s3464 + $0xc0] sm:$0xff]
    %v3490 = vld [vmem:[%s3464 + $0xc8] sm:$0xff]
    %v3491 = vld [vmem:[%s3464 + $0xd0] sm:$0xff]
    %v3492 = vld [vmem:[%s3464 + $0xd8] sm:$0xff]
    %v3493 = vld [vmem:[%s3464 + $0xe0] sm:$0xff]
    %v3494 = vld [vmem:[%s3464 + $0xe8] sm:$0xff]
    %v3495 = vld [vmem:[%s3464 + $0xf0] sm:$0xff]
    %v3496 = vld [vmem:[%s3464 + $0xf8] sm:$0xff]
    %v3497 = vpack.c.bf16 %v2689, %v3460
    %v3498 = vpack.c.bf16 %v2690, %v3461
    %v3499 = vpack.c.bf16 %v3462, %v3462
    %v3500 = vpack.c.bf16 %v3463, %v3463
    %v3511 = vrot.slane %v3497, 1
    %v3512 = vrot.slane %v2739, 1
    %v3513 = vsel %vm1146, %v3511, %v3512
    %v3514 = vrot.slane %v3498, 1
    %v3515 = vrot.slane %v2740, 1
    %v3516 = vsel %vm1146, %v3514, %v3515
    %v3517 = vrot.slane %v2741, 1
    %v3518 = vsel %vm1146, %v3512, %v3517
    %v3519 = vrot.slane %v2742, 1
    %v3520 = vsel %vm1146, %v3515, %v3519
    %v3521 = vrot.slane %v2743, 1
    %v3522 = vsel %vm1146, %v3517, %v3521
    %v3523 = vrot.slane %v2744, 1
    %v3524 = vsel %vm1146, %v3519, %v3523
    %v3525 = vrot.slane %v3499, 1
    %v3526 = vsel %vm1146, %v3521, %v3525
    %v3527 = vrot.slane %v3500, 1
    %v3528 = vsel %vm1146, %v3523, %v3527
    %v3571 = vunpack.c.l.b16 %v3465
    %v3572 = vunpack.c.h.b16 %v3465
    %v3573 = vunpack.c.l.b16 %v3466
    %v3574 = vunpack.c.h.b16 %v3466
    %v3575 = vunpack.c.l.b16 %v3467
    %v3576 = vunpack.c.h.b16 %v3467
    %v3577 = vunpack.c.l.b16 %v3468
    %v3578 = vunpack.c.h.b16 %v3468
    %v3579 = vunpack.c.l.b16 %v3469
    %v3580 = vunpack.c.h.b16 %v3469
    %v3581 = vunpack.c.l.b16 %v3470
    %v3582 = vunpack.c.h.b16 %v3470
    %v3583 = vunpack.c.l.b16 %v3471
    %v3584 = vunpack.c.h.b16 %v3471
    %v3585 = vunpack.c.l.b16 %v3472
    %v3586 = vunpack.c.h.b16 %v3472
    %v3587 = vunpack.c.l.b16 %v3473
    %v3588 = vunpack.c.h.b16 %v3473
    %v3589 = vunpack.c.l.b16 %v3474
    %v3590 = vunpack.c.h.b16 %v3474
    %v3591 = vunpack.c.l.b16 %v3475
    %v3592 = vunpack.c.h.b16 %v3475
    %v3593 = vunpack.c.l.b16 %v3476
    %v3594 = vunpack.c.h.b16 %v3476
    %v3595 = vunpack.c.l.b16 %v3477
    %v3596 = vunpack.c.h.b16 %v3477
    %v3597 = vunpack.c.l.b16 %v3478
    %v3598 = vunpack.c.h.b16 %v3478
    %v3599 = vunpack.c.l.b16 %v3479
    %v3600 = vunpack.c.h.b16 %v3479
    %v3601 = vunpack.c.l.b16 %v3480
    %v3602 = vunpack.c.h.b16 %v3480
    %v3603 = vunpack.c.l.b16 %v3481
    %v3604 = vunpack.c.h.b16 %v3481
    %v3605 = vunpack.c.l.b16 %v3482
    %v3606 = vunpack.c.h.b16 %v3482
    %v3607 = vunpack.c.l.b16 %v3483
    %v3608 = vunpack.c.h.b16 %v3483
    %v3609 = vunpack.c.l.b16 %v3484
    %v3610 = vunpack.c.h.b16 %v3484
    %v3611 = vunpack.c.l.b16 %v3485
    %v3612 = vunpack.c.h.b16 %v3485
    %v3613 = vunpack.c.l.b16 %v3486
    %v3614 = vunpack.c.h.b16 %v3486
    %v3615 = vunpack.c.l.b16 %v3487
    %v3616 = vunpack.c.h.b16 %v3487
    %v3617 = vunpack.c.l.b16 %v3488
    %v3618 = vunpack.c.h.b16 %v3488
    %v3619 = vunpack.c.l.b16 %v3489
    %v3620 = vunpack.c.h.b16 %v3489
    %v3621 = vunpack.c.l.b16 %v3490
    %v3622 = vunpack.c.h.b16 %v3490
    %v3623 = vunpack.c.l.b16 %v3491
    %v3624 = vunpack.c.h.b16 %v3491
    %v3625 = vunpack.c.l.b16 %v3492
    %v3626 = vunpack.c.h.b16 %v3492
    %v3627 = vunpack.c.l.b16 %v3493
    %v3628 = vunpack.c.h.b16 %v3493
    %v3629 = vunpack.c.l.b16 %v3494
    %v3630 = vunpack.c.h.b16 %v3494
    %v3631 = vunpack.c.l.b16 %v3495
    %v3632 = vunpack.c.h.b16 %v3495
    %v3633 = vunpack.c.l.b16 %v3496
    %v3634 = vunpack.c.h.b16 %v3496
    %v3635 = vpack.c.b16 %v3573, %v3571
    %v3636 = vpack.c.b16 %v3574, %v3572
    %v3637 = vpack.c.b16 %v3577, %v3575
    %v3638 = vpack.c.b16 %v3578, %v3576
    %v3639 = vpack.c.b16 %v3581, %v3579
    %v3640 = vpack.c.b16 %v3582, %v3580
    %v3641 = vpack.c.b16 %v3585, %v3583
    %v3642 = vpack.c.b16 %v3586, %v3584
    %v3643 = vpack.c.b16 %v3589, %v3587
    %v3644 = vpack.c.b16 %v3590, %v3588
    %v3645 = vpack.c.b16 %v3593, %v3591
    %v3646 = vpack.c.b16 %v3594, %v3592
    %v3647 = vpack.c.b16 %v3597, %v3595
    %v3648 = vpack.c.b16 %v3598, %v3596
    %v3649 = vpack.c.b16 %v3601, %v3599
    %v3650 = vpack.c.b16 %v3602, %v3600
    %v3651 = vpack.c.b16 %v3605, %v3603
    %v3652 = vpack.c.b16 %v3606, %v3604
    %v3653 = vpack.c.b16 %v3609, %v3607
    %v3654 = vpack.c.b16 %v3610, %v3608
    %v3655 = vpack.c.b16 %v3613, %v3611
    %v3656 = vpack.c.b16 %v3614, %v3612
    %v3657 = vpack.c.b16 %v3617, %v3615
    %v3658 = vpack.c.b16 %v3618, %v3616
    %v3659 = vpack.c.b16 %v3621, %v3619
    %v3660 = vpack.c.b16 %v3622, %v3620
    %v3661 = vpack.c.b16 %v3625, %v3623
    %v3662 = vpack.c.b16 %v3626, %v3624
    %v3663 = vpack.c.b16 %v3629, %v3627
    %v3664 = vpack.c.b16 %v3630, %v3628
    %v3665 = vpack.c.b16 %v3633, %v3631
    %v3666 = vpack.c.b16 %v3634, %v3632
    %3699 = vmatpush.bf16.msra.mxu0 %v3649
    %3700 = vmatpush.bf16.msra.mxu0 %v3647
    %3701 = vmatpush.bf16.msra.mxu0 %v3645
    %3702 = vmatpush.bf16.msra.mxu0 %v3643
    %3703 = vmatpush.bf16.msra.mxu0 %v3641
    %3704 = vmatpush.bf16.msra.mxu0 %v3639
    %3705 = vmatpush.bf16.msra.mxu0 %v3637
    %3706 = vmatpush.bf16.msra.mxu0 %v3635
    %3707 = vmatmul.bf16.gmra.mxu0 %v3513
    %v3708 = vpop.f32.mrf.mxu0
    %v3709 = vadd.f32 0.0, %v3708
    %v3710 = vpop.f32.mrf.mxu0
    %v3711 = vadd.f32 0.0, %v3710
    %3712 = vmatmul.bf16.gmra.mxu0 %v3518
    %v3713 = vpop.f32.mrf.mxu0
    %v3714 = vadd.f32 0.0, %v3713
    %v3715 = vpop.f32.mrf.mxu0
    %v3716 = vadd.f32 0.0, %v3715
    %3717 = vmatmul.bf16.gmra.mxu0 %v3522
    %v3718 = vpop.f32.mrf.mxu0
    %v3719 = vadd.f32 0.0, %v3718
    %v3720 = vpop.f32.mrf.mxu0
    %v3721 = vadd.f32 0.0, %v3720
    %3722 = vmatmul.bf16.gmra.mxu0 %v3526
    %v3723 = vpop.f32.mrf.mxu0
    %v3724 = vadd.f32 0.0, %v3723
    %v3725 = vpop.f32.mrf.mxu0
    %v3726 = vadd.f32 0.0, %v3725
    %3727 = vmatmul.bf16.gmra.mxu0 %v3525
    %v3728 = vpop.f32.mrf.mxu0
    %v3729 = vadd.f32 0.0, %v3728
    %v3730 = vpop.f32.mrf.mxu0
    %3731 = vdwg.mxu0
    %3732 = vmatpush.bf16.msra.mxu0 %v3665
    %3733 = vmatpush.bf16.msra.mxu0 %v3663
    %3734 = vmatpush.bf16.msra.mxu0 %v3661
    %3735 = vmatpush.bf16.msra.mxu0 %v3659
    %3736 = vmatpush.bf16.msra.mxu0 %v3657
    %3737 = vmatpush.bf16.msra.mxu0 %v3655
    %3738 = vmatpush.bf16.msra.mxu0 %v3653
    %3739 = vmatpush.bf16.msra.mxu0 %v3651
    %3740 = vmatmul.bf16.gmra.mxu0 %v3516
    %v3741 = vpop.f32.mrf.mxu0
    %v3742 = vadd.f32 %v3709, %v3741
    %v3743 = vpop.f32.mrf.mxu0
    %v3744 = vadd.f32 %v3711, %v3743
    %3745 = vmatmul.bf16.gmra.mxu0 %v3520
    %v3746 = vpop.f32.mrf.mxu0
    %v3747 = vadd.f32 %v3714, %v3746
    %v3748 = vpop.f32.mrf.mxu0
    %v3749 = vadd.f32 %v3716, %v3748
    %3750 = vmatmul.bf16.gmra.mxu0 %v3524
    %v3751 = vpop.f32.mrf.mxu0
    %v3752 = vadd.f32 %v3719, %v3751
    %v3753 = vpop.f32.mrf.mxu0
    %v3754 = vadd.f32 %v3721, %v3753
    %3755 = vmatmul.bf16.gmra.mxu0 %v3528
    %v3756 = vpop.f32.mrf.mxu0
    %v3757 = vadd.f32 %v3724, %v3756
    %v3758 = vpop.f32.mrf.mxu0
    %v3759 = vadd.f32 %v3726, %v3758
    %3760 = vmatmul.bf16.gmra.mxu0 %v3527
    %v3761 = vpop.f32.mrf.mxu0
    %v3762 = vadd.f32 %v3729, %v3761
    %v3763 = vpop.f32.mrf.mxu0
    %3764 = vdwg.mxu0
    %3765 = vmatpush.bf16.msra.mxu0 %v3650
    %3766 = vmatpush.bf16.msra.mxu0 %v3648
    %3767 = vmatpush.bf16.msra.mxu0 %v3646
    %3768 = vmatpush.bf16.msra.mxu0 %v3644
    %3769 = vmatpush.bf16.msra.mxu0 %v3642
    %3770 = vmatpush.bf16.msra.mxu0 %v3640
    %3771 = vmatpush.bf16.msra.mxu0 %v3638
    %3772 = vmatpush.bf16.msra.mxu0 %v3636
    %3773 = vmatmul.bf16.gmra.mxu0 %v3513
    %v3774 = vpop.f32.mrf.mxu0
    %v3775 = vadd.f32 0.0, %v3774
    %v3776 = vpop.f32.mrf.mxu0
    %v3777 = vadd.f32 0.0, %v3776
    %3778 = vmatmul.bf16.gmra.mxu0 %v3518
    %v3779 = vpop.f32.mrf.mxu0
    %v3780 = vadd.f32 0.0, %v3779
    %v3781 = vpop.f32.mrf.mxu0
    %v3782 = vadd.f32 0.0, %v3781
    %3783 = vmatmul.bf16.gmra.mxu0 %v3522
    %v3784 = vpop.f32.mrf.mxu0
    %v3785 = vadd.f32 0.0, %v3784
    %v3786 = vpop.f32.mrf.mxu0
    %v3787 = vadd.f32 0.0, %v3786
    %3788 = vmatmul.bf16.gmra.mxu0 %v3526
    %v3789 = vpop.f32.mrf.mxu0
    %v3790 = vadd.f32 0.0, %v3789
    %v3791 = vpop.f32.mrf.mxu0
    %v3792 = vadd.f32 0.0, %v3791
    %3793 = vmatmul.bf16.gmra.mxu0 %v3525
    %v3794 = vpop.f32.mrf.mxu0
    %v3795 = vadd.f32 0.0, %v3794
    %v3796 = vpop.f32.mrf.mxu0
    %3797 = vdwg.mxu0
    %3798 = vmatpush.bf16.msra.mxu0 %v3666
    %3799 = vmatpush.bf16.msra.mxu0 %v3664
    %3800 = vmatpush.bf16.msra.mxu0 %v3662
    %3801 = vmatpush.bf16.msra.mxu0 %v3660
    %3802 = vmatpush.bf16.msra.mxu0 %v3658
    %3803 = vmatpush.bf16.msra.mxu0 %v3656
    %3804 = vmatpush.bf16.msra.mxu0 %v3654
    %3805 = vmatpush.bf16.msra.mxu0 %v3652
    %3806 = vmatmul.bf16.gmra.mxu0 %v3516
    %v3807 = vpop.f32.mrf.mxu0
    %v3808 = vadd.f32 %v3775, %v3807
    %v3809 = vpop.f32.mrf.mxu0
    %v3810 = vadd.f32 %v3777, %v3809
    %3811 = vmatmul.bf16.gmra.mxu0 %v3520
    %v3812 = vpop.f32.mrf.mxu0
    %v3813 = vadd.f32 %v3780, %v3812
    %v3814 = vpop.f32.mrf.mxu0
    %v3815 = vadd.f32 %v3782, %v3814
    %3816 = vmatmul.bf16.gmra.mxu0 %v3524
    %v3817 = vpop.f32.mrf.mxu0
    %v3818 = vadd.f32 %v3785, %v3817
    %v3819 = vpop.f32.mrf.mxu0
    %v3820 = vadd.f32 %v3787, %v3819
    %3821 = vmatmul.bf16.gmra.mxu0 %v3528
    %v3822 = vpop.f32.mrf.mxu0
    %v3823 = vadd.f32 %v3790, %v3822
    %v3824 = vpop.f32.mrf.mxu0
    %v3825 = vadd.f32 %v3792, %v3824
    %3826 = vmatmul.bf16.gmra.mxu0 %v3527
    %v3827 = vpop.f32.mrf.mxu0
    %v3828 = vadd.f32 %v3795, %v3827
    %v3829 = vpop.f32.mrf.mxu0
    %3830 = vdwg.mxu0
    %v3831 = vadd.f32 %v3371, %v3742
    %v3832 = vadd.f32 %v3437, %v3808
    %v3833 = vadd.f32 %v3373, %v3744
    %v3834 = vadd.f32 %v3439, %v3810
    %v3835 = vadd.f32 %v3376, %v3747
    %v3836 = vadd.f32 %v3442, %v3813
    %v3837 = vadd.f32 %v3378, %v3749
    %v3838 = vadd.f32 %v3444, %v3815
    %v3839 = vadd.f32 %v3381, %v3752
    %v3840 = vadd.f32 %v3447, %v3818
    %v3841 = vadd.f32 %v3383, %v3754
    %v3842 = vadd.f32 %v3449, %v3820
    %v3843 = vadd.f32 %v3386, %v3757
    %v3844 = vadd.f32 %v3452, %v3823
    %v3845 = vadd.f32 %v3388, %v3759
    %v3846 = vadd.f32 %v3454, %v3825
    %v3847 = vadd.f32 %v3391, %v3762
    %v3848 = vadd.f32 %v3457, %v3828
    %v3849 = vmul.f32 %v3831, %v1488
    %v3850 = vmul.f32 %v3832, %v1488
    %v3851 = vmul.f32 %v3833, %v1493
    %v3852 = vmul.f32 %v3834, %v1493
    %v3853 = vmul.f32 %v3835, %v1498
    %v3854 = vmul.f32 %v3836, %v1498
    %v3855 = vmul.f32 %v3837, %v1503
    %v3856 = vmul.f32 %v3838, %v1503
    %v3857 = vmul.f32 %v3839, %v1508
    %v3858 = vmul.f32 %v3840, %v1508
    %v3859 = vmul.f32 %v3841, %v1513
    %v3860 = vmul.f32 %v3842, %v1513
    %v3861 = vmul.f32 %v3843, %v1518
    %v3862 = vmul.f32 %v3844, %v1518
    %v3863 = vmul.f32 %v3845, %v1523
    %v3864 = vmul.f32 %v3846, %v1523
    %v3865 = vmul.f32 %v3847, %v1528
    %v3866 = vmul.f32 %v3848, %v1528
    %v3867 = vld [vmem:[%s6] sm:$0xf]
    %v3868 = vld [vmem:[%s6 + $0x4] sm:$0xf]
    %v3869 = vld [vmem:[%s6 + $0x8] sm:$0xf]
    %v3870 = vld [vmem:[%s6 + $0xc] sm:$0xf]
    %v3871 = vld [vmem:[%s6 + $0x10] sm:$0xf]
    %v3872 = vld [vmem:[%s6 + $0x14] sm:$0xf]
    %v3873 = vld [vmem:[%s6 + $0x18] sm:$0xf]
    %v3874 = vld [vmem:[%s6 + $0x1c] sm:$0xf]
    %v3875 = vld [vmem:[%s6 + $0x20] sm:$0xf]
    %v3876 = vld [vmem:[%s6 + $0x24] sm:$0xf]
    %v3877 = vld [vmem:[%s6 + $0x28] sm:$0xf]
    %v3878 = vld [vmem:[%s6 + $0x2c] sm:$0xf]
    %v3879 = vld [vmem:[%s6 + $0x30] sm:$0xf]
    %v3880 = vld [vmem:[%s6 + $0x34] sm:$0xf]
    %v3881 = vld [vmem:[%s6 + $0x38] sm:$0xf]
    %v3882 = vld [vmem:[%s6 + $0x3c] sm:$0xf]
    %v3883 = vld [vmem:[%s6 + $0x40] sm:$0xf]
    %v3884 = vld [vmem:[%s6 + $0x44] sm:$0xf]
    %v3885 = vld [vmem:[%s6 + $0x48] sm:$0xf]
    %v3886 = vld [vmem:[%s6 + $0x4c] sm:$0xf]
    %v3887 = vld [vmem:[%s6 + $0x50] sm:$0xf]
    %v3888 = vld [vmem:[%s6 + $0x54] sm:$0xf]
    %v3889 = vld [vmem:[%s6 + $0x58] sm:$0xf]
    %v3890 = vld [vmem:[%s6 + $0x5c] sm:$0xf]
    %v3891 = vld [vmem:[%s6 + $0x60] sm:$0xf]
    %v3892 = vld [vmem:[%s6 + $0x64] sm:$0xf]
    %v3893 = vld [vmem:[%s6 + $0x68] sm:$0xf]
    %v3894 = vld [vmem:[%s6 + $0x6c] sm:$0xf]
    %v3895 = vld [vmem:[%s6 + $0x70] sm:$0xf]
    %v3896 = vld [vmem:[%s6 + $0x74] sm:$0xf]
    %v3897 = vld [vmem:[%s6 + $0x78] sm:$0xf]
    %v3898 = vld [vmem:[%s6 + $0x7c] sm:$0xf]
    %v3899 = vpack.c.bf16 %v3851, %v3849
    %v3900 = vpack.c.bf16 %v3852, %v3850
    %v3901 = vpack.c.bf16 %v3855, %v3853
    %v3902 = vpack.c.bf16 %v3856, %v3854
    %v3903 = vpack.c.bf16 %v3859, %v3857
    %v3904 = vpack.c.bf16 %v3860, %v3858
    %v3905 = vpack.c.bf16 %v3863, %v3861
    %v3906 = vpack.c.bf16 %v3864, %v3862
    %v3907 = vpack.c.bf16 %v3865, %v3865
    %v3908 = vpack.c.bf16 %v3866, %v3866
    %v3941 = vunpack.c.l.b16 %v3867
    %v3942 = vunpack.c.l.b16 %v3868
    %v3943 = vunpack.c.l.b16 %v3869
    %v3944 = vunpack.c.l.b16 %v3870
    %v3945 = vunpack.c.l.b16 %v3871
    %v3946 = vunpack.c.l.b16 %v3872
    %v3947 = vunpack.c.l.b16 %v3873
    %v3948 = vunpack.c.l.b16 %v3874
    %v3949 = vunpack.c.l.b16 %v3875
    %v3950 = vunpack.c.l.b16 %v3876
    %v3951 = vunpack.c.l.b16 %v3877
    %v3952 = vunpack.c.l.b16 %v3878
    %v3953 = vunpack.c.l.b16 %v3879
    %v3954 = vunpack.c.l.b16 %v3880
    %v3955 = vunpack.c.l.b16 %v3881
    %v3956 = vunpack.c.l.b16 %v3882
    %v3957 = vunpack.c.l.b16 %v3883
    %v3958 = vunpack.c.l.b16 %v3884
    %v3959 = vunpack.c.l.b16 %v3885
    %v3960 = vunpack.c.l.b16 %v3886
    %v3961 = vunpack.c.l.b16 %v3887
    %v3962 = vunpack.c.l.b16 %v3888
    %v3963 = vunpack.c.l.b16 %v3889
    %v3964 = vunpack.c.l.b16 %v3890
    %v3965 = vunpack.c.l.b16 %v3891
    %v3966 = vunpack.c.l.b16 %v3892
    %v3967 = vunpack.c.l.b16 %v3893
    %v3968 = vunpack.c.l.b16 %v3894
    %v3969 = vunpack.c.l.b16 %v3895
    %v3970 = vunpack.c.l.b16 %v3896
    %v3971 = vunpack.c.l.b16 %v3897
    %v3972 = vunpack.c.l.b16 %v3898
    %v3973 = vpack.c.b16 %v3942, %v3941
    %v3974 = vpack.c.b16 %v3944, %v3943
    %v3975 = vpack.c.b16 %v3946, %v3945
    %v3976 = vpack.c.b16 %v3948, %v3947
    %v3977 = vpack.c.b16 %v3950, %v3949
    %v3978 = vpack.c.b16 %v3952, %v3951
    %v3979 = vpack.c.b16 %v3954, %v3953
    %v3980 = vpack.c.b16 %v3956, %v3955
    %v3981 = vpack.c.b16 %v3958, %v3957
    %v3982 = vpack.c.b16 %v3960, %v3959
    %v3983 = vpack.c.b16 %v3962, %v3961
    %v3984 = vpack.c.b16 %v3964, %v3963
    %v3985 = vpack.c.b16 %v3966, %v3965
    %v3986 = vpack.c.b16 %v3968, %v3967
    %v3987 = vpack.c.b16 %v3970, %v3969
    %v3988 = vpack.c.b16 %v3972, %v3971
    %4005 = vmatpush.bf16.msra.mxu0 %v3980
    %4006 = vmatpush.bf16.msra.mxu0 %v3979
    %4007 = vmatpush.bf16.msra.mxu0 %v3978
    %4008 = vmatpush.bf16.msra.mxu0 %v3977
    %4009 = vmatpush.bf16.msra.mxu0 %v3976
    %4010 = vmatpush.bf16.msra.mxu0 %v3975
    %4011 = vmatpush.bf16.msra.mxu0 %v3974
    %4012 = vmatpush.bf16.msra.mxu0 %v3973
    %4013 = vmatmul.bf16.gmra.mxu0 %v3899
    %v4014 = vpop.f32.mrf.mxu0
    %v4015 = vadd.f32 0.0, %v4014
    %v4016 = vpop.f32.mrf.mxu0
    %v4017 = vadd.f32 0.0, %v4016
    %4018 = vmatmul.bf16.gmra.mxu0 %v3901
    %v4019 = vpop.f32.mrf.mxu0
    %v4020 = vadd.f32 0.0, %v4019
    %v4021 = vpop.f32.mrf.mxu0
    %v4022 = vadd.f32 0.0, %v4021
    %4023 = vmatmul.bf16.gmra.mxu0 %v3903
    %v4024 = vpop.f32.mrf.mxu0
    %v4025 = vadd.f32 0.0, %v4024
    %v4026 = vpop.f32.mrf.mxu0
    %v4027 = vadd.f32 0.0, %v4026
    %4028 = vmatmul.bf16.gmra.mxu0 %v3905
    %v4029 = vpop.f32.mrf.mxu0
    %v4030 = vadd.f32 0.0, %v4029
    %v4031 = vpop.f32.mrf.mxu0
    %v4032 = vadd.f32 0.0, %v4031
    %4033 = vmatmul.bf16.gmra.mxu0 %v3907
    %v4034 = vpop.f32.mrf.mxu0
    %v4035 = vadd.f32 0.0, %v4034
    %v4036 = vpop.f32.mrf.mxu0
    %4037 = vdwg.mxu0
    %4038 = vmatpush.bf16.msra.mxu0 %v3988
    %4039 = vmatpush.bf16.msra.mxu0 %v3987
    %4040 = vmatpush.bf16.msra.mxu0 %v3986
    %4041 = vmatpush.bf16.msra.mxu0 %v3985
    %4042 = vmatpush.bf16.msra.mxu0 %v3984
    %4043 = vmatpush.bf16.msra.mxu0 %v3983
    %4044 = vmatpush.bf16.msra.mxu0 %v3982
    %4045 = vmatpush.bf16.msra.mxu0 %v3981
    %4046 = vmatmul.bf16.gmra.mxu0 %v3900
    %v4047 = vpop.f32.mrf.mxu0
    %v4048 = vadd.f32 %v4015, %v4047
    %v4049 = vpop.f32.mrf.mxu0
    %v4050 = vadd.f32 %v4017, %v4049
    %4051 = vmatmul.bf16.gmra.mxu0 %v3902
    %v4052 = vpop.f32.mrf.mxu0
    %v4053 = vadd.f32 %v4020, %v4052
    %v4054 = vpop.f32.mrf.mxu0
    %v4055 = vadd.f32 %v4022, %v4054
    %4056 = vmatmul.bf16.gmra.mxu0 %v3904
    %v4057 = vpop.f32.mrf.mxu0
    %v4058 = vadd.f32 %v4025, %v4057
    %v4059 = vpop.f32.mrf.mxu0
    %v4060 = vadd.f32 %v4027, %v4059
    %4061 = vmatmul.bf16.gmra.mxu0 %v3906
    %v4062 = vpop.f32.mrf.mxu0
    %v4063 = vadd.f32 %v4030, %v4062
    %v4064 = vpop.f32.mrf.mxu0
    %v4065 = vadd.f32 %v4032, %v4064
    %4066 = vmatmul.bf16.gmra.mxu0 %v3908
    %v4067 = vpop.f32.mrf.mxu0
    %v4068 = vadd.f32 %v4035, %v4067
    %v4069 = vpop.f32.mrf.mxu0
    %4070 = vdwg.mxu0
    %v4071 = vsel %vm1752, %v4048, 0.0
    %v4072 = vsel %vm1752, %v4050, 0.0
    %v4073 = vadd.f32 %v4071, %v4072
    %v4074 = vsel %vm1752, %v4053, 0.0
    %v4075 = vadd.f32 %v4073, %v4074
    %v4076 = vsel %vm1752, %v4055, 0.0
    %v4077 = vadd.f32 %v4075, %v4076
    %v4078 = vsel %vm1752, %v4058, 0.0
    %v4079 = vadd.f32 %v4077, %v4078
    %v4080 = vsel %vm1752, %v4060, 0.0
    %v4081 = vadd.f32 %v4079, %v4080
    %v4082 = vsel %vm1752, %v4063, 0.0
    %v4083 = vadd.f32 %v4081, %v4082
    %v4084 = vsel %vm1752, %v4065, 0.0
    %v4085 = vadd.f32 %v4083, %v4084
    %v4086 = vsel %vm1768, %v4068, 0.0
    %v4087 = vadd.f32 %v4085, %v4086
    %v4088 = vrot.slane %v4087, 4
    %v4089 = vadd.f32 %v4087, %v4088
    %v4090 = vrot.slane %v4089, 2
    %v4091 = vadd.f32 %v4089, %v4090
    %v4092 = vrot.slane %v4091, 1
    %v4093 = vadd.f32 %v4091, %v4092
    %v4094 = vmul.f32 %v3849, %v3849
    %v4095 = vmul.f32 %v3850, %v3850
    %v4096 = vmul.f32 %v3851, %v3851
    %v4097 = vmul.f32 %v3852, %v3852
    %v4098 = vmul.f32 %v3853, %v3853
    %v4099 = vmul.f32 %v3854, %v3854
    %v4100 = vmul.f32 %v3855, %v3855
    %v4101 = vmul.f32 %v3856, %v3856
    %v4102 = vmul.f32 %v3857, %v3857
    %v4103 = vmul.f32 %v3858, %v3858
    %v4104 = vmul.f32 %v3859, %v3859
    %v4105 = vmul.f32 %v3860, %v3860
    %v4106 = vmul.f32 %v3861, %v3861
    %v4107 = vmul.f32 %v3862, %v3862
    %v4108 = vmul.f32 %v3863, %v3863
    %v4109 = vmul.f32 %v3864, %v3864
    %v4110 = vmul.f32 %v3865, %v3865
    %v4111 = vmul.f32 %v3866, %v3866
    %v4112 = vpack.c.bf16 %v4096, %v4094
    %v4113 = vpack.c.bf16 %v4097, %v4095
    %v4114 = vpack.c.bf16 %v4100, %v4098
    %v4115 = vpack.c.bf16 %v4101, %v4099
    %v4116 = vpack.c.bf16 %v4104, %v4102
    %v4117 = vpack.c.bf16 %v4105, %v4103
    %v4118 = vpack.c.bf16 %v4108, %v4106
    %v4119 = vpack.c.bf16 %v4109, %v4107
    %v4120 = vpack.c.bf16 %v4110, %v4110
    %v4121 = vpack.c.bf16 %v4111, %v4111
    %4122 = vmatpush.bf16.msra.mxu0 %v3980
    %4123 = vmatpush.bf16.msra.mxu0 %v3979
    %4124 = vmatpush.bf16.msra.mxu0 %v3978
    %4125 = vmatpush.bf16.msra.mxu0 %v3977
    %4126 = vmatpush.bf16.msra.mxu0 %v3976
    %4127 = vmatpush.bf16.msra.mxu0 %v3975
    %4128 = vmatpush.bf16.msra.mxu0 %v3974
    %4129 = vmatpush.bf16.msra.mxu0 %v3973
    %4130 = vmatmul.bf16.gmra.mxu0 %v4112
    %v4131 = vpop.f32.mrf.mxu0
    %v4132 = vadd.f32 0.0, %v4131
    %v4133 = vpop.f32.mrf.mxu0
    %v4134 = vadd.f32 0.0, %v4133
    %4135 = vmatmul.bf16.gmra.mxu0 %v4114
    %v4136 = vpop.f32.mrf.mxu0
    %v4137 = vadd.f32 0.0, %v4136
    %v4138 = vpop.f32.mrf.mxu0
    %v4139 = vadd.f32 0.0, %v4138
    %4140 = vmatmul.bf16.gmra.mxu0 %v4116
    %v4141 = vpop.f32.mrf.mxu0
    %v4142 = vadd.f32 0.0, %v4141
    %v4143 = vpop.f32.mrf.mxu0
    %v4144 = vadd.f32 0.0, %v4143
    %4145 = vmatmul.bf16.gmra.mxu0 %v4118
    %v4146 = vpop.f32.mrf.mxu0
    %v4147 = vadd.f32 0.0, %v4146
    %v4148 = vpop.f32.mrf.mxu0
    %v4149 = vadd.f32 0.0, %v4148
    %4150 = vmatmul.bf16.gmra.mxu0 %v4120
    %v4151 = vpop.f32.mrf.mxu0
    %v4152 = vadd.f32 0.0, %v4151
    %v4153 = vpop.f32.mrf.mxu0
    %4154 = vdwg.mxu0
    %4155 = vmatpush.bf16.msra.mxu0 %v3988
    %4156 = vmatpush.bf16.msra.mxu0 %v3987
    %4157 = vmatpush.bf16.msra.mxu0 %v3986
    %4158 = vmatpush.bf16.msra.mxu0 %v3985
    %4159 = vmatpush.bf16.msra.mxu0 %v3984
    %4160 = vmatpush.bf16.msra.mxu0 %v3983
    %4161 = vmatpush.bf16.msra.mxu0 %v3982
    %4162 = vmatpush.bf16.msra.mxu0 %v3981
    %4163 = vmatmul.bf16.gmra.mxu0 %v4113
    %v4164 = vpop.f32.mrf.mxu0
    %v4165 = vadd.f32 %v4132, %v4164
    %v4166 = vpop.f32.mrf.mxu0
    %v4167 = vadd.f32 %v4134, %v4166
    %4168 = vmatmul.bf16.gmra.mxu0 %v4115
    %v4169 = vpop.f32.mrf.mxu0
    %v4170 = vadd.f32 %v4137, %v4169
    %v4171 = vpop.f32.mrf.mxu0
    %v4172 = vadd.f32 %v4139, %v4171
    %4173 = vmatmul.bf16.gmra.mxu0 %v4117
    %v4174 = vpop.f32.mrf.mxu0
    %v4175 = vadd.f32 %v4142, %v4174
    %v4176 = vpop.f32.mrf.mxu0
    %v4177 = vadd.f32 %v4144, %v4176
    %4178 = vmatmul.bf16.gmra.mxu0 %v4119
    %v4179 = vpop.f32.mrf.mxu0
    %v4180 = vadd.f32 %v4147, %v4179
    %v4181 = vpop.f32.mrf.mxu0
    %v4182 = vadd.f32 %v4149, %v4181
    %4183 = vmatmul.bf16.gmra.mxu0 %v4121
    %v4184 = vpop.f32.mrf.mxu0
    %v4185 = vadd.f32 %v4152, %v4184
    %v4186 = vpop.f32.mrf.mxu0
    %4187 = vdwg.mxu0
    %v4188 = vsel %vm1752, %v4165, 0.0
    %v4189 = vsel %vm1752, %v4167, 0.0
    %v4190 = vadd.f32 %v4188, %v4189
    %v4191 = vsel %vm1752, %v4170, 0.0
    %v4192 = vadd.f32 %v4190, %v4191
    %v4193 = vsel %vm1752, %v4172, 0.0
    %v4194 = vadd.f32 %v4192, %v4193
    %v4195 = vsel %vm1752, %v4175, 0.0
    %v4196 = vadd.f32 %v4194, %v4195
    %v4197 = vsel %vm1752, %v4177, 0.0
    %v4198 = vadd.f32 %v4196, %v4197
    %v4199 = vsel %vm1752, %v4180, 0.0
    %v4200 = vadd.f32 %v4198, %v4199
    %v4201 = vsel %vm1752, %v4182, 0.0
    %v4202 = vadd.f32 %v4200, %v4201
    %v4203 = vsel %vm1768, %v4185, 0.0
    %v4204 = vadd.f32 %v4202, %v4203
    %v4205 = vrot.slane %v4204, 4
    %v4206 = vadd.f32 %v4204, %v4205
    %v4207 = vrot.slane %v4206, 2
    %v4208 = vadd.f32 %v4206, %v4207
    %v4209 = vrot.slane %v4208, 1
    %v4210 = vadd.f32 %v4208, %v4209
    %v4211 = vmul.f32 %v4093, %v1900
    %v4212 = vmul.f32 %v4210, %v1900
    %v4213 = vmul.f32 %v4211, %v4211
    %v4214 = vsub.f32 %v4212, %v4213
    %v4215 = vld [vmem:[%s11] sm:$0x1]
    %v4216 = vadd.f32 %v4214, 1e-05
    %v4217 = vrsqrt.pop %v4216
    %v4218 = vmul.f32 %v4217, %v4216
    %v4219 = vmul.f32 %v4218, %v4217
    %v4220 = vmul.f32 0.5, %v4219
    %v4221 = vsub.f32 1.5, %v4220
    %v4222 = vmul.f32 %v4217, %v4221
    %vm4223 = vweird.f32 %v4216
    %vm4224 = vweird.f32 %v4217
    %vm4225 = vmor %vm4223, %vm4224
    %v4226 = vsel %vm4225, %v4217, %v4222
    %v4227 = vmul.f32 %v4215, %v4226
    %v4228 = vld [vmem:[%s12] sm:$0x1]
    %v4229 = vmul.f32 %v4211, %v4227
    %v4230 = vsub.f32 %v4228, %v4229
    %v4231 = vld [vmem:[%s7] sm:$0xff]
    %v4232 = vld [vmem:[%s7 + $0x8] sm:$0xff]
    %v4234 = vsel %vm1752, %v4227, 0
    %4236 = vmatpush.msra.mxu0 0.0
    %4237 = vmatpush.msra.mxu0 0.0
    %4238 = vmatpush.msra.mxu0 0.0
    %4239 = vmatpush.msra.mxu0 0.0
    %4240 = vmatpush.msra.mxu0 0.0
    %4241 = vmatpush.msra.mxu0 0.0
    %4242 = vmatpush.msra.mxu0 0.0
    %4243 = vmatpush.msra.mxu0 0.0
    %4244 = vmatpush.msra.mxu0 0.0
    %4245 = vmatpush.msra.mxu0 0.0
    %4246 = vmatpush.msra.mxu0 0.0
    %4247 = vmatpush.msra.mxu0 0.0
    %4248 = vmatpush.msra.mxu0 0.0
    %4249 = vmatpush.msra.mxu0 0.0
    %4250 = vmatpush.msra.mxu0 0.0
    %v4251 = vand.u32 %v4231, 4294901760
    %4252 = vmatpush.msra.mxu0 %v4251
    %v4253 = vand.u32 %v4234, 4294901760
    %v4254 = vsub.f32 %v4234, %v4253
    %v4255 = vand.u32 %v4254, 4294901760
    %v4256 = vsub.f32 %v4254, %v4255
    %v4257 = vand.u32 %v4256, 4294901760
    %4258 = vmatmul.f32.gmra.mxu0 %v4257
    %v4259 = vpop.f32.mrf.mxu0
    %v4260 = vadd.f32 0.0, %v4259
    %4261 = vdwg.mxu0
    %4262 = vmatpush.msra.mxu0 0.0
    %4263 = vmatpush.msra.mxu0 0.0
    %4264 = vmatpush.msra.mxu0 0.0
    %4265 = vmatpush.msra.mxu0 0.0
    %4266 = vmatpush.msra.mxu0 0.0
    %4267 = vmatpush.msra.mxu0 0.0
    %4268 = vmatpush.msra.mxu0 0.0
    %4269 = vmatpush.msra.mxu0 0.0
    %4270 = vmatpush.msra.mxu0 0.0
    %4271 = vmatpush.msra.mxu0 0.0
    %4272 = vmatpush.msra.mxu0 0.0
    %4273 = vmatpush.msra.mxu0 0.0
    %4274 = vmatpush.msra.mxu0 0.0
    %4275 = vmatpush.msra.mxu0 0.0
    %4276 = vmatpush.msra.mxu0 0.0
    %v4277 = vand.u32 %v4231, 4294901760
    %v4278 = vsub.f32 %v4231, %v4277
    %v4279 = vand.u32 %v4278, 4294901760
    %v4280 = vsub.f32 %v4278, %v4279
    %v4281 = vand.u32 %v4280, 4294901760
    %4282 = vmatpush.msra.mxu0 %v4281
    %v4283 = vand.u32 %v4234, 4294901760
    %4284 = vmatmul.f32.gmra.mxu0 %v4283
    %v4285 = vpop.f32.mrf.mxu0
    %v4286 = vadd.f32 %v4260, %v4285
    %4287 = vdwg.mxu0
    %4288 = vmatpush.msra.mxu0 0.0
    %4289 = vmatpush.msra.mxu0 0.0
    %4290 = vmatpush.msra.mxu0 0.0
    %4291 = vmatpush.msra.mxu0 0.0
    %4292 = vmatpush.msra.mxu0 0.0
    %4293 = vmatpush.msra.mxu0 0.0
    %4294 = vmatpush.msra.mxu0 0.0
    %4295 = vmatpush.msra.mxu0 0.0
    %4296 = vmatpush.msra.mxu0 0.0
    %4297 = vmatpush.msra.mxu0 0.0
    %4298 = vmatpush.msra.mxu0 0.0
    %4299 = vmatpush.msra.mxu0 0.0
    %4300 = vmatpush.msra.mxu0 0.0
    %4301 = vmatpush.msra.mxu0 0.0
    %4302 = vmatpush.msra.mxu0 0.0
    %v4303 = vand.u32 %v4231, 4294901760
    %v4304 = vsub.f32 %v4231, %v4303
    %4305 = vmatpush.msra.mxu0 %v4304
    %v4306 = vand.u32 %v4234, 4294901760
    %v4307 = vsub.f32 %v4234, %v4306
    %4308 = vmatmul.f32.gmra.mxu0 %v4307
    %v4309 = vpop.f32.mrf.mxu0
    %v4310 = vadd.f32 %v4286, %v4309
    %4311 = vdwg.mxu0
    %4312 = vmatpush.msra.mxu0 0.0
    %4313 = vmatpush.msra.mxu0 0.0
    %4314 = vmatpush.msra.mxu0 0.0
    %4315 = vmatpush.msra.mxu0 0.0
    %4316 = vmatpush.msra.mxu0 0.0
    %4317 = vmatpush.msra.mxu0 0.0
    %4318 = vmatpush.msra.mxu0 0.0
    %4319 = vmatpush.msra.mxu0 0.0
    %4320 = vmatpush.msra.mxu0 0.0
    %4321 = vmatpush.msra.mxu0 0.0
    %4322 = vmatpush.msra.mxu0 0.0
    %4323 = vmatpush.msra.mxu0 0.0
    %4324 = vmatpush.msra.mxu0 0.0
    %4325 = vmatpush.msra.mxu0 0.0
    %4326 = vmatpush.msra.mxu0 0.0
    %v4327 = vand.u32 %v4231, 4294901760
    %4328 = vmatpush.msra.mxu0 %v4327
    %v4329 = vand.u32 %v4234, 4294901760
    %v4330 = vsub.f32 %v4234, %v4329
    %v4331 = vand.u32 %v4330, 4294901760
    %4332 = vmatmul.f32.gmra.mxu0 %v4331
    %v4333 = vpop.f32.mrf.mxu0
    %v4334 = vadd.f32 %v4310, %v4333
    %4335 = vdwg.mxu0
    %4336 = vmatpush.msra.mxu0 0.0
    %4337 = vmatpush.msra.mxu0 0.0
    %4338 = vmatpush.msra.mxu0 0.0
    %4339 = vmatpush.msra.mxu0 0.0
    %4340 = vmatpush.msra.mxu0 0.0
    %4341 = vmatpush.msra.mxu0 0.0
    %4342 = vmatpush.msra.mxu0 0.0
    %4343 = vmatpush.msra.mxu0 0.0
    %4344 = vmatpush.msra.mxu0 0.0
    %4345 = vmatpush.msra.mxu0 0.0
    %4346 = vmatpush.msra.mxu0 0.0
    %4347 = vmatpush.msra.mxu0 0.0
    %4348 = vmatpush.msra.mxu0 0.0
    %4349 = vmatpush.msra.mxu0 0.0
    %4350 = vmatpush.msra.mxu0 0.0
    %v4351 = vand.u32 %v4231, 4294901760
    %v4352 = vsub.f32 %v4231, %v4351
    %v4353 = vand.u32 %v4352, 4294901760
    %4354 = vmatpush.msra.mxu0 %v4353
    %v4355 = vand.u32 %v4234, 4294901760
    %4356 = vmatmul.f32.gmra.mxu0 %v4355
    %v4357 = vpop.f32.mrf.mxu0
    %v4358 = vadd.f32 %v4334, %v4357
    %4359 = vdwg.mxu0
    %4360 = vmatpush.msra.mxu0 0.0
    %4361 = vmatpush.msra.mxu0 0.0
    %4362 = vmatpush.msra.mxu0 0.0
    %4363 = vmatpush.msra.mxu0 0.0
    %4364 = vmatpush.msra.mxu0 0.0
    %4365 = vmatpush.msra.mxu0 0.0
    %4366 = vmatpush.msra.mxu0 0.0
    %4367 = vmatpush.msra.mxu0 0.0
    %4368 = vmatpush.msra.mxu0 0.0
    %4369 = vmatpush.msra.mxu0 0.0
    %4370 = vmatpush.msra.mxu0 0.0
    %4371 = vmatpush.msra.mxu0 0.0
    %4372 = vmatpush.msra.mxu0 0.0
    %4373 = vmatpush.msra.mxu0 0.0
    %4374 = vmatpush.msra.mxu0 0.0
    %v4375 = vand.u32 %v4231, 4294901760
    %4376 = vmatpush.msra.mxu0 %v4375
    %v4377 = vand.u32 %v4234, 4294901760
    %4378 = vmatmul.f32.gmra.mxu0 %v4377
    %v4379 = vpop.f32.mrf.mxu0
    %v4380 = vadd.f32 %v4358, %v4379
    %4381 = vdwg.mxu0
    %4382 = vmatpush.msra.mxu0 0.0
    %4383 = vmatpush.msra.mxu0 0.0
    %4384 = vmatpush.msra.mxu0 0.0
    %4385 = vmatpush.msra.mxu0 0.0
    %4386 = vmatpush.msra.mxu0 0.0
    %4387 = vmatpush.msra.mxu0 0.0
    %4388 = vmatpush.msra.mxu0 0.0
    %4389 = vmatpush.msra.mxu0 0.0
    %4390 = vmatpush.msra.mxu0 0.0
    %4391 = vmatpush.msra.mxu0 0.0
    %4392 = vmatpush.msra.mxu0 0.0
    %4393 = vmatpush.msra.mxu0 0.0
    %4394 = vmatpush.msra.mxu0 0.0
    %4395 = vmatpush.msra.mxu0 0.0
    %4396 = vmatpush.msra.mxu0 0.0
    %v4397 = vand.u32 %v4232, 4294901760
    %4398 = vmatpush.msra.mxu0 %v4397
    %v4399 = vand.u32 %v4234, 4294901760
    %v4400 = vsub.f32 %v4234, %v4399
    %v4401 = vand.u32 %v4400, 4294901760
    %v4402 = vsub.f32 %v4400, %v4401
    %v4403 = vand.u32 %v4402, 4294901760
    %4404 = vmatmul.f32.gmra.mxu0 %v4403
    %v4405 = vpop.f32.mrf.mxu0
    %v4406 = vadd.f32 0.0, %v4405
    %4407 = vdwg.mxu0
    %4408 = vmatpush.msra.mxu0 0.0
    %4409 = vmatpush.msra.mxu0 0.0
    %4410 = vmatpush.msra.mxu0 0.0
    %4411 = vmatpush.msra.mxu0 0.0
    %4412 = vmatpush.msra.mxu0 0.0
    %4413 = vmatpush.msra.mxu0 0.0
    %4414 = vmatpush.msra.mxu0 0.0
    %4415 = vmatpush.msra.mxu0 0.0
    %4416 = vmatpush.msra.mxu0 0.0
    %4417 = vmatpush.msra.mxu0 0.0
    %4418 = vmatpush.msra.mxu0 0.0
    %4419 = vmatpush.msra.mxu0 0.0
    %4420 = vmatpush.msra.mxu0 0.0
    %4421 = vmatpush.msra.mxu0 0.0
    %4422 = vmatpush.msra.mxu0 0.0
    %v4423 = vand.u32 %v4232, 4294901760
    %v4424 = vsub.f32 %v4232, %v4423
    %v4425 = vand.u32 %v4424, 4294901760
    %v4426 = vsub.f32 %v4424, %v4425
    %v4427 = vand.u32 %v4426, 4294901760
    %4428 = vmatpush.msra.mxu0 %v4427
    %v4429 = vand.u32 %v4234, 4294901760
    %4430 = vmatmul.f32.gmra.mxu0 %v4429
    %v4431 = vpop.f32.mrf.mxu0
    %v4432 = vadd.f32 %v4406, %v4431
    %4433 = vdwg.mxu0
    %4434 = vmatpush.msra.mxu0 0.0
    %4435 = vmatpush.msra.mxu0 0.0
    %4436 = vmatpush.msra.mxu0 0.0
    %4437 = vmatpush.msra.mxu0 0.0
    %4438 = vmatpush.msra.mxu0 0.0
    %4439 = vmatpush.msra.mxu0 0.0
    %4440 = vmatpush.msra.mxu0 0.0
    %4441 = vmatpush.msra.mxu0 0.0
    %4442 = vmatpush.msra.mxu0 0.0
    %4443 = vmatpush.msra.mxu0 0.0
    %4444 = vmatpush.msra.mxu0 0.0
    %4445 = vmatpush.msra.mxu0 0.0
    %4446 = vmatpush.msra.mxu0 0.0
    %4447 = vmatpush.msra.mxu0 0.0
    %4448 = vmatpush.msra.mxu0 0.0
    %v4449 = vand.u32 %v4232, 4294901760
    %v4450 = vsub.f32 %v4232, %v4449
    %4451 = vmatpush.msra.mxu0 %v4450
    %v4452 = vand.u32 %v4234, 4294901760
    %v4453 = vsub.f32 %v4234, %v4452
    %4454 = vmatmul.f32.gmra.mxu0 %v4453
    %v4455 = vpop.f32.mrf.mxu0
    %v4456 = vadd.f32 %v4432, %v4455
    %4457 = vdwg.mxu0
    %4458 = vmatpush.msra.mxu0 0.0
    %4459 = vmatpush.msra.mxu0 0.0
    %4460 = vmatpush.msra.mxu0 0.0
    %4461 = vmatpush.msra.mxu0 0.0
    %4462 = vmatpush.msra.mxu0 0.0
    %4463 = vmatpush.msra.mxu0 0.0
    %4464 = vmatpush.msra.mxu0 0.0
    %4465 = vmatpush.msra.mxu0 0.0
    %4466 = vmatpush.msra.mxu0 0.0
    %4467 = vmatpush.msra.mxu0 0.0
    %4468 = vmatpush.msra.mxu0 0.0
    %4469 = vmatpush.msra.mxu0 0.0
    %4470 = vmatpush.msra.mxu0 0.0
    %4471 = vmatpush.msra.mxu0 0.0
    %4472 = vmatpush.msra.mxu0 0.0
    %v4473 = vand.u32 %v4232, 4294901760
    %4474 = vmatpush.msra.mxu0 %v4473
    %v4475 = vand.u32 %v4234, 4294901760
    %v4476 = vsub.f32 %v4234, %v4475
    %v4477 = vand.u32 %v4476, 4294901760
    %4478 = vmatmul.f32.gmra.mxu0 %v4477
    %v4479 = vpop.f32.mrf.mxu0
    %v4480 = vadd.f32 %v4456, %v4479
    %4481 = vdwg.mxu0
    %4482 = vmatpush.msra.mxu0 0.0
    %4483 = vmatpush.msra.mxu0 0.0
    %4484 = vmatpush.msra.mxu0 0.0
    %4485 = vmatpush.msra.mxu0 0.0
    %4486 = vmatpush.msra.mxu0 0.0
    %4487 = vmatpush.msra.mxu0 0.0
    %4488 = vmatpush.msra.mxu0 0.0
    %4489 = vmatpush.msra.mxu0 0.0
    %4490 = vmatpush.msra.mxu0 0.0
    %4491 = vmatpush.msra.mxu0 0.0
    %4492 = vmatpush.msra.mxu0 0.0
    %4493 = vmatpush.msra.mxu0 0.0
    %4494 = vmatpush.msra.mxu0 0.0
    %4495 = vmatpush.msra.mxu0 0.0
    %4496 = vmatpush.msra.mxu0 0.0
    %v4497 = vand.u32 %v4232, 4294901760
    %v4498 = vsub.f32 %v4232, %v4497
    %v4499 = vand.u32 %v4498, 4294901760
    %4500 = vmatpush.msra.mxu0 %v4499
    %v4501 = vand.u32 %v4234, 4294901760
    %4502 = vmatmul.f32.gmra.mxu0 %v4501
    %v4503 = vpop.f32.mrf.mxu0
    %v4504 = vadd.f32 %v4480, %v4503
    %4505 = vdwg.mxu0
    %4506 = vmatpush.msra.mxu0 0.0
    %4507 = vmatpush.msra.mxu0 0.0
    %4508 = vmatpush.msra.mxu0 0.0
    %4509 = vmatpush.msra.mxu0 0.0
    %4510 = vmatpush.msra.mxu0 0.0
    %4511 = vmatpush.msra.mxu0 0.0
    %4512 = vmatpush.msra.mxu0 0.0
    %4513 = vmatpush.msra.mxu0 0.0
    %4514 = vmatpush.msra.mxu0 0.0
    %4515 = vmatpush.msra.mxu0 0.0
    %4516 = vmatpush.msra.mxu0 0.0
    %4517 = vmatpush.msra.mxu0 0.0
    %4518 = vmatpush.msra.mxu0 0.0
    %4519 = vmatpush.msra.mxu0 0.0
    %4520 = vmatpush.msra.mxu0 0.0
    %v4521 = vand.u32 %v4232, 4294901760
    %4522 = vmatpush.msra.mxu0 %v4521
    %v4523 = vand.u32 %v4234, 4294901760
    %4524 = vmatmul.f32.gmra.mxu0 %v4523
    %v4525 = vpop.f32.mrf.mxu0
    %v4526 = vadd.f32 %v4504, %v4525
    %4527 = vdwg.mxu0
    %v4529 = vsel %vm1752, %v4230, 0
    %4531 = vmatpush.msra.mxu0 0.0
    %4532 = vmatpush.msra.mxu0 0.0
    %4533 = vmatpush.msra.mxu0 0.0
    %4534 = vmatpush.msra.mxu0 0.0
    %4535 = vmatpush.msra.mxu0 0.0
    %4536 = vmatpush.msra.mxu0 0.0
    %4537 = vmatpush.msra.mxu0 0.0
    %4538 = vmatpush.msra.mxu0 0.0
    %4539 = vmatpush.msra.mxu0 0.0
    %4540 = vmatpush.msra.mxu0 0.0
    %4541 = vmatpush.msra.mxu0 0.0
    %4542 = vmatpush.msra.mxu0 0.0
    %4543 = vmatpush.msra.mxu0 0.0
    %4544 = vmatpush.msra.mxu0 0.0
    %4545 = vmatpush.msra.mxu0 0.0
    %v4546 = vand.u32 %v4231, 4294901760
    %4547 = vmatpush.msra.mxu0 %v4546
    %v4548 = vand.u32 %v4529, 4294901760
    %v4549 = vsub.f32 %v4529, %v4548
    %v4550 = vand.u32 %v4549, 4294901760
    %v4551 = vsub.f32 %v4549, %v4550
    %v4552 = vand.u32 %v4551, 4294901760
    %4553 = vmatmul.f32.gmra.mxu0 %v4552
    %v4554 = vpop.f32.mrf.mxu0
    %v4555 = vadd.f32 0.0, %v4554
    %4556 = vdwg.mxu0
    %4557 = vmatpush.msra.mxu0 0.0
    %4558 = vmatpush.msra.mxu0 0.0
    %4559 = vmatpush.msra.mxu0 0.0
    %4560 = vmatpush.msra.mxu0 0.0
    %4561 = vmatpush.msra.mxu0 0.0
    %4562 = vmatpush.msra.mxu0 0.0
    %4563 = vmatpush.msra.mxu0 0.0
    %4564 = vmatpush.msra.mxu0 0.0
    %4565 = vmatpush.msra.mxu0 0.0
    %4566 = vmatpush.msra.mxu0 0.0
    %4567 = vmatpush.msra.mxu0 0.0
    %4568 = vmatpush.msra.mxu0 0.0
    %4569 = vmatpush.msra.mxu0 0.0
    %4570 = vmatpush.msra.mxu0 0.0
    %4571 = vmatpush.msra.mxu0 0.0
    %v4572 = vand.u32 %v4231, 4294901760
    %v4573 = vsub.f32 %v4231, %v4572
    %v4574 = vand.u32 %v4573, 4294901760
    %v4575 = vsub.f32 %v4573, %v4574
    %v4576 = vand.u32 %v4575, 4294901760
    %4577 = vmatpush.msra.mxu0 %v4576
    %v4578 = vand.u32 %v4529, 4294901760
    %4579 = vmatmul.f32.gmra.mxu0 %v4578
    %v4580 = vpop.f32.mrf.mxu0
    %v4581 = vadd.f32 %v4555, %v4580
    %4582 = vdwg.mxu0
    %4583 = vmatpush.msra.mxu0 0.0
    %4584 = vmatpush.msra.mxu0 0.0
    %4585 = vmatpush.msra.mxu0 0.0
    %4586 = vmatpush.msra.mxu0 0.0
    %4587 = vmatpush.msra.mxu0 0.0
    %4588 = vmatpush.msra.mxu0 0.0
    %4589 = vmatpush.msra.mxu0 0.0
    %4590 = vmatpush.msra.mxu0 0.0
    %4591 = vmatpush.msra.mxu0 0.0
    %4592 = vmatpush.msra.mxu0 0.0
    %4593 = vmatpush.msra.mxu0 0.0
    %4594 = vmatpush.msra.mxu0 0.0
    %4595 = vmatpush.msra.mxu0 0.0
    %4596 = vmatpush.msra.mxu0 0.0
    %4597 = vmatpush.msra.mxu0 0.0
    %v4598 = vand.u32 %v4231, 4294901760
    %v4599 = vsub.f32 %v4231, %v4598
    %4600 = vmatpush.msra.mxu0 %v4599
    %v4601 = vand.u32 %v4529, 4294901760
    %v4602 = vsub.f32 %v4529, %v4601
    %4603 = vmatmul.f32.gmra.mxu0 %v4602
    %v4604 = vpop.f32.mrf.mxu0
    %v4605 = vadd.f32 %v4581, %v4604
    %4606 = vdwg.mxu0
    %4607 = vmatpush.msra.mxu0 0.0
    %4608 = vmatpush.msra.mxu0 0.0
    %4609 = vmatpush.msra.mxu0 0.0
    %4610 = vmatpush.msra.mxu0 0.0
    %4611 = vmatpush.msra.mxu0 0.0
    %4612 = vmatpush.msra.mxu0 0.0
    %4613 = vmatpush.msra.mxu0 0.0
    %4614 = vmatpush.msra.mxu0 0.0
    %4615 = vmatpush.msra.mxu0 0.0
    %4616 = vmatpush.msra.mxu0 0.0
    %4617 = vmatpush.msra.mxu0 0.0
    %4618 = vmatpush.msra.mxu0 0.0
    %4619 = vmatpush.msra.mxu0 0.0
    %4620 = vmatpush.msra.mxu0 0.0
    %4621 = vmatpush.msra.mxu0 0.0
    %v4622 = vand.u32 %v4231, 4294901760
    %4623 = vmatpush.msra.mxu0 %v4622
    %v4624 = vand.u32 %v4529, 4294901760
    %v4625 = vsub.f32 %v4529, %v4624
    %v4626 = vand.u32 %v4625, 4294901760
    %4627 = vmatmul.f32.gmra.mxu0 %v4626
    %v4628 = vpop.f32.mrf.mxu0
    %v4629 = vadd.f32 %v4605, %v4628
    %4630 = vdwg.mxu0
    %4631 = vmatpush.msra.mxu0 0.0
    %4632 = vmatpush.msra.mxu0 0.0
    %4633 = vmatpush.msra.mxu0 0.0
    %4634 = vmatpush.msra.mxu0 0.0
    %4635 = vmatpush.msra.mxu0 0.0
    %4636 = vmatpush.msra.mxu0 0.0
    %4637 = vmatpush.msra.mxu0 0.0
    %4638 = vmatpush.msra.mxu0 0.0
    %4639 = vmatpush.msra.mxu0 0.0
    %4640 = vmatpush.msra.mxu0 0.0
    %4641 = vmatpush.msra.mxu0 0.0
    %4642 = vmatpush.msra.mxu0 0.0
    %4643 = vmatpush.msra.mxu0 0.0
    %4644 = vmatpush.msra.mxu0 0.0
    %4645 = vmatpush.msra.mxu0 0.0
    %v4646 = vand.u32 %v4231, 4294901760
    %v4647 = vsub.f32 %v4231, %v4646
    %v4648 = vand.u32 %v4647, 4294901760
    %4649 = vmatpush.msra.mxu0 %v4648
    %v4650 = vand.u32 %v4529, 4294901760
    %4651 = vmatmul.f32.gmra.mxu0 %v4650
    %v4652 = vpop.f32.mrf.mxu0
    %v4653 = vadd.f32 %v4629, %v4652
    %4654 = vdwg.mxu0
    %4655 = vmatpush.msra.mxu0 0.0
    %4656 = vmatpush.msra.mxu0 0.0
    %4657 = vmatpush.msra.mxu0 0.0
    %4658 = vmatpush.msra.mxu0 0.0
    %4659 = vmatpush.msra.mxu0 0.0
    %4660 = vmatpush.msra.mxu0 0.0
    %4661 = vmatpush.msra.mxu0 0.0
    %4662 = vmatpush.msra.mxu0 0.0
    %4663 = vmatpush.msra.mxu0 0.0
    %4664 = vmatpush.msra.mxu0 0.0
    %4665 = vmatpush.msra.mxu0 0.0
    %4666 = vmatpush.msra.mxu0 0.0
    %4667 = vmatpush.msra.mxu0 0.0
    %4668 = vmatpush.msra.mxu0 0.0
    %4669 = vmatpush.msra.mxu0 0.0
    %v4670 = vand.u32 %v4231, 4294901760
    %4671 = vmatpush.msra.mxu0 %v4670
    %v4672 = vand.u32 %v4529, 4294901760
    %4673 = vmatmul.f32.gmra.mxu0 %v4672
    %v4674 = vpop.f32.mrf.mxu0
    %v4675 = vadd.f32 %v4653, %v4674
    %4676 = vdwg.mxu0
    %4677 = vmatpush.msra.mxu0 0.0
    %4678 = vmatpush.msra.mxu0 0.0
    %4679 = vmatpush.msra.mxu0 0.0
    %4680 = vmatpush.msra.mxu0 0.0
    %4681 = vmatpush.msra.mxu0 0.0
    %4682 = vmatpush.msra.mxu0 0.0
    %4683 = vmatpush.msra.mxu0 0.0
    %4684 = vmatpush.msra.mxu0 0.0
    %4685 = vmatpush.msra.mxu0 0.0
    %4686 = vmatpush.msra.mxu0 0.0
    %4687 = vmatpush.msra.mxu0 0.0
    %4688 = vmatpush.msra.mxu0 0.0
    %4689 = vmatpush.msra.mxu0 0.0
    %4690 = vmatpush.msra.mxu0 0.0
    %4691 = vmatpush.msra.mxu0 0.0
    %v4692 = vand.u32 %v4232, 4294901760
    %4693 = vmatpush.msra.mxu0 %v4692
    %v4694 = vand.u32 %v4529, 4294901760
    %v4695 = vsub.f32 %v4529, %v4694
    %v4696 = vand.u32 %v4695, 4294901760
    %v4697 = vsub.f32 %v4695, %v4696
    %v4698 = vand.u32 %v4697, 4294901760
    %4699 = vmatmul.f32.gmra.mxu0 %v4698
    %v4700 = vpop.f32.mrf.mxu0
    %v4701 = vadd.f32 0.0, %v4700
    %4702 = vdwg.mxu0
    %4703 = vmatpush.msra.mxu0 0.0
    %4704 = vmatpush.msra.mxu0 0.0
    %4705 = vmatpush.msra.mxu0 0.0
    %4706 = vmatpush.msra.mxu0 0.0
    %4707 = vmatpush.msra.mxu0 0.0
    %4708 = vmatpush.msra.mxu0 0.0
    %4709 = vmatpush.msra.mxu0 0.0
    %4710 = vmatpush.msra.mxu0 0.0
    %4711 = vmatpush.msra.mxu0 0.0
    %4712 = vmatpush.msra.mxu0 0.0
    %4713 = vmatpush.msra.mxu0 0.0
    %4714 = vmatpush.msra.mxu0 0.0
    %4715 = vmatpush.msra.mxu0 0.0
    %4716 = vmatpush.msra.mxu0 0.0
    %4717 = vmatpush.msra.mxu0 0.0
    %v4718 = vand.u32 %v4232, 4294901760
    %v4719 = vsub.f32 %v4232, %v4718
    %v4720 = vand.u32 %v4719, 4294901760
    %v4721 = vsub.f32 %v4719, %v4720
    %v4722 = vand.u32 %v4721, 4294901760
    %4723 = vmatpush.msra.mxu0 %v4722
    %v4724 = vand.u32 %v4529, 4294901760
    %4725 = vmatmul.f32.gmra.mxu0 %v4724
    %v4726 = vpop.f32.mrf.mxu0
    %v4727 = vadd.f32 %v4701, %v4726
    %4728 = vdwg.mxu0
    %4729 = vmatpush.msra.mxu0 0.0
    %4730 = vmatpush.msra.mxu0 0.0
    %4731 = vmatpush.msra.mxu0 0.0
    %4732 = vmatpush.msra.mxu0 0.0
    %4733 = vmatpush.msra.mxu0 0.0
    %4734 = vmatpush.msra.mxu0 0.0
    %4735 = vmatpush.msra.mxu0 0.0
    %4736 = vmatpush.msra.mxu0 0.0
    %4737 = vmatpush.msra.mxu0 0.0
    %4738 = vmatpush.msra.mxu0 0.0
    %4739 = vmatpush.msra.mxu0 0.0
    %4740 = vmatpush.msra.mxu0 0.0
    %4741 = vmatpush.msra.mxu0 0.0
    %4742 = vmatpush.msra.mxu0 0.0
    %4743 = vmatpush.msra.mxu0 0.0
    %v4744 = vand.u32 %v4232, 4294901760
    %v4745 = vsub.f32 %v4232, %v4744
    %4746 = vmatpush.msra.mxu0 %v4745
    %v4747 = vand.u32 %v4529, 4294901760
    %v4748 = vsub.f32 %v4529, %v4747
    %4749 = vmatmul.f32.gmra.mxu0 %v4748
    %v4750 = vpop.f32.mrf.mxu0
    %v4751 = vadd.f32 %v4727, %v4750
    %4752 = vdwg.mxu0
    %4753 = vmatpush.msra.mxu0 0.0
    %4754 = vmatpush.msra.mxu0 0.0
    %4755 = vmatpush.msra.mxu0 0.0
    %4756 = vmatpush.msra.mxu0 0.0
    %4757 = vmatpush.msra.mxu0 0.0
    %4758 = vmatpush.msra.mxu0 0.0
    %4759 = vmatpush.msra.mxu0 0.0
    %4760 = vmatpush.msra.mxu0 0.0
    %4761 = vmatpush.msra.mxu0 0.0
    %4762 = vmatpush.msra.mxu0 0.0
    %4763 = vmatpush.msra.mxu0 0.0
    %4764 = vmatpush.msra.mxu0 0.0
    %4765 = vmatpush.msra.mxu0 0.0
    %4766 = vmatpush.msra.mxu0 0.0
    %4767 = vmatpush.msra.mxu0 0.0
    %v4768 = vand.u32 %v4232, 4294901760
    %4769 = vmatpush.msra.mxu0 %v4768
    %v4770 = vand.u32 %v4529, 4294901760
    %v4771 = vsub.f32 %v4529, %v4770
    %v4772 = vand.u32 %v4771, 4294901760
    %4773 = vmatmul.f32.gmra.mxu0 %v4772
    %v4774 = vpop.f32.mrf.mxu0
    %v4775 = vadd.f32 %v4751, %v4774
    %4776 = vdwg.mxu0
    %4777 = vmatpush.msra.mxu0 0.0
    %4778 = vmatpush.msra.mxu0 0.0
    %4779 = vmatpush.msra.mxu0 0.0
    %4780 = vmatpush.msra.mxu0 0.0
    %4781 = vmatpush.msra.mxu0 0.0
    %4782 = vmatpush.msra.mxu0 0.0
    %4783 = vmatpush.msra.mxu0 0.0
    %4784 = vmatpush.msra.mxu0 0.0
    %4785 = vmatpush.msra.mxu0 0.0
    %4786 = vmatpush.msra.mxu0 0.0
    %4787 = vmatpush.msra.mxu0 0.0
    %4788 = vmatpush.msra.mxu0 0.0
    %4789 = vmatpush.msra.mxu0 0.0
    %4790 = vmatpush.msra.mxu0 0.0
    %4791 = vmatpush.msra.mxu0 0.0
    %v4792 = vand.u32 %v4232, 4294901760
    %v4793 = vsub.f32 %v4232, %v4792
    %v4794 = vand.u32 %v4793, 4294901760
    %4795 = vmatpush.msra.mxu0 %v4794
    %v4796 = vand.u32 %v4529, 4294901760
    %4797 = vmatmul.f32.gmra.mxu0 %v4796
    %v4798 = vpop.f32.mrf.mxu0
    %v4799 = vadd.f32 %v4775, %v4798
    %4800 = vdwg.mxu0
    %4801 = vmatpush.msra.mxu0 0.0
    %4802 = vmatpush.msra.mxu0 0.0
    %4803 = vmatpush.msra.mxu0 0.0
    %4804 = vmatpush.msra.mxu0 0.0
    %4805 = vmatpush.msra.mxu0 0.0
    %4806 = vmatpush.msra.mxu0 0.0
    %4807 = vmatpush.msra.mxu0 0.0
    %4808 = vmatpush.msra.mxu0 0.0
    %4809 = vmatpush.msra.mxu0 0.0
    %4810 = vmatpush.msra.mxu0 0.0
    %4811 = vmatpush.msra.mxu0 0.0
    %4812 = vmatpush.msra.mxu0 0.0
    %4813 = vmatpush.msra.mxu0 0.0
    %4814 = vmatpush.msra.mxu0 0.0
    %4815 = vmatpush.msra.mxu0 0.0
    %v4816 = vand.u32 %v4232, 4294901760
    %4817 = vmatpush.msra.mxu0 %v4816
    %v4818 = vand.u32 %v4529, 4294901760
    %4819 = vmatmul.f32.gmra.mxu0 %v4818
    %v4820 = vpop.f32.mrf.mxu0
    %v4821 = vadd.f32 %v4799, %v4820
    %4822 = vdwg.mxu0
    %v4823 = vperm.slane %v4380, 0
    %v4824 = vperm.slane %v4526, 0
    %v4825 = vmul.f32 %v3849, %v4823
    %v4826 = vmul.f32 %v3850, %v4824
    %v4827 = vmul.f32 %v3851, %v4823
    %v4828 = vmul.f32 %v3852, %v4824
    %v4829 = vmul.f32 %v3853, %v4823
    %v4830 = vmul.f32 %v3854, %v4824
    %v4831 = vmul.f32 %v3855, %v4823
    %v4832 = vmul.f32 %v3856, %v4824
    %v4833 = vmul.f32 %v3857, %v4823
    %v4834 = vmul.f32 %v3858, %v4824
    %v4835 = vmul.f32 %v3859, %v4823
    %v4836 = vmul.f32 %v3860, %v4824
    %v4837 = vmul.f32 %v3861, %v4823
    %v4838 = vmul.f32 %v3862, %v4824
    %v4839 = vmul.f32 %v3863, %v4823
    %v4840 = vmul.f32 %v3864, %v4824
    %v4841 = vmul.f32 %v3865, %v4823
    %v4842 = vmul.f32 %v3866, %v4824
    %v4843 = vperm.slane %v4675, 0
    %v4844 = vperm.slane %v4821, 0
    %v4845 = vadd.f32 %v4825, %v4843
    %v4846 = vadd.f32 %v4826, %v4844
    %v4847 = vadd.f32 %v4827, %v4843
    %v4848 = vadd.f32 %v4828, %v4844
    %v4849 = vadd.f32 %v4829, %v4843
    %v4850 = vadd.f32 %v4830, %v4844
    %v4851 = vadd.f32 %v4831, %v4843
    %v4852 = vadd.f32 %v4832, %v4844
    %v4853 = vadd.f32 %v4833, %v4843
    %v4854 = vadd.f32 %v4834, %v4844
    %v4855 = vadd.f32 %v4835, %v4843
    %v4856 = vadd.f32 %v4836, %v4844
    %v4857 = vadd.f32 %v4837, %v4843
    %v4858 = vadd.f32 %v4838, %v4844
    %v4859 = vadd.f32 %v4839, %v4843
    %v4860 = vadd.f32 %v4840, %v4844
    %v4861 = vadd.f32 %v4841, %v4843
    %v4862 = vadd.f32 %v4842, %v4844
    %v4863 = vmax.f32 %v4845, 0.0
    %v4864 = vmax.f32 %v4846, 0.0
    %v4865 = vmax.f32 %v4847, 0.0
    %v4866 = vmax.f32 %v4848, 0.0
    %v4867 = vmax.f32 %v4849, 0.0
    %v4868 = vmax.f32 %v4850, 0.0
    %v4869 = vmax.f32 %v4851, 0.0
    %v4870 = vmax.f32 %v4852, 0.0
    %v4871 = vmax.f32 %v4853, 0.0
    %v4872 = vmax.f32 %v4854, 0.0
    %v4873 = vmax.f32 %v4855, 0.0
    %v4874 = vmax.f32 %v4856, 0.0
    %v4875 = vmax.f32 %v4857, 0.0
    %v4876 = vmax.f32 %v4858, 0.0
    %v4877 = vmax.f32 %v4859, 0.0
    %v4878 = vmax.f32 %v4860, 0.0
    %v4879 = vmax.f32 %v4861, 0.0
    %v4880 = vmax.f32 %v4862, 0.0
    %4881 = vst [vmem:[#allocation8] sm:$0xff] %v4863
    %4882 = vst [vmem:[#allocation8 + $0x8] sm:$0xff] %v4864
    %4883 = vst [vmem:[#allocation8 + $0x10] sm:$0xff] %v4865
    %4884 = vst [vmem:[#allocation8 + $0x18] sm:$0xff] %v4866
    %4885 = vst [vmem:[#allocation8 + $0x20] sm:$0xff] %v4867
    %4886 = vst [vmem:[#allocation8 + $0x28] sm:$0xff] %v4868
    %4887 = vst [vmem:[#allocation8 + $0x30] sm:$0xff] %v4869
    %4888 = vst [vmem:[#allocation8 + $0x38] sm:$0xff] %v4870
    %vm4899 = vcmask 1045504
    %v4900 = vrot.slane %v4871, 2
    %v4901 = vrot.slane %v4873, 2
    %v4902 = vsel %vm4899, %v4900, %v4901
    %v4903 = vrot.slane %v4872, 2
    %v4904 = vrot.slane %v4874, 2
    %v4905 = vsel %vm4899, %v4903, %v4904
    %v4906 = vrot.slane %v4875, 2
    %v4907 = vsel %vm4899, %v4901, %v4906
    %v4908 = vrot.slane %v4876, 2
    %v4909 = vsel %vm4899, %v4904, %v4908
    %v4910 = vrot.slane %v4877, 2
    %v4911 = vsel %vm4899, %v4906, %v4910
    %v4912 = vrot.slane %v4878, 2
    %v4913 = vsel %vm4899, %v4908, %v4912
    %v4914 = vrot.slane %v4879, 2
    %v4915 = vsel %vm4899, %v4910, %v4914
    %v4916 = vrot.slane %v4880, 2
    %v4917 = vsel %vm4899, %v4912, %v4916
    %4926 = vst [vmem:[#allocation8 + $0x40] sm:$0xff] %v4902
    %4927 = vst [vmem:[#allocation8 + $0x48] sm:$0xff] %v4905
    %4928 = vst [vmem:[#allocation8 + $0x50] sm:$0xff] %v4907
    %4929 = vst [vmem:[#allocation8 + $0x58] sm:$0xff] %v4909
    %4930 = vst [vmem:[#allocation8 + $0x60] sm:$0xff] %v4911
    %4931 = vst [vmem:[#allocation8 + $0x68] sm:$0xff] %v4913
    %4932 = vst [vmem:[#allocation8 + $0x70] sm:$0xff] %v4915
    %4933 = vst [vmem:[#allocation8 + $0x78] sm:$0xff] %v4917
    // Predicated region
    $region62: #{tpu_custom_call.1} parent=1 // pred_check
      _
    $region63: #{tpu_custom_call.1} parent=1 // pred_check_branch
      %4935 = sbr.rel (0) target = $region65
    $region64: #{tpu_custom_call.1} parent=1 // pred_region
      %4937 = vsyncadd [#allocation5], 0
      %s4938 = sshll.u32 [#allocation8], 4
      %s4939 = int_to_ptr.vmem [resolvable:$true] %s4938
      %s4940 = sshll.u32 %s13, 4
      %s4941 = int_to_ptr.hbm [resolvable:$true] %s4940
      %4946 = dma.vmem_to_hbm [thread:$0]  %s4939, 2048, %s4941, [#allocation5], 256, 256, 16
    $region65: #{tpu_custom_call.1} parent=1 // pred_fallthru
      _
    // Predicated region
    $region66: #{tpu_custom_call.1} parent=1 // pred_check
      _
    $region67: #{tpu_custom_call.1} parent=1 // pred_check_branch
      %4948 = sbr.rel (0) target = $region69
    $region68: #{tpu_custom_call.1} parent=1 // pred_region
      %4950 = dma.done [#allocation5], 2048
    $region69: #{tpu_custom_call.1} parent=1 // pred_fallthru
      _
    %4951 = vsyncpa [#allocation4], 1
    %4952 = vsyncpa [#allocation7], 1
    %4953 = vsyncpa [#allocation5], 1

</llo_original>
